<compile_context>
chip_gen: v7x
topology: tpu7x:2x2x1
jax: 0.10.0
libtpu: 0.0.40
codegen_flags: <defaults>
</compile_context>

<pallas_src>
import functools

import jax
import jax.numpy as jnp
from jax.experimental import pallas as pl
from jax.experimental.pallas import tpu as pltpu


def _round_up(x, m):
    return ((x + m - 1) // m) * m


def _shortcut_a_kernel(x_ref, o_ref, *, c_in, pad, ho, wo):
    """One block of `nb` batch samples per grid step.

    x_ref block: (nb, C, H*W)          lane-dense per-channel rows
    o_ref block: (nb, C_out*Ho*Wo)     one lane-dense flat row per sample
    """
    nb = x_ref.shape[0]
    hw = ho * wo
    w_full = 2 * wo  # original image width

    x = x_ref[...]                                               # (nb, C, H*W)
    # Even H rows: view each channel's lanes as Ho rows of 2*W and keep the
    # first W lanes of each (contiguous lane slice; C stays off the lane dim).
    x = x.reshape(nb * c_in, ho, 2 * w_full)[:, :, :w_full]      # (nb*C, Ho, W)
    # Even W columns: de-interleave the lane pairs and keep index 0.
    x = x.reshape(nb * c_in * ho, wo, 2)[:, :, 0]                # (nb*C*Ho, Wo)
    # One lane-dense flat row per sample, channel-major (== NCHW flattening).
    y = x.reshape(nb, c_in * hw)                                 # (nb, C*Ho*Wo)

    # Real channels at lane offset pad*hw, width C*hw (128-multiples for the
    # CIFAR-ResNet stages -> wide unmasked stores); zeros only in the pads.
    o_ref[:, pad * hw:pad * hw + c_in * hw] = y.astype(o_ref.dtype)
    if pad > 0:
        zeros = jnp.zeros((nb, pad * hw), dtype=o_ref.dtype)
        o_ref[:, :pad * hw] = zeros
        o_ref[:, pad * hw + c_in * hw:] = zeros


def _padded_tile_bytes(sublane_dim, lane_dim, itemsize):
    """VMEM bytes of a (sublane_dim, lane_dim) tile after layout padding."""
    sub = max(8, 32 // itemsize)  # 8 for 4-byte, 16 for bf16, 32 for int8
    return _round_up(sublane_dim, sub) * _round_up(lane_dim, 128) * itemsize


def _pick_batch_block(n, per_sample_bytes, budget):
    """Largest batch block whose double-buffered, layout-padded in+out working
    set fits `budget`.  The flat output block's second-to-last dim must be a
    multiple of 8 or the full batch, so blocks are kept 8-aligned (or == n)."""
    nb = max(1, budget // max(per_sample_bytes, 1))
    if nb >= n:
        # Whole batch fits in one step.  For large batches still split into
        # >=2 sublane-aligned blocks so both v7x TensorCores get work under
        # the "parallel" grid axis.
        if n >= 16:
            return _round_up(-(-n // 2), 8)
        return n
    nb = max(8, (nb // 8) * 8)
    return n if nb >= n else nb


def lambda_layer_shortcut_a(x: jax.Array, planes: int) -> jax.Array:
    """JAX/Pallas equivalent of
    LambdaLayer(lambda x: F.pad(x[:, :, ::2, ::2],
                                (0,0,0,0, planes//4, planes//4), "constant", 0))
    for NCHW inputs with even H and W (the CIFAR-ResNet case)."""
    n, c, h, w = x.shape
    if h % 2 or w % 2:
        # TODO(synk): PyTorch ::2 keeps ceil(H/2) rows/cols for odd sizes; the
        # CIFAR-ResNet shapes are always even so only that case is supported.
        raise ValueError("lambda_layer_shortcut_a expects even H and W")
    pad = planes // 4
    ho, wo = h // 2, w // 2
    hw = ho * wo
    c_out = c + 2 * pad
    itemsize = jnp.dtype(x.dtype).itemsize

    # Padded VMEM bytes one sample contributes to the (nb, C, H*W) input block
    # and the (nb, C_out*Ho*Wo) output block, x2 for double-buffering of both.
    in_bytes = _padded_tile_bytes(c, h * w, itemsize)
    out_bytes = _round_up(c_out * hw, 128) * itemsize
    per_sample = 2 * (in_bytes + out_bytes)

    # ~12 MiB of padded, double-buffered working set per grid step: amortizes
    # the ~0.35us/step pipeline overhead while fitting v5e's 16 MiB scoped
    # default and staying well under 64 MiB/TensorCore on v7x.
    nb = _pick_batch_block(n, per_sample, 12 << 20)
    grid = (pl.cdiv(n, nb),)  # partial last block; no nb=1 collapse

    # Free, contiguous reshape: per-sample (C, H*W) lane-dense slabs.
    x_r = x.reshape(n, c, h * w)

    kernel = functools.partial(_shortcut_a_kernel, c_in=c, pad=pad, ho=ho, wo=wo)

    out_r = pl.pallas_call(
        kernel,
        out_shape=jax.ShapeDtypeStruct((n, c_out * hw), x.dtype),
        grid=grid,
        in_specs=[pl.BlockSpec((nb, c, h * w), lambda i: (i, 0, 0))],
        out_specs=pl.BlockSpec((nb, c_out * hw), lambda i: (i, 0)),
        compiler_params=pltpu.CompilerParams(
            dimension_semantics=("parallel",),
            vmem_limit_bytes=48 << 20,  # <= v7x 64 MiB/TC; ample on v5e/v6e
        ),
        cost_estimate=pl.CostEstimate(
            flops=0,
            transcendentals=0,
            bytes_accessed=(n * c * h * w + n * c_out * hw) * itemsize,
        ),
    )(x_r)

    return out_r.reshape(n, c_out, ho, wo)


if __name__ == "__main__":
    key = jax.random.PRNGKey(0)

    # Small shapes consistent with the CIFAR-ResNet option-A shortcut:
    #   input  (N, C, H, W) = (2, 4, 16, 16), planes = 8
    #   output (N, C + 2*(planes//4), H/2, W/2) = (2, 8, 8, 8)
    N, C, H, W = 2, 4, 16, 16
    planes = 8

    x = jax.random.normal(key, (N, C, H, W), dtype=jnp.float32)

    out = lambda_layer_shortcut_a(x, planes)
    out = jax.block_until_ready(out)

    # Pure-JAX reference of the lambda for a correctness check.
    pad = planes // 4
    ref = jnp.pad(
        x[:, :, ::2, ::2],
        ((0, 0), (pad, pad), (0, 0), (0, 0)),
        mode="constant",
        constant_values=0.0,
    )

    assert out.shape == ref.shape, (out.shape, ref.shape)
    assert jnp.allclose(out, ref), "Pallas output mismatch vs reference"

    print("KERNEL_OK")
</pallas_src>

<mosaic_0001>
module attributes {stable_mosaic.version = 11 : i64} {
  func.func @_shortcut_a_kernel(%arg0: i32, %arg1: memref<2x4x256xf32, #tpu.memory_space<vmem>>, %arg2: memref<2x512xf32, #tpu.memory_space<vmem>>) attributes {dimension_semantics = [#tpu.dimension_semantics<parallel>], iteration_bounds = array<i64: 1>, scalar_prefetch = 0 : i64, scratch_operands = 0 : i64, tpu.core_type = #tpu.core_type<tc>, window_params = [{transform_indices = @transform_0, window_bounds = array<i64: 2, 4, 256>}, {transform_indices = @transform_1, window_bounds = array<i64: 2, 512>}]} {
    %c0 = arith.constant 0 : index
    %c0_0 = arith.constant 0 : index
    %c0_1 = arith.constant 0 : index
    %0 = vector.load %arg1[%c0, %c0_0, %c0_1] : memref<2x4x256xf32, #tpu.memory_space<vmem>>, vector<2x4x256xf32>
    %1 = vector.shape_cast %0 : vector<2x4x256xf32> to vector<8x8x32xf32>
    %2 = vector.extract_strided_slice %1 {offsets = [0, 0, 0], sizes = [8, 8, 16], strides = [1, 1, 1]} : vector<8x8x32xf32> to vector<8x8x16xf32>
    %3 = vector.shape_cast %2 : vector<8x8x16xf32> to vector<64x8x2xf32>
    %4 = vector.extract_strided_slice %3 {offsets = [0, 0, 0], sizes = [64, 8, 1], strides = [1, 1, 1]} : vector<64x8x2xf32> to vector<64x8x1xf32>
    %5 = vector.shape_cast %4 : vector<64x8x1xf32> to vector<64x8xf32>
    %6 = vector.shape_cast %5 : vector<64x8xf32> to vector<2x256xf32>
    %c0_2 = arith.constant 0 : index
    %c128 = arith.constant 128 : index
    %7 = vector.load %arg2[%c0_2, %c128] : memref<2x512xf32, #tpu.memory_space<vmem>>, vector<2x256xf32>
    tpu.vector_store %arg2[%c0_2, %c128], %6 {strides = array<i32>} : memref<2x512xf32, #tpu.memory_space<vmem>>, vector<2x256xf32>,
    %cst = arith.constant 0.000000e+00 : f32
    %8 = vector.broadcast %cst : f32 to vector<2x128xf32>
    %c0_3 = arith.constant 0 : index
    %c0_4 = arith.constant 0 : index
    %9 = vector.load %arg2[%c0_3, %c0_4] : memref<2x512xf32, #tpu.memory_space<vmem>>, vector<2x128xf32>
    tpu.vector_store %arg2[%c0_3, %c0_4], %8 {strides = array<i32>} : memref<2x512xf32, #tpu.memory_space<vmem>>, vector<2x128xf32>,
    %c0_5 = arith.constant 0 : index
    %c384 = arith.constant 384 : index
    %10 = vector.load %arg2[%c0_5, %c384] : memref<2x512xf32, #tpu.memory_space<vmem>>, vector<2x128xf32>
    tpu.vector_store %arg2[%c0_5, %c384], %8 {strides = array<i32>} : memref<2x512xf32, #tpu.memory_space<vmem>>, vector<2x128xf32>,
    return
  }
  func.func @transform_0(%arg0: i32) -> (i32, i32, i32) {
    %c0_i32 = arith.constant 0 : i32
    %c0_i32_0 = arith.constant 0 : i32
    %c0_i32_1 = arith.constant 0 : i32
    return %arg0, %c0_i32, %c0_i32_0 : i32, i32, i32
  }
  func.func @transform_1(%arg0: i32) -> (i32, i32) {
    %c0_i32 = arith.constant 0 : i32
    %c0_i32_0 = arith.constant 0 : i32
    return %arg0, %c0_i32 : i32, i32
  }
}

</mosaic_0001>

<llo_original>
// kernel: tpu_custom_call.1
$region0: #{tpu_custom_call.1}
  #allocation0 [shape = 'u32[]', space=smem, size = 0x4, offset = 0x4, fixed_abs, tag = 'smem constant byte address 0x4 - core index']
  #allocation1 [shape = 'u32[144,128]{1,0:T(1,128)}', space=vmem, size = 0x12000, scoped, tag = 'internal scratch']
  %s0 = inlined_call_operand.hbm [shape: f32[2,4,256], index: 0, kind: input, shape index: {}]
  %s1 = inlined_call_operand.hbm [shape: f32[2,512], index: 1, kind: output, shape index: {}]
  %s2 = sld [smem:[#allocation0]]
  $region18: #{tpu_custom_call.1} parent=0
    _
  %s4 = ssub.s32 1, %s2
  %s5 = scalar_select 0, %s4, %s2
  $region1: #{tpu_custom_call.1} parent=0
    #allocation2 [shape = 'u8[8192]{0}', space=vmem, size = 0x2000, scoped, tag = 'input window, operand 0, single buffered']
    #allocation3 [shape = 's32[1]{0}', space=sflag, size = 0x4, scoped, tag = 'scoped memory for tpu_custom_call.1']
    #allocation4 [shape = 's32[1]{0}', space=sflag, size = 0x4, scoped, tag = 'scoped memory for tpu_custom_call.1']
    #allocation5 [shape = 'u8[4096]{0}', space=vmem, size = 0x1000, scoped, tag = 'output window, operand 0, single buffered']
    %6 = vsyncpa [#allocation3], 0
    %7 = vsyncpa [#allocation4], 0
    // Predicated region
    $region2: #{tpu_custom_call.1} parent=1 // pred_check
      _
    $region3: #{tpu_custom_call.1} parent=1 // pred_check_branch
      %9 = sbr.rel (0) target = $region5
    $region4: #{tpu_custom_call.1} parent=1 // pred_region
      %s11 = ssub.s32 256, 256
      %12 = vsyncadd [#allocation3], %s11
      %s13 = sshll.u32 [#allocation2], 4
      %s14 = int_to_ptr.vmem [resolvable:$true] %s13
      %19 = dma.hbm_to_vmem [thread:$0]  %s0, 256, %s14, [#allocation3], 128, 128, 8
    $region5: #{tpu_custom_call.1} parent=1 // pred_fallthru
      _
    // Predicated region
    $region6: #{tpu_custom_call.1} parent=1 // pred_check
      _
    $region7: #{tpu_custom_call.1} parent=1 // pred_check_branch
      %21 = sbr.rel (0) target = $region9
    $region8: #{tpu_custom_call.1} parent=1 // pred_region
      %22 = dma.done [#allocation3], 256
    $region9: #{tpu_custom_call.1} parent=1 // pred_fallthru
      _
    %v23 = vld [vmem:[#allocation2] sm:$0xff]
    %v24 = vld [vmem:[#allocation2 + $0x8] sm:$0xff]
    %v27 = vrot.slane %v23, 4
    %v28 = vrot.slane %v24, 4
    %31 = vrot.lane.b32.xlu0 %v23, 96
    %v32 = vpop.permute.xlu0 %31
    %33 = vrot.lane.b32.xlu0 %v24, 96
    %v34 = vpop.permute.xlu0 %33
    %v35 = vrot.slane %v32, 4
    %v36 = vrot.slane %v34, 4
    %39 = vrot.lane.b32.xlu0 %v23, 64
    %v40 = vpop.permute.xlu0 %39
    %41 = vrot.lane.b32.xlu0 %v24, 64
    %v42 = vpop.permute.xlu0 %41
    %v43 = vrot.slane %v40, 4
    %v44 = vrot.slane %v42, 4
    %47 = vrot.lane.b32.xlu0 %v23, 32
    %v48 = vpop.permute.xlu0 %47
    %49 = vrot.lane.b32.xlu0 %v24, 32
    %v50 = vpop.permute.xlu0 %49
    %v51 = vrot.slane %v48, 4
    %v52 = vrot.slane %v50, 4
    %v61 = vcombine.low %v23, %v40
    %v63 = vunpack.c.l.s4 1983009808
    %v64 = vunpack.c.0.s8 %v63
    %v65 = vlaneseq
    %v66 = vshrl.u32 %v65, 7
    %v67 = vsub.s32 %v64, %v66
    %v68 = vrot.slane %v61, %v67
    %v69 = vcombine.low %v32, %v48
    %v71 = vunpack.c.l.s4 1983009808
    %v72 = vunpack.c.0.s8 %v71
    %v73 = vlaneseq
    %v74 = vshrl.u32 %v73, 7
    %v75 = vsub.s32 %v72, %v74
    %v76 = vrot.slane %v69, %v75
    %v77 = vcombine.low %v68, %v76
    %v78 = vcombine.high %v68, %v76
    %v80 = vunpack.c.l.s4 1934713408
    %v81 = vunpack.c.0.s8 %v80
    %v82 = vlaneseq
    %v83 = vshrl.u32 %v82, 7
    %v84 = vsub.s32 %v81, %v83
    %v85 = vrot.slane %v77, %v84
    %v87 = vunpack.c.l.s4 1934713408
    %v88 = vunpack.c.0.s8 %v87
    %v89 = vlaneseq
    %v90 = vshrl.u32 %v89, 7
    %v91 = vsub.s32 %v88, %v90
    %v92 = vrot.slane %v78, %v91
    %v93 = vcombine.high %v85, 0.0
    %v94 = vcombine.high %v92, 0.0
    %v95 = vcombine.low %v27, %v43
    %v97 = vunpack.c.l.s4 1983009808
    %v98 = vunpack.c.0.s8 %v97
    %v99 = vlaneseq
    %v100 = vshrl.u32 %v99, 7
    %v101 = vsub.s32 %v98, %v100
    %v102 = vrot.slane %v95, %v101
    %v103 = vcombine.low %v35, %v51
    %v105 = vunpack.c.l.s4 1983009808
    %v106 = vunpack.c.0.s8 %v105
    %v107 = vlaneseq
    %v108 = vshrl.u32 %v107, 7
    %v109 = vsub.s32 %v106, %v108
    %v110 = vrot.slane %v103, %v109
    %v111 = vcombine.low %v102, %v110
    %v112 = vcombine.high %v102, %v110
    %v114 = vunpack.c.l.s4 1934713408
    %v115 = vunpack.c.0.s8 %v114
    %v116 = vlaneseq
    %v117 = vshrl.u32 %v116, 7
    %v118 = vsub.s32 %v115, %v117
    %v119 = vrot.slane %v111, %v118
    %v121 = vunpack.c.l.s4 1934713408
    %v122 = vunpack.c.0.s8 %v121
    %v123 = vlaneseq
    %v124 = vshrl.u32 %v123, 7
    %v125 = vsub.s32 %v122, %v124
    %v126 = vrot.slane %v112, %v125
    %v127 = vcombine.high %v119, 0.0
    %v128 = vcombine.high %v126, 0.0
    %v129 = vcombine.low %v24, %v42
    %v131 = vunpack.c.l.s4 1983009808
    %v132 = vunpack.c.0.s8 %v131
    %v133 = vlaneseq
    %v134 = vshrl.u32 %v133, 7
    %v135 = vsub.s32 %v132, %v134
    %v136 = vrot.slane %v129, %v135
    %v137 = vcombine.low %v34, %v50
    %v139 = vunpack.c.l.s4 1983009808
    %v140 = vunpack.c.0.s8 %v139
    %v141 = vlaneseq
    %v142 = vshrl.u32 %v141, 7
    %v143 = vsub.s32 %v140, %v142
    %v144 = vrot.slane %v137, %v143
    %v145 = vcombine.low %v136, %v144
    %v146 = vcombine.high %v136, %v144
    %v148 = vunpack.c.l.s4 1934713408
    %v149 = vunpack.c.0.s8 %v148
    %v150 = vlaneseq
    %v151 = vshrl.u32 %v150, 7
    %v152 = vsub.s32 %v149, %v151
    %v153 = vrot.slane %v145, %v152
    %v155 = vunpack.c.l.s4 1934713408
    %v156 = vunpack.c.0.s8 %v155
    %v157 = vlaneseq
    %v158 = vshrl.u32 %v157, 7
    %v159 = vsub.s32 %v156, %v158
    %v160 = vrot.slane %v146, %v159
    %v161 = vcombine.high %v153, 0.0
    %v162 = vcombine.high %v160, 0.0
    %v163 = vcombine.low %v28, %v44
    %v165 = vunpack.c.l.s4 1983009808
    %v166 = vunpack.c.0.s8 %v165
    %v167 = vlaneseq
    %v168 = vshrl.u32 %v167, 7
    %v169 = vsub.s32 %v166, %v168
    %v170 = vrot.slane %v163, %v169
    %v171 = vcombine.low %v36, %v52
    %v173 = vunpack.c.l.s4 1983009808
    %v174 = vunpack.c.0.s8 %v173
    %v175 = vlaneseq
    %v176 = vshrl.u32 %v175, 7
    %v177 = vsub.s32 %v174, %v176
    %v178 = vrot.slane %v171, %v177
    %v179 = vcombine.low %v170, %v178
    %v180 = vcombine.high %v170, %v178
    %v182 = vunpack.c.l.s4 1934713408
    %v183 = vunpack.c.0.s8 %v182
    %v184 = vlaneseq
    %v185 = vshrl.u32 %v184, 7
    %v186 = vsub.s32 %v183, %v185
    %v187 = vrot.slane %v179, %v186
    %v189 = vunpack.c.l.s4 1934713408
    %v190 = vunpack.c.0.s8 %v189
    %v191 = vlaneseq
    %v192 = vshrl.u32 %v191, 7
    %v193 = vsub.s32 %v190, %v192
    %v194 = vrot.slane %v180, %v193
    %v195 = vcombine.high %v187, 0.0
    %v196 = vcombine.high %v194, 0.0
    %213 = vrot.lane.b32.xlu0 %v85, 126
    %v214 = vpop.permute.xlu0 %213
    %215 = vrot.lane.b32.xlu0 %v119, 126
    %v216 = vpop.permute.xlu0 %215
    %217 = vrot.lane.b32.xlu0 %v93, 126
    %v218 = vpop.permute.xlu0 %217
    %219 = vrot.lane.b32.xlu0 %v127, 126
    %v220 = vpop.permute.xlu0 %219
    %221 = vrot.lane.b32.xlu0 %v92, 126
    %v222 = vpop.permute.xlu0 %221
    %223 = vrot.lane.b32.xlu0 %v126, 126
    %v224 = vpop.permute.xlu0 %223
    %225 = vrot.lane.b32.xlu0 %v94, 126
    %v226 = vpop.permute.xlu0 %225
    %227 = vrot.lane.b32.xlu0 %v128, 126
    %v228 = vpop.permute.xlu0 %227
    %229 = vrot.lane.b32.xlu0 %v153, 126
    %v230 = vpop.permute.xlu0 %229
    %231 = vrot.lane.b32.xlu0 %v187, 126
    %v232 = vpop.permute.xlu0 %231
    %233 = vrot.lane.b32.xlu0 %v161, 126
    %v234 = vpop.permute.xlu0 %233
    %235 = vrot.lane.b32.xlu0 %v195, 126
    %v236 = vpop.permute.xlu0 %235
    %237 = vrot.lane.b32.xlu0 %v160, 126
    %v238 = vpop.permute.xlu0 %237
    %239 = vrot.lane.b32.xlu0 %v194, 126
    %v240 = vpop.permute.xlu0 %239
    %241 = vrot.lane.b32.xlu0 %v162, 126
    %v242 = vpop.permute.xlu0 %241
    %243 = vrot.lane.b32.xlu0 %v196, 126
    %v244 = vpop.permute.xlu0 %243
    %261 = vrot.lane.b32.xlu0 %v85, 124
    %v262 = vpop.permute.xlu0 %261
    %263 = vrot.lane.b32.xlu0 %v119, 124
    %v264 = vpop.permute.xlu0 %263
    %265 = vrot.lane.b32.xlu0 %v93, 124
    %v266 = vpop.permute.xlu0 %265
    %267 = vrot.lane.b32.xlu0 %v127, 124
    %v268 = vpop.permute.xlu0 %267
    %269 = vrot.lane.b32.xlu0 %v92, 124
    %v270 = vpop.permute.xlu0 %269
    %271 = vrot.lane.b32.xlu0 %v126, 124
    %v272 = vpop.permute.xlu0 %271
    %273 = vrot.lane.b32.xlu0 %v94, 124
    %v274 = vpop.permute.xlu0 %273
    %275 = vrot.lane.b32.xlu0 %v128, 124
    %v276 = vpop.permute.xlu0 %275
    %277 = vrot.lane.b32.xlu0 %v153, 124
    %v278 = vpop.permute.xlu0 %277
    %279 = vrot.lane.b32.xlu0 %v187, 124
    %v280 = vpop.permute.xlu0 %279
    %281 = vrot.lane.b32.xlu0 %v161, 124
    %v282 = vpop.permute.xlu0 %281
    %283 = vrot.lane.b32.xlu0 %v195, 124
    %v284 = vpop.permute.xlu0 %283
    %285 = vrot.lane.b32.xlu0 %v160, 124
    %v286 = vpop.permute.xlu0 %285
    %287 = vrot.lane.b32.xlu0 %v194, 124
    %v288 = vpop.permute.xlu0 %287
    %289 = vrot.lane.b32.xlu0 %v162, 124
    %v290 = vpop.permute.xlu0 %289
    %291 = vrot.lane.b32.xlu0 %v196, 124
    %v292 = vpop.permute.xlu0 %291
    %309 = vrot.lane.b32.xlu0 %v85, 122
    %v310 = vpop.permute.xlu0 %309
    %311 = vrot.lane.b32.xlu0 %v119, 122
    %v312 = vpop.permute.xlu0 %311
    %313 = vrot.lane.b32.xlu0 %v93, 122
    %v314 = vpop.permute.xlu0 %313
    %315 = vrot.lane.b32.xlu0 %v127, 122
    %v316 = vpop.permute.xlu0 %315
    %317 = vrot.lane.b32.xlu0 %v92, 122
    %v318 = vpop.permute.xlu0 %317
    %319 = vrot.lane.b32.xlu0 %v126, 122
    %v320 = vpop.permute.xlu0 %319
    %321 = vrot.lane.b32.xlu0 %v94, 122
    %v322 = vpop.permute.xlu0 %321
    %323 = vrot.lane.b32.xlu0 %v128, 122
    %v324 = vpop.permute.xlu0 %323
    %325 = vrot.lane.b32.xlu0 %v153, 122
    %v326 = vpop.permute.xlu0 %325
    %327 = vrot.lane.b32.xlu0 %v187, 122
    %v328 = vpop.permute.xlu0 %327
    %329 = vrot.lane.b32.xlu0 %v161, 122
    %v330 = vpop.permute.xlu0 %329
    %331 = vrot.lane.b32.xlu0 %v195, 122
    %v332 = vpop.permute.xlu0 %331
    %333 = vrot.lane.b32.xlu0 %v160, 122
    %v334 = vpop.permute.xlu0 %333
    %335 = vrot.lane.b32.xlu0 %v194, 122
    %v336 = vpop.permute.xlu0 %335
    %337 = vrot.lane.b32.xlu0 %v162, 122
    %v338 = vpop.permute.xlu0 %337
    %339 = vrot.lane.b32.xlu0 %v196, 122
    %v340 = vpop.permute.xlu0 %339
    %357 = vrot.lane.b32.xlu0 %v85, 120
    %v358 = vpop.permute.xlu0 %357
    %359 = vrot.lane.b32.xlu0 %v119, 120
    %v360 = vpop.permute.xlu0 %359
    %361 = vrot.lane.b32.xlu0 %v93, 120
    %v362 = vpop.permute.xlu0 %361
    %363 = vrot.lane.b32.xlu0 %v127, 120
    %v364 = vpop.permute.xlu0 %363
    %365 = vrot.lane.b32.xlu0 %v92, 120
    %v366 = vpop.permute.xlu0 %365
    %367 = vrot.lane.b32.xlu0 %v126, 120
    %v368 = vpop.permute.xlu0 %367
    %369 = vrot.lane.b32.xlu0 %v94, 120
    %v370 = vpop.permute.xlu0 %369
    %371 = vrot.lane.b32.xlu0 %v128, 120
    %v372 = vpop.permute.xlu0 %371
    %373 = vrot.lane.b32.xlu0 %v153, 120
    %v374 = vpop.permute.xlu0 %373
    %375 = vrot.lane.b32.xlu0 %v187, 120
    %v376 = vpop.permute.xlu0 %375
    %377 = vrot.lane.b32.xlu0 %v161, 120
    %v378 = vpop.permute.xlu0 %377
    %379 = vrot.lane.b32.xlu0 %v195, 120
    %v380 = vpop.permute.xlu0 %379
    %381 = vrot.lane.b32.xlu0 %v160, 120
    %v382 = vpop.permute.xlu0 %381
    %383 = vrot.lane.b32.xlu0 %v194, 120
    %v384 = vpop.permute.xlu0 %383
    %385 = vrot.lane.b32.xlu0 %v162, 120
    %v386 = vpop.permute.xlu0 %385
    %387 = vrot.lane.b32.xlu0 %v196, 120
    %v388 = vpop.permute.xlu0 %387
    %405 = vrot.lane.b32.xlu0 %v85, 118
    %v406 = vpop.permute.xlu0 %405
    %407 = vrot.lane.b32.xlu0 %v119, 118
    %v408 = vpop.permute.xlu0 %407
    %409 = vrot.lane.b32.xlu0 %v93, 118
    %v410 = vpop.permute.xlu0 %409
    %411 = vrot.lane.b32.xlu0 %v127, 118
    %v412 = vpop.permute.xlu0 %411
    %413 = vrot.lane.b32.xlu0 %v92, 118
    %v414 = vpop.permute.xlu0 %413
    %415 = vrot.lane.b32.xlu0 %v126, 118
    %v416 = vpop.permute.xlu0 %415
    %417 = vrot.lane.b32.xlu0 %v94, 118
    %v418 = vpop.permute.xlu0 %417
    %419 = vrot.lane.b32.xlu0 %v128, 118
    %v420 = vpop.permute.xlu0 %419
    %421 = vrot.lane.b32.xlu0 %v153, 118
    %v422 = vpop.permute.xlu0 %421
    %423 = vrot.lane.b32.xlu0 %v187, 118
    %v424 = vpop.permute.xlu0 %423
    %425 = vrot.lane.b32.xlu0 %v161, 118
    %v426 = vpop.permute.xlu0 %425
    %427 = vrot.lane.b32.xlu0 %v195, 118
    %v428 = vpop.permute.xlu0 %427
    %429 = vrot.lane.b32.xlu0 %v160, 118
    %v430 = vpop.permute.xlu0 %429
    %431 = vrot.lane.b32.xlu0 %v194, 118
    %v432 = vpop.permute.xlu0 %431
    %433 = vrot.lane.b32.xlu0 %v162, 118
    %v434 = vpop.permute.xlu0 %433
    %435 = vrot.lane.b32.xlu0 %v196, 118
    %v436 = vpop.permute.xlu0 %435
    %453 = vrot.lane.b32.xlu0 %v85, 116
    %v454 = vpop.permute.xlu0 %453
    %455 = vrot.lane.b32.xlu0 %v119, 116
    %v456 = vpop.permute.xlu0 %455
    %457 = vrot.lane.b32.xlu0 %v93, 116
    %v458 = vpop.permute.xlu0 %457
    %459 = vrot.lane.b32.xlu0 %v127, 116
    %v460 = vpop.permute.xlu0 %459
    %461 = vrot.lane.b32.xlu0 %v92, 116
    %v462 = vpop.permute.xlu0 %461
    %463 = vrot.lane.b32.xlu0 %v126, 116
    %v464 = vpop.permute.xlu0 %463
    %465 = vrot.lane.b32.xlu0 %v94, 116
    %v466 = vpop.permute.xlu0 %465
    %467 = vrot.lane.b32.xlu0 %v128, 116
    %v468 = vpop.permute.xlu0 %467
    %469 = vrot.lane.b32.xlu0 %v153, 116
    %v470 = vpop.permute.xlu0 %469
    %471 = vrot.lane.b32.xlu0 %v187, 116
    %v472 = vpop.permute.xlu0 %471
    %473 = vrot.lane.b32.xlu0 %v161, 116
    %v474 = vpop.permute.xlu0 %473
    %475 = vrot.lane.b32.xlu0 %v195, 116
    %v476 = vpop.permute.xlu0 %475
    %477 = vrot.lane.b32.xlu0 %v160, 116
    %v478 = vpop.permute.xlu0 %477
    %479 = vrot.lane.b32.xlu0 %v194, 116
    %v480 = vpop.permute.xlu0 %479
    %481 = vrot.lane.b32.xlu0 %v162, 116
    %v482 = vpop.permute.xlu0 %481
    %483 = vrot.lane.b32.xlu0 %v196, 116
    %v484 = vpop.permute.xlu0 %483
    %501 = vrot.lane.b32.xlu0 %v85, 114
    %v502 = vpop.permute.xlu0 %501
    %503 = vrot.lane.b32.xlu0 %v119, 114
    %v504 = vpop.permute.xlu0 %503
    %505 = vrot.lane.b32.xlu0 %v93, 114
    %v506 = vpop.permute.xlu0 %505
    %507 = vrot.lane.b32.xlu0 %v127, 114
    %v508 = vpop.permute.xlu0 %507
    %509 = vrot.lane.b32.xlu0 %v92, 114
    %v510 = vpop.permute.xlu0 %509
    %511 = vrot.lane.b32.xlu0 %v126, 114
    %v512 = vpop.permute.xlu0 %511
    %513 = vrot.lane.b32.xlu0 %v94, 114
    %v514 = vpop.permute.xlu0 %513
    %515 = vrot.lane.b32.xlu0 %v128, 114
    %v516 = vpop.permute.xlu0 %515
    %517 = vrot.lane.b32.xlu0 %v153, 114
    %v518 = vpop.permute.xlu0 %517
    %519 = vrot.lane.b32.xlu0 %v187, 114
    %v520 = vpop.permute.xlu0 %519
    %521 = vrot.lane.b32.xlu0 %v161, 114
    %v522 = vpop.permute.xlu0 %521
    %523 = vrot.lane.b32.xlu0 %v195, 114
    %v524 = vpop.permute.xlu0 %523
    %525 = vrot.lane.b32.xlu0 %v160, 114
    %v526 = vpop.permute.xlu0 %525
    %527 = vrot.lane.b32.xlu0 %v194, 114
    %v528 = vpop.permute.xlu0 %527
    %529 = vrot.lane.b32.xlu0 %v162, 114
    %v530 = vpop.permute.xlu0 %529
    %531 = vrot.lane.b32.xlu0 %v196, 114
    %v532 = vpop.permute.xlu0 %531
    %v549 = vcombine.low %v85, %v262
    %v551 = vunpack.c.l.s4 1983009808
    %v552 = vunpack.c.0.s8 %v551
    %v553 = vlaneseq
    %v554 = vshrl.u32 %v553, 7
    %v555 = vsub.s32 %v552, %v554
    %v556 = vrot.slane %v549, %v555
    %v557 = vcombine.low %v214, %v310
    %v559 = vunpack.c.l.s4 1983009808
    %v560 = vunpack.c.0.s8 %v559
    %v561 = vlaneseq
    %v562 = vshrl.u32 %v561, 7
    %v563 = vsub.s32 %v560, %v562
    %v564 = vrot.slane %v557, %v563
    %v565 = vcombine.low %v556, %v564
    %v566 = vcombine.high %v556, %v564
    %v568 = vunpack.c.l.s4 1934713408
    %v569 = vunpack.c.0.s8 %v568
    %v570 = vlaneseq
    %v571 = vshrl.u32 %v570, 7
    %v572 = vsub.s32 %v569, %v571
    %v573 = vrot.slane %v565, %v572
    %v575 = vunpack.c.l.s4 1934713408
    %v576 = vunpack.c.0.s8 %v575
    %v577 = vlaneseq
    %v578 = vshrl.u32 %v577, 7
    %v579 = vsub.s32 %v576, %v578
    %v580 = vrot.slane %v566, %v579
    %v581 = vcombine.high %v573, 0.0
    %v582 = vcombine.high %v580, 0.0
    %v583 = vcombine.low %v358, %v454
    %v585 = vunpack.c.l.s4 1983009808
    %v586 = vunpack.c.0.s8 %v585
    %v587 = vlaneseq
    %v588 = vshrl.u32 %v587, 7
    %v589 = vsub.s32 %v586, %v588
    %v590 = vrot.slane %v583, %v589
    %v591 = vcombine.low %v406, %v502
    %v593 = vunpack.c.l.s4 1983009808
    %v594 = vunpack.c.0.s8 %v593
    %v595 = vlaneseq
    %v596 = vshrl.u32 %v595, 7
    %v597 = vsub.s32 %v594, %v596
    %v598 = vrot.slane %v591, %v597
    %v599 = vcombine.low %v590, %v598
    %v600 = vcombine.high %v590, %v598
    %v602 = vunpack.c.l.s4 1934713408
    %v603 = vunpack.c.0.s8 %v602
    %v604 = vlaneseq
    %v605 = vshrl.u32 %v604, 7
    %v606 = vsub.s32 %v603, %v605
    %v607 = vrot.slane %v599, %v606
    %v609 = vunpack.c.l.s4 1934713408
    %v610 = vunpack.c.0.s8 %v609
    %v611 = vlaneseq
    %v612 = vshrl.u32 %v611, 7
    %v613 = vsub.s32 %v610, %v612
    %v614 = vrot.slane %v600, %v613
    %v615 = vcombine.high %v607, 0.0
    %v616 = vcombine.high %v614, 0.0
    %v617 = vcombine.low %v119, %v264
    %v619 = vunpack.c.l.s4 1983009808
    %v620 = vunpack.c.0.s8 %v619
    %v621 = vlaneseq
    %v622 = vshrl.u32 %v621, 7
    %v623 = vsub.s32 %v620, %v622
    %v624 = vrot.slane %v617, %v623
    %v625 = vcombine.low %v216, %v312
    %v627 = vunpack.c.l.s4 1983009808
    %v628 = vunpack.c.0.s8 %v627
    %v629 = vlaneseq
    %v630 = vshrl.u32 %v629, 7
    %v631 = vsub.s32 %v628, %v630
    %v632 = vrot.slane %v625, %v631
    %v633 = vcombine.low %v624, %v632
    %v634 = vcombine.high %v624, %v632
    %v636 = vunpack.c.l.s4 1934713408
    %v637 = vunpack.c.0.s8 %v636
    %v638 = vlaneseq
    %v639 = vshrl.u32 %v638, 7
    %v640 = vsub.s32 %v637, %v639
    %v641 = vrot.slane %v633, %v640
    %v643 = vunpack.c.l.s4 1934713408
    %v644 = vunpack.c.0.s8 %v643
    %v645 = vlaneseq
    %v646 = vshrl.u32 %v645, 7
    %v647 = vsub.s32 %v644, %v646
    %v648 = vrot.slane %v634, %v647
    %v649 = vcombine.high %v641, 0.0
    %v650 = vcombine.high %v648, 0.0
    %v651 = vcombine.low %v360, %v456
    %v653 = vunpack.c.l.s4 1983009808
    %v654 = vunpack.c.0.s8 %v653
    %v655 = vlaneseq
    %v656 = vshrl.u32 %v655, 7
    %v657 = vsub.s32 %v654, %v656
    %v658 = vrot.slane %v651, %v657
    %v659 = vcombine.low %v408, %v504
    %v661 = vunpack.c.l.s4 1983009808
    %v662 = vunpack.c.0.s8 %v661
    %v663 = vlaneseq
    %v664 = vshrl.u32 %v663, 7
    %v665 = vsub.s32 %v662, %v664
    %v666 = vrot.slane %v659, %v665
    %v667 = vcombine.low %v658, %v666
    %v668 = vcombine.high %v658, %v666
    %v670 = vunpack.c.l.s4 1934713408
    %v671 = vunpack.c.0.s8 %v670
    %v672 = vlaneseq
    %v673 = vshrl.u32 %v672, 7
    %v674 = vsub.s32 %v671, %v673
    %v675 = vrot.slane %v667, %v674
    %v677 = vunpack.c.l.s4 1934713408
    %v678 = vunpack.c.0.s8 %v677
    %v679 = vlaneseq
    %v680 = vshrl.u32 %v679, 7
    %v681 = vsub.s32 %v678, %v680
    %v682 = vrot.slane %v668, %v681
    %v683 = vcombine.high %v675, 0.0
    %v684 = vcombine.high %v682, 0.0
    %v685 = vcombine.low %v93, %v266
    %v687 = vunpack.c.l.s4 1983009808
    %v688 = vunpack.c.0.s8 %v687
    %v689 = vlaneseq
    %v690 = vshrl.u32 %v689, 7
    %v691 = vsub.s32 %v688, %v690
    %v692 = vrot.slane %v685, %v691
    %v693 = vcombine.low %v218, %v314
    %v695 = vunpack.c.l.s4 1983009808
    %v696 = vunpack.c.0.s8 %v695
    %v697 = vlaneseq
    %v698 = vshrl.u32 %v697, 7
    %v699 = vsub.s32 %v696, %v698
    %v700 = vrot.slane %v693, %v699
    %v701 = vcombine.low %v692, %v700
    %v702 = vcombine.high %v692, %v700
    %v704 = vunpack.c.l.s4 1934713408
    %v705 = vunpack.c.0.s8 %v704
    %v706 = vlaneseq
    %v707 = vshrl.u32 %v706, 7
    %v708 = vsub.s32 %v705, %v707
    %v709 = vrot.slane %v701, %v708
    %v711 = vunpack.c.l.s4 1934713408
    %v712 = vunpack.c.0.s8 %v711
    %v713 = vlaneseq
    %v714 = vshrl.u32 %v713, 7
    %v715 = vsub.s32 %v712, %v714
    %v716 = vrot.slane %v702, %v715
    %v717 = vcombine.high %v709, 0.0
    %v718 = vcombine.high %v716, 0.0
    %v719 = vcombine.low %v362, %v458
    %v721 = vunpack.c.l.s4 1983009808
    %v722 = vunpack.c.0.s8 %v721
    %v723 = vlaneseq
    %v724 = vshrl.u32 %v723, 7
    %v725 = vsub.s32 %v722, %v724
    %v726 = vrot.slane %v719, %v725
    %v727 = vcombine.low %v410, %v506
    %v729 = vunpack.c.l.s4 1983009808
    %v730 = vunpack.c.0.s8 %v729
    %v731 = vlaneseq
    %v732 = vshrl.u32 %v731, 7
    %v733 = vsub.s32 %v730, %v732
    %v734 = vrot.slane %v727, %v733
    %v735 = vcombine.low %v726, %v734
    %v736 = vcombine.high %v726, %v734
    %v738 = vunpack.c.l.s4 1934713408
    %v739 = vunpack.c.0.s8 %v738
    %v740 = vlaneseq
    %v741 = vshrl.u32 %v740, 7
    %v742 = vsub.s32 %v739, %v741
    %v743 = vrot.slane %v735, %v742
    %v745 = vunpack.c.l.s4 1934713408
    %v746 = vunpack.c.0.s8 %v745
    %v747 = vlaneseq
    %v748 = vshrl.u32 %v747, 7
    %v749 = vsub.s32 %v746, %v748
    %v750 = vrot.slane %v736, %v749
    %v751 = vcombine.high %v743, 0.0
    %v752 = vcombine.high %v750, 0.0
    %v753 = vcombine.low %v127, %v268
    %v755 = vunpack.c.l.s4 1983009808
    %v756 = vunpack.c.0.s8 %v755
    %v757 = vlaneseq
    %v758 = vshrl.u32 %v757, 7
    %v759 = vsub.s32 %v756, %v758
    %v760 = vrot.slane %v753, %v759
    %v761 = vcombine.low %v220, %v316
    %v763 = vunpack.c.l.s4 1983009808
    %v764 = vunpack.c.0.s8 %v763
    %v765 = vlaneseq
    %v766 = vshrl.u32 %v765, 7
    %v767 = vsub.s32 %v764, %v766
    %v768 = vrot.slane %v761, %v767
    %v769 = vcombine.low %v760, %v768
    %v770 = vcombine.high %v760, %v768
    %v772 = vunpack.c.l.s4 1934713408
    %v773 = vunpack.c.0.s8 %v772
    %v774 = vlaneseq
    %v775 = vshrl.u32 %v774, 7
    %v776 = vsub.s32 %v773, %v775
    %v777 = vrot.slane %v769, %v776
    %v779 = vunpack.c.l.s4 1934713408
    %v780 = vunpack.c.0.s8 %v779
    %v781 = vlaneseq
    %v782 = vshrl.u32 %v781, 7
    %v783 = vsub.s32 %v780, %v782
    %v784 = vrot.slane %v770, %v783
    %v785 = vcombine.high %v777, 0.0
    %v786 = vcombine.high %v784, 0.0
    %v787 = vcombine.low %v364, %v460
    %v789 = vunpack.c.l.s4 1983009808
    %v790 = vunpack.c.0.s8 %v789
    %v791 = vlaneseq
    %v792 = vshrl.u32 %v791, 7
    %v793 = vsub.s32 %v790, %v792
    %v794 = vrot.slane %v787, %v793
    %v795 = vcombine.low %v412, %v508
    %v797 = vunpack.c.l.s4 1983009808
    %v798 = vunpack.c.0.s8 %v797
    %v799 = vlaneseq
    %v800 = vshrl.u32 %v799, 7
    %v801 = vsub.s32 %v798, %v800
    %v802 = vrot.slane %v795, %v801
    %v803 = vcombine.low %v794, %v802
    %v804 = vcombine.high %v794, %v802
    %v806 = vunpack.c.l.s4 1934713408
    %v807 = vunpack.c.0.s8 %v806
    %v808 = vlaneseq
    %v809 = vshrl.u32 %v808, 7
    %v810 = vsub.s32 %v807, %v809
    %v811 = vrot.slane %v803, %v810
    %v813 = vunpack.c.l.s4 1934713408
    %v814 = vunpack.c.0.s8 %v813
    %v815 = vlaneseq
    %v816 = vshrl.u32 %v815, 7
    %v817 = vsub.s32 %v814, %v816
    %v818 = vrot.slane %v804, %v817
    %v819 = vcombine.high %v811, 0.0
    %v820 = vcombine.high %v818, 0.0
    %v821 = vcombine.low %v92, %v270
    %v823 = vunpack.c.l.s4 1983009808
    %v824 = vunpack.c.0.s8 %v823
    %v825 = vlaneseq
    %v826 = vshrl.u32 %v825, 7
    %v827 = vsub.s32 %v824, %v826
    %v828 = vrot.slane %v821, %v827
    %v829 = vcombine.low %v222, %v318
    %v831 = vunpack.c.l.s4 1983009808
    %v832 = vunpack.c.0.s8 %v831
    %v833 = vlaneseq
    %v834 = vshrl.u32 %v833, 7
    %v835 = vsub.s32 %v832, %v834
    %v836 = vrot.slane %v829, %v835
    %v837 = vcombine.low %v828, %v836
    %v838 = vcombine.high %v828, %v836
    %v840 = vunpack.c.l.s4 1934713408
    %v841 = vunpack.c.0.s8 %v840
    %v842 = vlaneseq
    %v843 = vshrl.u32 %v842, 7
    %v844 = vsub.s32 %v841, %v843
    %v845 = vrot.slane %v837, %v844
    %v847 = vunpack.c.l.s4 1934713408
    %v848 = vunpack.c.0.s8 %v847
    %v849 = vlaneseq
    %v850 = vshrl.u32 %v849, 7
    %v851 = vsub.s32 %v848, %v850
    %v852 = vrot.slane %v838, %v851
    %v853 = vcombine.high %v845, 0.0
    %v854 = vcombine.high %v852, 0.0
    %v855 = vcombine.low %v366, %v462
    %v857 = vunpack.c.l.s4 1983009808
    %v858 = vunpack.c.0.s8 %v857
    %v859 = vlaneseq
    %v860 = vshrl.u32 %v859, 7
    %v861 = vsub.s32 %v858, %v860
    %v862 = vrot.slane %v855, %v861
    %v863 = vcombine.low %v414, %v510
    %v865 = vunpack.c.l.s4 1983009808
    %v866 = vunpack.c.0.s8 %v865
    %v867 = vlaneseq
    %v868 = vshrl.u32 %v867, 7
    %v869 = vsub.s32 %v866, %v868
    %v870 = vrot.slane %v863, %v869
    %v871 = vcombine.low %v862, %v870
    %v872 = vcombine.high %v862, %v870
    %v874 = vunpack.c.l.s4 1934713408
    %v875 = vunpack.c.0.s8 %v874
    %v876 = vlaneseq
    %v877 = vshrl.u32 %v876, 7
    %v878 = vsub.s32 %v875, %v877
    %v879 = vrot.slane %v871, %v878
    %v881 = vunpack.c.l.s4 1934713408
    %v882 = vunpack.c.0.s8 %v881
    %v883 = vlaneseq
    %v884 = vshrl.u32 %v883, 7
    %v885 = vsub.s32 %v882, %v884
    %v886 = vrot.slane %v872, %v885
    %v887 = vcombine.high %v879, 0.0
    %v888 = vcombine.high %v886, 0.0
    %v889 = vcombine.low %v126, %v272
    %v891 = vunpack.c.l.s4 1983009808
    %v892 = vunpack.c.0.s8 %v891
    %v893 = vlaneseq
    %v894 = vshrl.u32 %v893, 7
    %v895 = vsub.s32 %v892, %v894
    %v896 = vrot.slane %v889, %v895
    %v897 = vcombine.low %v224, %v320
    %v899 = vunpack.c.l.s4 1983009808
    %v900 = vunpack.c.0.s8 %v899
    %v901 = vlaneseq
    %v902 = vshrl.u32 %v901, 7
    %v903 = vsub.s32 %v900, %v902
    %v904 = vrot.slane %v897, %v903
    %v905 = vcombine.low %v896, %v904
    %v906 = vcombine.high %v896, %v904
    %v908 = vunpack.c.l.s4 1934713408
    %v909 = vunpack.c.0.s8 %v908
    %v910 = vlaneseq
    %v911 = vshrl.u32 %v910, 7
    %v912 = vsub.s32 %v909, %v911
    %v913 = vrot.slane %v905, %v912
    %v915 = vunpack.c.l.s4 1934713408
    %v916 = vunpack.c.0.s8 %v915
    %v917 = vlaneseq
    %v918 = vshrl.u32 %v917, 7
    %v919 = vsub.s32 %v916, %v918
    %v920 = vrot.slane %v906, %v919
    %v921 = vcombine.high %v913, 0.0
    %v922 = vcombine.high %v920, 0.0
    %v923 = vcombine.low %v368, %v464
    %v925 = vunpack.c.l.s4 1983009808
    %v926 = vunpack.c.0.s8 %v925
    %v927 = vlaneseq
    %v928 = vshrl.u32 %v927, 7
    %v929 = vsub.s32 %v926, %v928
    %v930 = vrot.slane %v923, %v929
    %v931 = vcombine.low %v416, %v512
    %v933 = vunpack.c.l.s4 1983009808
    %v934 = vunpack.c.0.s8 %v933
    %v935 = vlaneseq
    %v936 = vshrl.u32 %v935, 7
    %v937 = vsub.s32 %v934, %v936
    %v938 = vrot.slane %v931, %v937
    %v939 = vcombine.low %v930, %v938
    %v940 = vcombine.high %v930, %v938
    %v942 = vunpack.c.l.s4 1934713408
    %v943 = vunpack.c.0.s8 %v942
    %v944 = vlaneseq
    %v945 = vshrl.u32 %v944, 7
    %v946 = vsub.s32 %v943, %v945
    %v947 = vrot.slane %v939, %v946
    %v949 = vunpack.c.l.s4 1934713408
    %v950 = vunpack.c.0.s8 %v949
    %v951 = vlaneseq
    %v952 = vshrl.u32 %v951, 7
    %v953 = vsub.s32 %v950, %v952
    %v954 = vrot.slane %v940, %v953
    %v955 = vcombine.high %v947, 0.0
    %v956 = vcombine.high %v954, 0.0
    %v957 = vcombine.low %v94, %v274
    %v959 = vunpack.c.l.s4 1983009808
    %v960 = vunpack.c.0.s8 %v959
    %v961 = vlaneseq
    %v962 = vshrl.u32 %v961, 7
    %v963 = vsub.s32 %v960, %v962
    %v964 = vrot.slane %v957, %v963
    %v965 = vcombine.low %v226, %v322
    %v967 = vunpack.c.l.s4 1983009808
    %v968 = vunpack.c.0.s8 %v967
    %v969 = vlaneseq
    %v970 = vshrl.u32 %v969, 7
    %v971 = vsub.s32 %v968, %v970
    %v972 = vrot.slane %v965, %v971
    %v973 = vcombine.low %v964, %v972
    %v974 = vcombine.high %v964, %v972
    %v976 = vunpack.c.l.s4 1934713408
    %v977 = vunpack.c.0.s8 %v976
    %v978 = vlaneseq
    %v979 = vshrl.u32 %v978, 7
    %v980 = vsub.s32 %v977, %v979
    %v981 = vrot.slane %v973, %v980
    %v983 = vunpack.c.l.s4 1934713408
    %v984 = vunpack.c.0.s8 %v983
    %v985 = vlaneseq
    %v986 = vshrl.u32 %v985, 7
    %v987 = vsub.s32 %v984, %v986
    %v988 = vrot.slane %v974, %v987
    %v989 = vcombine.high %v981, 0.0
    %v990 = vcombine.high %v988, 0.0
    %v991 = vcombine.low %v370, %v466
    %v993 = vunpack.c.l.s4 1983009808
    %v994 = vunpack.c.0.s8 %v993
    %v995 = vlaneseq
    %v996 = vshrl.u32 %v995, 7
    %v997 = vsub.s32 %v994, %v996
    %v998 = vrot.slane %v991, %v997
    %v999 = vcombine.low %v418, %v514
    %v1001 = vunpack.c.l.s4 1983009808
    %v1002 = vunpack.c.0.s8 %v1001
    %v1003 = vlaneseq
    %v1004 = vshrl.u32 %v1003, 7
    %v1005 = vsub.s32 %v1002, %v1004
    %v1006 = vrot.slane %v999, %v1005
    %v1007 = vcombine.low %v998, %v1006
    %v1008 = vcombine.high %v998, %v1006
    %v1010 = vunpack.c.l.s4 1934713408
    %v1011 = vunpack.c.0.s8 %v1010
    %v1012 = vlaneseq
    %v1013 = vshrl.u32 %v1012, 7
    %v1014 = vsub.s32 %v1011, %v1013
    %v1015 = vrot.slane %v1007, %v1014
    %v1017 = vunpack.c.l.s4 1934713408
    %v1018 = vunpack.c.0.s8 %v1017
    %v1019 = vlaneseq
    %v1020 = vshrl.u32 %v1019, 7
    %v1021 = vsub.s32 %v1018, %v1020
    %v1022 = vrot.slane %v1008, %v1021
    %v1023 = vcombine.high %v1015, 0.0
    %v1024 = vcombine.high %v1022, 0.0
    %v1025 = vcombine.low %v128, %v276
    %v1027 = vunpack.c.l.s4 1983009808
    %v1028 = vunpack.c.0.s8 %v1027
    %v1029 = vlaneseq
    %v1030 = vshrl.u32 %v1029, 7
    %v1031 = vsub.s32 %v1028, %v1030
    %v1032 = vrot.slane %v1025, %v1031
    %v1033 = vcombine.low %v228, %v324
    %v1035 = vunpack.c.l.s4 1983009808
    %v1036 = vunpack.c.0.s8 %v1035
    %v1037 = vlaneseq
    %v1038 = vshrl.u32 %v1037, 7
    %v1039 = vsub.s32 %v1036, %v1038
    %v1040 = vrot.slane %v1033, %v1039
    %v1041 = vcombine.low %v1032, %v1040
    %v1042 = vcombine.high %v1032, %v1040
    %v1044 = vunpack.c.l.s4 1934713408
    %v1045 = vunpack.c.0.s8 %v1044
    %v1046 = vlaneseq
    %v1047 = vshrl.u32 %v1046, 7
    %v1048 = vsub.s32 %v1045, %v1047
    %v1049 = vrot.slane %v1041, %v1048
    %v1051 = vunpack.c.l.s4 1934713408
    %v1052 = vunpack.c.0.s8 %v1051
    %v1053 = vlaneseq
    %v1054 = vshrl.u32 %v1053, 7
    %v1055 = vsub.s32 %v1052, %v1054
    %v1056 = vrot.slane %v1042, %v1055
    %v1057 = vcombine.high %v1049, 0.0
    %v1058 = vcombine.high %v1056, 0.0
    %v1059 = vcombine.low %v372, %v468
    %v1061 = vunpack.c.l.s4 1983009808
    %v1062 = vunpack.c.0.s8 %v1061
    %v1063 = vlaneseq
    %v1064 = vshrl.u32 %v1063, 7
    %v1065 = vsub.s32 %v1062, %v1064
    %v1066 = vrot.slane %v1059, %v1065
    %v1067 = vcombine.low %v420, %v516
    %v1069 = vunpack.c.l.s4 1983009808
    %v1070 = vunpack.c.0.s8 %v1069
    %v1071 = vlaneseq
    %v1072 = vshrl.u32 %v1071, 7
    %v1073 = vsub.s32 %v1070, %v1072
    %v1074 = vrot.slane %v1067, %v1073
    %v1075 = vcombine.low %v1066, %v1074
    %v1076 = vcombine.high %v1066, %v1074
    %v1078 = vunpack.c.l.s4 1934713408
    %v1079 = vunpack.c.0.s8 %v1078
    %v1080 = vlaneseq
    %v1081 = vshrl.u32 %v1080, 7
    %v1082 = vsub.s32 %v1079, %v1081
    %v1083 = vrot.slane %v1075, %v1082
    %v1085 = vunpack.c.l.s4 1934713408
    %v1086 = vunpack.c.0.s8 %v1085
    %v1087 = vlaneseq
    %v1088 = vshrl.u32 %v1087, 7
    %v1089 = vsub.s32 %v1086, %v1088
    %v1090 = vrot.slane %v1076, %v1089
    %v1091 = vcombine.high %v1083, 0.0
    %v1092 = vcombine.high %v1090, 0.0
    %v1093 = vcombine.low %v153, %v278
    %v1095 = vunpack.c.l.s4 1983009808
    %v1096 = vunpack.c.0.s8 %v1095
    %v1097 = vlaneseq
    %v1098 = vshrl.u32 %v1097, 7
    %v1099 = vsub.s32 %v1096, %v1098
    %v1100 = vrot.slane %v1093, %v1099
    %v1101 = vcombine.low %v230, %v326
    %v1103 = vunpack.c.l.s4 1983009808
    %v1104 = vunpack.c.0.s8 %v1103
    %v1105 = vlaneseq
    %v1106 = vshrl.u32 %v1105, 7
    %v1107 = vsub.s32 %v1104, %v1106
    %v1108 = vrot.slane %v1101, %v1107
    %v1109 = vcombine.low %v1100, %v1108
    %v1110 = vcombine.high %v1100, %v1108
    %v1112 = vunpack.c.l.s4 1934713408
    %v1113 = vunpack.c.0.s8 %v1112
    %v1114 = vlaneseq
    %v1115 = vshrl.u32 %v1114, 7
    %v1116 = vsub.s32 %v1113, %v1115
    %v1117 = vrot.slane %v1109, %v1116
    %v1119 = vunpack.c.l.s4 1934713408
    %v1120 = vunpack.c.0.s8 %v1119
    %v1121 = vlaneseq
    %v1122 = vshrl.u32 %v1121, 7
    %v1123 = vsub.s32 %v1120, %v1122
    %v1124 = vrot.slane %v1110, %v1123
    %v1125 = vcombine.high %v1117, 0.0
    %v1126 = vcombine.high %v1124, 0.0
    %v1127 = vcombine.low %v374, %v470
    %v1129 = vunpack.c.l.s4 1983009808
    %v1130 = vunpack.c.0.s8 %v1129
    %v1131 = vlaneseq
    %v1132 = vshrl.u32 %v1131, 7
    %v1133 = vsub.s32 %v1130, %v1132
    %v1134 = vrot.slane %v1127, %v1133
    %v1135 = vcombine.low %v422, %v518
    %v1137 = vunpack.c.l.s4 1983009808
    %v1138 = vunpack.c.0.s8 %v1137
    %v1139 = vlaneseq
    %v1140 = vshrl.u32 %v1139, 7
    %v1141 = vsub.s32 %v1138, %v1140
    %v1142 = vrot.slane %v1135, %v1141
    %v1143 = vcombine.low %v1134, %v1142
    %v1144 = vcombine.high %v1134, %v1142
    %v1146 = vunpack.c.l.s4 1934713408
    %v1147 = vunpack.c.0.s8 %v1146
    %v1148 = vlaneseq
    %v1149 = vshrl.u32 %v1148, 7
    %v1150 = vsub.s32 %v1147, %v1149
    %v1151 = vrot.slane %v1143, %v1150
    %v1153 = vunpack.c.l.s4 1934713408
    %v1154 = vunpack.c.0.s8 %v1153
    %v1155 = vlaneseq
    %v1156 = vshrl.u32 %v1155, 7
    %v1157 = vsub.s32 %v1154, %v1156
    %v1158 = vrot.slane %v1144, %v1157
    %v1159 = vcombine.high %v1151, 0.0
    %v1160 = vcombine.high %v1158, 0.0
    %v1161 = vcombine.low %v187, %v280
    %v1163 = vunpack.c.l.s4 1983009808
    %v1164 = vunpack.c.0.s8 %v1163
    %v1165 = vlaneseq
    %v1166 = vshrl.u32 %v1165, 7
    %v1167 = vsub.s32 %v1164, %v1166
    %v1168 = vrot.slane %v1161, %v1167
    %v1169 = vcombine.low %v232, %v328
    %v1171 = vunpack.c.l.s4 1983009808
    %v1172 = vunpack.c.0.s8 %v1171
    %v1173 = vlaneseq
    %v1174 = vshrl.u32 %v1173, 7
    %v1175 = vsub.s32 %v1172, %v1174
    %v1176 = vrot.slane %v1169, %v1175
    %v1177 = vcombine.low %v1168, %v1176
    %v1178 = vcombine.high %v1168, %v1176
    %v1180 = vunpack.c.l.s4 1934713408
    %v1181 = vunpack.c.0.s8 %v1180
    %v1182 = vlaneseq
    %v1183 = vshrl.u32 %v1182, 7
    %v1184 = vsub.s32 %v1181, %v1183
    %v1185 = vrot.slane %v1177, %v1184
    %v1187 = vunpack.c.l.s4 1934713408
    %v1188 = vunpack.c.0.s8 %v1187
    %v1189 = vlaneseq
    %v1190 = vshrl.u32 %v1189, 7
    %v1191 = vsub.s32 %v1188, %v1190
    %v1192 = vrot.slane %v1178, %v1191
    %v1193 = vcombine.high %v1185, 0.0
    %v1194 = vcombine.high %v1192, 0.0
    %v1195 = vcombine.low %v376, %v472
    %v1197 = vunpack.c.l.s4 1983009808
    %v1198 = vunpack.c.0.s8 %v1197
    %v1199 = vlaneseq
    %v1200 = vshrl.u32 %v1199, 7
    %v1201 = vsub.s32 %v1198, %v1200
    %v1202 = vrot.slane %v1195, %v1201
    %v1203 = vcombine.low %v424, %v520
    %v1205 = vunpack.c.l.s4 1983009808
    %v1206 = vunpack.c.0.s8 %v1205
    %v1207 = vlaneseq
    %v1208 = vshrl.u32 %v1207, 7
    %v1209 = vsub.s32 %v1206, %v1208
    %v1210 = vrot.slane %v1203, %v1209
    %v1211 = vcombine.low %v1202, %v1210
    %v1212 = vcombine.high %v1202, %v1210
    %v1214 = vunpack.c.l.s4 1934713408
    %v1215 = vunpack.c.0.s8 %v1214
    %v1216 = vlaneseq
    %v1217 = vshrl.u32 %v1216, 7
    %v1218 = vsub.s32 %v1215, %v1217
    %v1219 = vrot.slane %v1211, %v1218
    %v1221 = vunpack.c.l.s4 1934713408
    %v1222 = vunpack.c.0.s8 %v1221
    %v1223 = vlaneseq
    %v1224 = vshrl.u32 %v1223, 7
    %v1225 = vsub.s32 %v1222, %v1224
    %v1226 = vrot.slane %v1212, %v1225
    %v1227 = vcombine.high %v1219, 0.0
    %v1228 = vcombine.high %v1226, 0.0
    %v1229 = vcombine.low %v161, %v282
    %v1231 = vunpack.c.l.s4 1983009808
    %v1232 = vunpack.c.0.s8 %v1231
    %v1233 = vlaneseq
    %v1234 = vshrl.u32 %v1233, 7
    %v1235 = vsub.s32 %v1232, %v1234
    %v1236 = vrot.slane %v1229, %v1235
    %v1237 = vcombine.low %v234, %v330
    %v1239 = vunpack.c.l.s4 1983009808
    %v1240 = vunpack.c.0.s8 %v1239
    %v1241 = vlaneseq
    %v1242 = vshrl.u32 %v1241, 7
    %v1243 = vsub.s32 %v1240, %v1242
    %v1244 = vrot.slane %v1237, %v1243
    %v1245 = vcombine.low %v1236, %v1244
    %v1246 = vcombine.high %v1236, %v1244
    %v1248 = vunpack.c.l.s4 1934713408
    %v1249 = vunpack.c.0.s8 %v1248
    %v1250 = vlaneseq
    %v1251 = vshrl.u32 %v1250, 7
    %v1252 = vsub.s32 %v1249, %v1251
    %v1253 = vrot.slane %v1245, %v1252
    %v1255 = vunpack.c.l.s4 1934713408
    %v1256 = vunpack.c.0.s8 %v1255
    %v1257 = vlaneseq
    %v1258 = vshrl.u32 %v1257, 7
    %v1259 = vsub.s32 %v1256, %v1258
    %v1260 = vrot.slane %v1246, %v1259
    %v1261 = vcombine.high %v1253, 0.0
    %v1262 = vcombine.high %v1260, 0.0
    %v1263 = vcombine.low %v378, %v474
    %v1265 = vunpack.c.l.s4 1983009808
    %v1266 = vunpack.c.0.s8 %v1265
    %v1267 = vlaneseq
    %v1268 = vshrl.u32 %v1267, 7
    %v1269 = vsub.s32 %v1266, %v1268
    %v1270 = vrot.slane %v1263, %v1269
    %v1271 = vcombine.low %v426, %v522
    %v1273 = vunpack.c.l.s4 1983009808
    %v1274 = vunpack.c.0.s8 %v1273
    %v1275 = vlaneseq
    %v1276 = vshrl.u32 %v1275, 7
    %v1277 = vsub.s32 %v1274, %v1276
    %v1278 = vrot.slane %v1271, %v1277
    %v1279 = vcombine.low %v1270, %v1278
    %v1280 = vcombine.high %v1270, %v1278
    %v1282 = vunpack.c.l.s4 1934713408
    %v1283 = vunpack.c.0.s8 %v1282
    %v1284 = vlaneseq
    %v1285 = vshrl.u32 %v1284, 7
    %v1286 = vsub.s32 %v1283, %v1285
    %v1287 = vrot.slane %v1279, %v1286
    %v1289 = vunpack.c.l.s4 1934713408
    %v1290 = vunpack.c.0.s8 %v1289
    %v1291 = vlaneseq
    %v1292 = vshrl.u32 %v1291, 7
    %v1293 = vsub.s32 %v1290, %v1292
    %v1294 = vrot.slane %v1280, %v1293
    %v1295 = vcombine.high %v1287, 0.0
    %v1296 = vcombine.high %v1294, 0.0
    %v1297 = vcombine.low %v195, %v284
    %v1299 = vunpack.c.l.s4 1983009808
    %v1300 = vunpack.c.0.s8 %v1299
    %v1301 = vlaneseq
    %v1302 = vshrl.u32 %v1301, 7
    %v1303 = vsub.s32 %v1300, %v1302
    %v1304 = vrot.slane %v1297, %v1303
    %v1305 = vcombine.low %v236, %v332
    %v1307 = vunpack.c.l.s4 1983009808
    %v1308 = vunpack.c.0.s8 %v1307
    %v1309 = vlaneseq
    %v1310 = vshrl.u32 %v1309, 7
    %v1311 = vsub.s32 %v1308, %v1310
    %v1312 = vrot.slane %v1305, %v1311
    %v1313 = vcombine.low %v1304, %v1312
    %v1314 = vcombine.high %v1304, %v1312
    %v1316 = vunpack.c.l.s4 1934713408
    %v1317 = vunpack.c.0.s8 %v1316
    %v1318 = vlaneseq
    %v1319 = vshrl.u32 %v1318, 7
    %v1320 = vsub.s32 %v1317, %v1319
    %v1321 = vrot.slane %v1313, %v1320
    %v1323 = vunpack.c.l.s4 1934713408
    %v1324 = vunpack.c.0.s8 %v1323
    %v1325 = vlaneseq
    %v1326 = vshrl.u32 %v1325, 7
    %v1327 = vsub.s32 %v1324, %v1326
    %v1328 = vrot.slane %v1314, %v1327
    %v1329 = vcombine.high %v1321, 0.0
    %v1330 = vcombine.high %v1328, 0.0
    %v1331 = vcombine.low %v380, %v476
    %v1333 = vunpack.c.l.s4 1983009808
    %v1334 = vunpack.c.0.s8 %v1333
    %v1335 = vlaneseq
    %v1336 = vshrl.u32 %v1335, 7
    %v1337 = vsub.s32 %v1334, %v1336
    %v1338 = vrot.slane %v1331, %v1337
    %v1339 = vcombine.low %v428, %v524
    %v1341 = vunpack.c.l.s4 1983009808
    %v1342 = vunpack.c.0.s8 %v1341
    %v1343 = vlaneseq
    %v1344 = vshrl.u32 %v1343, 7
    %v1345 = vsub.s32 %v1342, %v1344
    %v1346 = vrot.slane %v1339, %v1345
    %v1347 = vcombine.low %v1338, %v1346
    %v1348 = vcombine.high %v1338, %v1346
    %v1350 = vunpack.c.l.s4 1934713408
    %v1351 = vunpack.c.0.s8 %v1350
    %v1352 = vlaneseq
    %v1353 = vshrl.u32 %v1352, 7
    %v1354 = vsub.s32 %v1351, %v1353
    %v1355 = vrot.slane %v1347, %v1354
    %v1357 = vunpack.c.l.s4 1934713408
    %v1358 = vunpack.c.0.s8 %v1357
    %v1359 = vlaneseq
    %v1360 = vshrl.u32 %v1359, 7
    %v1361 = vsub.s32 %v1358, %v1360
    %v1362 = vrot.slane %v1348, %v1361
    %v1363 = vcombine.high %v1355, 0.0
    %v1364 = vcombine.high %v1362, 0.0
    %v1365 = vcombine.low %v160, %v286
    %v1367 = vunpack.c.l.s4 1983009808
    %v1368 = vunpack.c.0.s8 %v1367
    %v1369 = vlaneseq
    %v1370 = vshrl.u32 %v1369, 7
    %v1371 = vsub.s32 %v1368, %v1370
    %v1372 = vrot.slane %v1365, %v1371
    %v1373 = vcombine.low %v238, %v334
    %v1375 = vunpack.c.l.s4 1983009808
    %v1376 = vunpack.c.0.s8 %v1375
    %v1377 = vlaneseq
    %v1378 = vshrl.u32 %v1377, 7
    %v1379 = vsub.s32 %v1376, %v1378
    %v1380 = vrot.slane %v1373, %v1379
    %v1381 = vcombine.low %v1372, %v1380
    %v1382 = vcombine.high %v1372, %v1380
    %v1384 = vunpack.c.l.s4 1934713408
    %v1385 = vunpack.c.0.s8 %v1384
    %v1386 = vlaneseq
    %v1387 = vshrl.u32 %v1386, 7
    %v1388 = vsub.s32 %v1385, %v1387
    %v1389 = vrot.slane %v1381, %v1388
    %v1391 = vunpack.c.l.s4 1934713408
    %v1392 = vunpack.c.0.s8 %v1391
    %v1393 = vlaneseq
    %v1394 = vshrl.u32 %v1393, 7
    %v1395 = vsub.s32 %v1392, %v1394
    %v1396 = vrot.slane %v1382, %v1395
    %v1397 = vcombine.high %v1389, 0.0
    %v1398 = vcombine.high %v1396, 0.0
    %v1399 = vcombine.low %v382, %v478
    %v1401 = vunpack.c.l.s4 1983009808
    %v1402 = vunpack.c.0.s8 %v1401
    %v1403 = vlaneseq
    %v1404 = vshrl.u32 %v1403, 7
    %v1405 = vsub.s32 %v1402, %v1404
    %v1406 = vrot.slane %v1399, %v1405
    %v1407 = vcombine.low %v430, %v526
    %v1409 = vunpack.c.l.s4 1983009808
    %v1410 = vunpack.c.0.s8 %v1409
    %v1411 = vlaneseq
    %v1412 = vshrl.u32 %v1411, 7
    %v1413 = vsub.s32 %v1410, %v1412
    %v1414 = vrot.slane %v1407, %v1413
    %v1415 = vcombine.low %v1406, %v1414
    %v1416 = vcombine.high %v1406, %v1414
    %v1418 = vunpack.c.l.s4 1934713408
    %v1419 = vunpack.c.0.s8 %v1418
    %v1420 = vlaneseq
    %v1421 = vshrl.u32 %v1420, 7
    %v1422 = vsub.s32 %v1419, %v1421
    %v1423 = vrot.slane %v1415, %v1422
    %v1425 = vunpack.c.l.s4 1934713408
    %v1426 = vunpack.c.0.s8 %v1425
    %v1427 = vlaneseq
    %v1428 = vshrl.u32 %v1427, 7
    %v1429 = vsub.s32 %v1426, %v1428
    %v1430 = vrot.slane %v1416, %v1429
    %v1431 = vcombine.high %v1423, 0.0
    %v1432 = vcombine.high %v1430, 0.0
    %v1433 = vcombine.low %v194, %v288
    %v1435 = vunpack.c.l.s4 1983009808
    %v1436 = vunpack.c.0.s8 %v1435
    %v1437 = vlaneseq
    %v1438 = vshrl.u32 %v1437, 7
    %v1439 = vsub.s32 %v1436, %v1438
    %v1440 = vrot.slane %v1433, %v1439
    %v1441 = vcombine.low %v240, %v336
    %v1443 = vunpack.c.l.s4 1983009808
    %v1444 = vunpack.c.0.s8 %v1443
    %v1445 = vlaneseq
    %v1446 = vshrl.u32 %v1445, 7
    %v1447 = vsub.s32 %v1444, %v1446
    %v1448 = vrot.slane %v1441, %v1447
    %v1449 = vcombine.low %v1440, %v1448
    %v1450 = vcombine.high %v1440, %v1448
    %v1452 = vunpack.c.l.s4 1934713408
    %v1453 = vunpack.c.0.s8 %v1452
    %v1454 = vlaneseq
    %v1455 = vshrl.u32 %v1454, 7
    %v1456 = vsub.s32 %v1453, %v1455
    %v1457 = vrot.slane %v1449, %v1456
    %v1459 = vunpack.c.l.s4 1934713408
    %v1460 = vunpack.c.0.s8 %v1459
    %v1461 = vlaneseq
    %v1462 = vshrl.u32 %v1461, 7
    %v1463 = vsub.s32 %v1460, %v1462
    %v1464 = vrot.slane %v1450, %v1463
    %v1465 = vcombine.high %v1457, 0.0
    %v1466 = vcombine.high %v1464, 0.0
    %v1467 = vcombine.low %v384, %v480
    %v1469 = vunpack.c.l.s4 1983009808
    %v1470 = vunpack.c.0.s8 %v1469
    %v1471 = vlaneseq
    %v1472 = vshrl.u32 %v1471, 7
    %v1473 = vsub.s32 %v1470, %v1472
    %v1474 = vrot.slane %v1467, %v1473
    %v1475 = vcombine.low %v432, %v528
    %v1477 = vunpack.c.l.s4 1983009808
    %v1478 = vunpack.c.0.s8 %v1477
    %v1479 = vlaneseq
    %v1480 = vshrl.u32 %v1479, 7
    %v1481 = vsub.s32 %v1478, %v1480
    %v1482 = vrot.slane %v1475, %v1481
    %v1483 = vcombine.low %v1474, %v1482
    %v1484 = vcombine.high %v1474, %v1482
    %v1486 = vunpack.c.l.s4 1934713408
    %v1487 = vunpack.c.0.s8 %v1486
    %v1488 = vlaneseq
    %v1489 = vshrl.u32 %v1488, 7
    %v1490 = vsub.s32 %v1487, %v1489
    %v1491 = vrot.slane %v1483, %v1490
    %v1493 = vunpack.c.l.s4 1934713408
    %v1494 = vunpack.c.0.s8 %v1493
    %v1495 = vlaneseq
    %v1496 = vshrl.u32 %v1495, 7
    %v1497 = vsub.s32 %v1494, %v1496
    %v1498 = vrot.slane %v1484, %v1497
    %v1499 = vcombine.high %v1491, 0.0
    %v1500 = vcombine.high %v1498, 0.0
    %v1501 = vcombine.low %v162, %v290
    %v1503 = vunpack.c.l.s4 1983009808
    %v1504 = vunpack.c.0.s8 %v1503
    %v1505 = vlaneseq
    %v1506 = vshrl.u32 %v1505, 7
    %v1507 = vsub.s32 %v1504, %v1506
    %v1508 = vrot.slane %v1501, %v1507
    %v1509 = vcombine.low %v242, %v338
    %v1511 = vunpack.c.l.s4 1983009808
    %v1512 = vunpack.c.0.s8 %v1511
    %v1513 = vlaneseq
    %v1514 = vshrl.u32 %v1513, 7
    %v1515 = vsub.s32 %v1512, %v1514
    %v1516 = vrot.slane %v1509, %v1515
    %v1517 = vcombine.low %v1508, %v1516
    %v1518 = vcombine.high %v1508, %v1516
    %v1520 = vunpack.c.l.s4 1934713408
    %v1521 = vunpack.c.0.s8 %v1520
    %v1522 = vlaneseq
    %v1523 = vshrl.u32 %v1522, 7
    %v1524 = vsub.s32 %v1521, %v1523
    %v1525 = vrot.slane %v1517, %v1524
    %v1527 = vunpack.c.l.s4 1934713408
    %v1528 = vunpack.c.0.s8 %v1527
    %v1529 = vlaneseq
    %v1530 = vshrl.u32 %v1529, 7
    %v1531 = vsub.s32 %v1528, %v1530
    %v1532 = vrot.slane %v1518, %v1531
    %v1533 = vcombine.high %v1525, 0.0
    %v1534 = vcombine.high %v1532, 0.0
    %v1535 = vcombine.low %v386, %v482
    %v1537 = vunpack.c.l.s4 1983009808
    %v1538 = vunpack.c.0.s8 %v1537
    %v1539 = vlaneseq
    %v1540 = vshrl.u32 %v1539, 7
    %v1541 = vsub.s32 %v1538, %v1540
    %v1542 = vrot.slane %v1535, %v1541
    %v1543 = vcombine.low %v434, %v530
    %v1545 = vunpack.c.l.s4 1983009808
    %v1546 = vunpack.c.0.s8 %v1545
    %v1547 = vlaneseq
    %v1548 = vshrl.u32 %v1547, 7
    %v1549 = vsub.s32 %v1546, %v1548
    %v1550 = vrot.slane %v1543, %v1549
    %v1551 = vcombine.low %v1542, %v1550
    %v1552 = vcombine.high %v1542, %v1550
    %v1554 = vunpack.c.l.s4 1934713408
    %v1555 = vunpack.c.0.s8 %v1554
    %v1556 = vlaneseq
    %v1557 = vshrl.u32 %v1556, 7
    %v1558 = vsub.s32 %v1555, %v1557
    %v1559 = vrot.slane %v1551, %v1558
    %v1561 = vunpack.c.l.s4 1934713408
    %v1562 = vunpack.c.0.s8 %v1561
    %v1563 = vlaneseq
    %v1564 = vshrl.u32 %v1563, 7
    %v1565 = vsub.s32 %v1562, %v1564
    %v1566 = vrot.slane %v1552, %v1565
    %v1567 = vcombine.high %v1559, 0.0
    %v1568 = vcombine.high %v1566, 0.0
    %v1569 = vcombine.low %v196, %v292
    %v1571 = vunpack.c.l.s4 1983009808
    %v1572 = vunpack.c.0.s8 %v1571
    %v1573 = vlaneseq
    %v1574 = vshrl.u32 %v1573, 7
    %v1575 = vsub.s32 %v1572, %v1574
    %v1576 = vrot.slane %v1569, %v1575
    %v1577 = vcombine.low %v244, %v340
    %v1579 = vunpack.c.l.s4 1983009808
    %v1580 = vunpack.c.0.s8 %v1579
    %v1581 = vlaneseq
    %v1582 = vshrl.u32 %v1581, 7
    %v1583 = vsub.s32 %v1580, %v1582
    %v1584 = vrot.slane %v1577, %v1583
    %v1585 = vcombine.low %v1576, %v1584
    %v1586 = vcombine.high %v1576, %v1584
    %v1588 = vunpack.c.l.s4 1934713408
    %v1589 = vunpack.c.0.s8 %v1588
    %v1590 = vlaneseq
    %v1591 = vshrl.u32 %v1590, 7
    %v1592 = vsub.s32 %v1589, %v1591
    %v1593 = vrot.slane %v1585, %v1592
    %v1595 = vunpack.c.l.s4 1934713408
    %v1596 = vunpack.c.0.s8 %v1595
    %v1597 = vlaneseq
    %v1598 = vshrl.u32 %v1597, 7
    %v1599 = vsub.s32 %v1596, %v1598
    %v1600 = vrot.slane %v1586, %v1599
    %v1601 = vcombine.high %v1593, 0.0
    %v1602 = vcombine.high %v1600, 0.0
    %v1603 = vcombine.low %v388, %v484
    %v1605 = vunpack.c.l.s4 1983009808
    %v1606 = vunpack.c.0.s8 %v1605
    %v1607 = vlaneseq
    %v1608 = vshrl.u32 %v1607, 7
    %v1609 = vsub.s32 %v1606, %v1608
    %v1610 = vrot.slane %v1603, %v1609
    %v1611 = vcombine.low %v436, %v532
    %v1613 = vunpack.c.l.s4 1983009808
    %v1614 = vunpack.c.0.s8 %v1613
    %v1615 = vlaneseq
    %v1616 = vshrl.u32 %v1615, 7
    %v1617 = vsub.s32 %v1614, %v1616
    %v1618 = vrot.slane %v1611, %v1617
    %v1619 = vcombine.low %v1610, %v1618
    %v1620 = vcombine.high %v1610, %v1618
    %v1622 = vunpack.c.l.s4 1934713408
    %v1623 = vunpack.c.0.s8 %v1622
    %v1624 = vlaneseq
    %v1625 = vshrl.u32 %v1624, 7
    %v1626 = vsub.s32 %v1623, %v1625
    %v1627 = vrot.slane %v1619, %v1626
    %v1629 = vunpack.c.l.s4 1934713408
    %v1630 = vunpack.c.0.s8 %v1629
    %v1631 = vlaneseq
    %v1632 = vshrl.u32 %v1631, 7
    %v1633 = vsub.s32 %v1630, %v1632
    %v1634 = vrot.slane %v1620, %v1633
    %v1635 = vcombine.high %v1627, 0.0
    %v1636 = vcombine.high %v1634, 0.0
    %v1766 = vunpack.c.l.s4 1983009808
    %v1767 = vunpack.c.0.s8 %v1766
    %v1768 = vlaneseq
    %v1769 = vshrl.u32 %v1768, 7
    %v1770 = vsub.s32 %v1767, %v1769
    %v1771 = vrot.slane %v573, %v1770
    %v1772 = vcombine.high %v1771, %v1771
    %v1774 = vunpack.c.l.s4 1983009808
    %v1775 = vunpack.c.0.s8 %v1774
    %v1776 = vlaneseq
    %v1777 = vshrl.u32 %v1776, 7
    %v1778 = vsub.s32 %v1775, %v1777
    %v1779 = vrot.slane %v607, %v1778
    %v1780 = vcombine.high %v1779, %v1779
    %v1782 = vunpack.c.l.s4 1983009808
    %v1783 = vunpack.c.0.s8 %v1782
    %v1784 = vlaneseq
    %v1785 = vshrl.u32 %v1784, 7
    %v1786 = vsub.s32 %v1783, %v1785
    %v1787 = vrot.slane %v581, %v1786
    %v1788 = vcombine.high %v1787, %v1787
    %v1790 = vunpack.c.l.s4 1983009808
    %v1791 = vunpack.c.0.s8 %v1790
    %v1792 = vlaneseq
    %v1793 = vshrl.u32 %v1792, 7
    %v1794 = vsub.s32 %v1791, %v1793
    %v1795 = vrot.slane %v615, %v1794
    %v1796 = vcombine.high %v1795, %v1795
    %v1798 = vunpack.c.l.s4 1983009808
    %v1799 = vunpack.c.0.s8 %v1798
    %v1800 = vlaneseq
    %v1801 = vshrl.u32 %v1800, 7
    %v1802 = vsub.s32 %v1799, %v1801
    %v1803 = vrot.slane %v580, %v1802
    %v1804 = vcombine.high %v1803, %v1803
    %v1806 = vunpack.c.l.s4 1983009808
    %v1807 = vunpack.c.0.s8 %v1806
    %v1808 = vlaneseq
    %v1809 = vshrl.u32 %v1808, 7
    %v1810 = vsub.s32 %v1807, %v1809
    %v1811 = vrot.slane %v614, %v1810
    %v1812 = vcombine.high %v1811, %v1811
    %v1814 = vunpack.c.l.s4 1983009808
    %v1815 = vunpack.c.0.s8 %v1814
    %v1816 = vlaneseq
    %v1817 = vshrl.u32 %v1816, 7
    %v1818 = vsub.s32 %v1815, %v1817
    %v1819 = vrot.slane %v582, %v1818
    %v1820 = vcombine.high %v1819, %v1819
    %v1822 = vunpack.c.l.s4 1983009808
    %v1823 = vunpack.c.0.s8 %v1822
    %v1824 = vlaneseq
    %v1825 = vshrl.u32 %v1824, 7
    %v1826 = vsub.s32 %v1823, %v1825
    %v1827 = vrot.slane %v616, %v1826
    %v1828 = vcombine.high %v1827, %v1827
    %v1830 = vunpack.c.l.s4 1983009808
    %v1831 = vunpack.c.0.s8 %v1830
    %v1832 = vlaneseq
    %v1833 = vshrl.u32 %v1832, 7
    %v1834 = vsub.s32 %v1831, %v1833
    %v1835 = vrot.slane %v641, %v1834
    %v1836 = vcombine.high %v1835, %v1835
    %v1838 = vunpack.c.l.s4 1983009808
    %v1839 = vunpack.c.0.s8 %v1838
    %v1840 = vlaneseq
    %v1841 = vshrl.u32 %v1840, 7
    %v1842 = vsub.s32 %v1839, %v1841
    %v1843 = vrot.slane %v675, %v1842
    %v1844 = vcombine.high %v1843, %v1843
    %v1846 = vunpack.c.l.s4 1983009808
    %v1847 = vunpack.c.0.s8 %v1846
    %v1848 = vlaneseq
    %v1849 = vshrl.u32 %v1848, 7
    %v1850 = vsub.s32 %v1847, %v1849
    %v1851 = vrot.slane %v649, %v1850
    %v1852 = vcombine.high %v1851, %v1851
    %v1854 = vunpack.c.l.s4 1983009808
    %v1855 = vunpack.c.0.s8 %v1854
    %v1856 = vlaneseq
    %v1857 = vshrl.u32 %v1856, 7
    %v1858 = vsub.s32 %v1855, %v1857
    %v1859 = vrot.slane %v683, %v1858
    %v1860 = vcombine.high %v1859, %v1859
    %v1862 = vunpack.c.l.s4 1983009808
    %v1863 = vunpack.c.0.s8 %v1862
    %v1864 = vlaneseq
    %v1865 = vshrl.u32 %v1864, 7
    %v1866 = vsub.s32 %v1863, %v1865
    %v1867 = vrot.slane %v648, %v1866
    %v1868 = vcombine.high %v1867, %v1867
    %v1870 = vunpack.c.l.s4 1983009808
    %v1871 = vunpack.c.0.s8 %v1870
    %v1872 = vlaneseq
    %v1873 = vshrl.u32 %v1872, 7
    %v1874 = vsub.s32 %v1871, %v1873
    %v1875 = vrot.slane %v682, %v1874
    %v1876 = vcombine.high %v1875, %v1875
    %v1878 = vunpack.c.l.s4 1983009808
    %v1879 = vunpack.c.0.s8 %v1878
    %v1880 = vlaneseq
    %v1881 = vshrl.u32 %v1880, 7
    %v1882 = vsub.s32 %v1879, %v1881
    %v1883 = vrot.slane %v650, %v1882
    %v1884 = vcombine.high %v1883, %v1883
    %v1886 = vunpack.c.l.s4 1983009808
    %v1887 = vunpack.c.0.s8 %v1886
    %v1888 = vlaneseq
    %v1889 = vshrl.u32 %v1888, 7
    %v1890 = vsub.s32 %v1887, %v1889
    %v1891 = vrot.slane %v684, %v1890
    %v1892 = vcombine.high %v1891, %v1891
    %v1894 = vunpack.c.l.s4 1983009808
    %v1895 = vunpack.c.0.s8 %v1894
    %v1896 = vlaneseq
    %v1897 = vshrl.u32 %v1896, 7
    %v1898 = vsub.s32 %v1895, %v1897
    %v1899 = vrot.slane %v709, %v1898
    %v1900 = vcombine.high %v1899, %v1899
    %v1902 = vunpack.c.l.s4 1983009808
    %v1903 = vunpack.c.0.s8 %v1902
    %v1904 = vlaneseq
    %v1905 = vshrl.u32 %v1904, 7
    %v1906 = vsub.s32 %v1903, %v1905
    %v1907 = vrot.slane %v743, %v1906
    %v1908 = vcombine.high %v1907, %v1907
    %v1910 = vunpack.c.l.s4 1983009808
    %v1911 = vunpack.c.0.s8 %v1910
    %v1912 = vlaneseq
    %v1913 = vshrl.u32 %v1912, 7
    %v1914 = vsub.s32 %v1911, %v1913
    %v1915 = vrot.slane %v717, %v1914
    %v1916 = vcombine.high %v1915, %v1915
    %v1918 = vunpack.c.l.s4 1983009808
    %v1919 = vunpack.c.0.s8 %v1918
    %v1920 = vlaneseq
    %v1921 = vshrl.u32 %v1920, 7
    %v1922 = vsub.s32 %v1919, %v1921
    %v1923 = vrot.slane %v751, %v1922
    %v1924 = vcombine.high %v1923, %v1923
    %v1926 = vunpack.c.l.s4 1983009808
    %v1927 = vunpack.c.0.s8 %v1926
    %v1928 = vlaneseq
    %v1929 = vshrl.u32 %v1928, 7
    %v1930 = vsub.s32 %v1927, %v1929
    %v1931 = vrot.slane %v716, %v1930
    %v1932 = vcombine.high %v1931, %v1931
    %v1934 = vunpack.c.l.s4 1983009808
    %v1935 = vunpack.c.0.s8 %v1934
    %v1936 = vlaneseq
    %v1937 = vshrl.u32 %v1936, 7
    %v1938 = vsub.s32 %v1935, %v1937
    %v1939 = vrot.slane %v750, %v1938
    %v1940 = vcombine.high %v1939, %v1939
    %v1942 = vunpack.c.l.s4 1983009808
    %v1943 = vunpack.c.0.s8 %v1942
    %v1944 = vlaneseq
    %v1945 = vshrl.u32 %v1944, 7
    %v1946 = vsub.s32 %v1943, %v1945
    %v1947 = vrot.slane %v718, %v1946
    %v1948 = vcombine.high %v1947, %v1947
    %v1950 = vunpack.c.l.s4 1983009808
    %v1951 = vunpack.c.0.s8 %v1950
    %v1952 = vlaneseq
    %v1953 = vshrl.u32 %v1952, 7
    %v1954 = vsub.s32 %v1951, %v1953
    %v1955 = vrot.slane %v752, %v1954
    %v1956 = vcombine.high %v1955, %v1955
    %v1958 = vunpack.c.l.s4 1983009808
    %v1959 = vunpack.c.0.s8 %v1958
    %v1960 = vlaneseq
    %v1961 = vshrl.u32 %v1960, 7
    %v1962 = vsub.s32 %v1959, %v1961
    %v1963 = vrot.slane %v777, %v1962
    %v1964 = vcombine.high %v1963, %v1963
    %v1966 = vunpack.c.l.s4 1983009808
    %v1967 = vunpack.c.0.s8 %v1966
    %v1968 = vlaneseq
    %v1969 = vshrl.u32 %v1968, 7
    %v1970 = vsub.s32 %v1967, %v1969
    %v1971 = vrot.slane %v811, %v1970
    %v1972 = vcombine.high %v1971, %v1971
    %v1974 = vunpack.c.l.s4 1983009808
    %v1975 = vunpack.c.0.s8 %v1974
    %v1976 = vlaneseq
    %v1977 = vshrl.u32 %v1976, 7
    %v1978 = vsub.s32 %v1975, %v1977
    %v1979 = vrot.slane %v785, %v1978
    %v1980 = vcombine.high %v1979, %v1979
    %v1982 = vunpack.c.l.s4 1983009808
    %v1983 = vunpack.c.0.s8 %v1982
    %v1984 = vlaneseq
    %v1985 = vshrl.u32 %v1984, 7
    %v1986 = vsub.s32 %v1983, %v1985
    %v1987 = vrot.slane %v819, %v1986
    %v1988 = vcombine.high %v1987, %v1987
    %v1990 = vunpack.c.l.s4 1983009808
    %v1991 = vunpack.c.0.s8 %v1990
    %v1992 = vlaneseq
    %v1993 = vshrl.u32 %v1992, 7
    %v1994 = vsub.s32 %v1991, %v1993
    %v1995 = vrot.slane %v784, %v1994
    %v1996 = vcombine.high %v1995, %v1995
    %v1998 = vunpack.c.l.s4 1983009808
    %v1999 = vunpack.c.0.s8 %v1998
    %v2000 = vlaneseq
    %v2001 = vshrl.u32 %v2000, 7
    %v2002 = vsub.s32 %v1999, %v2001
    %v2003 = vrot.slane %v818, %v2002
    %v2004 = vcombine.high %v2003, %v2003
    %v2006 = vunpack.c.l.s4 1983009808
    %v2007 = vunpack.c.0.s8 %v2006
    %v2008 = vlaneseq
    %v2009 = vshrl.u32 %v2008, 7
    %v2010 = vsub.s32 %v2007, %v2009
    %v2011 = vrot.slane %v786, %v2010
    %v2012 = vcombine.high %v2011, %v2011
    %v2014 = vunpack.c.l.s4 1983009808
    %v2015 = vunpack.c.0.s8 %v2014
    %v2016 = vlaneseq
    %v2017 = vshrl.u32 %v2016, 7
    %v2018 = vsub.s32 %v2015, %v2017
    %v2019 = vrot.slane %v820, %v2018
    %v2020 = vcombine.high %v2019, %v2019
    %v2022 = vunpack.c.l.s4 1983009808
    %v2023 = vunpack.c.0.s8 %v2022
    %v2024 = vlaneseq
    %v2025 = vshrl.u32 %v2024, 7
    %v2026 = vsub.s32 %v2023, %v2025
    %v2027 = vrot.slane %v845, %v2026
    %v2028 = vcombine.high %v2027, %v2027
    %v2030 = vunpack.c.l.s4 1983009808
    %v2031 = vunpack.c.0.s8 %v2030
    %v2032 = vlaneseq
    %v2033 = vshrl.u32 %v2032, 7
    %v2034 = vsub.s32 %v2031, %v2033
    %v2035 = vrot.slane %v879, %v2034
    %v2036 = vcombine.high %v2035, %v2035
    %v2038 = vunpack.c.l.s4 1983009808
    %v2039 = vunpack.c.0.s8 %v2038
    %v2040 = vlaneseq
    %v2041 = vshrl.u32 %v2040, 7
    %v2042 = vsub.s32 %v2039, %v2041
    %v2043 = vrot.slane %v853, %v2042
    %v2044 = vcombine.high %v2043, %v2043
    %v2046 = vunpack.c.l.s4 1983009808
    %v2047 = vunpack.c.0.s8 %v2046
    %v2048 = vlaneseq
    %v2049 = vshrl.u32 %v2048, 7
    %v2050 = vsub.s32 %v2047, %v2049
    %v2051 = vrot.slane %v887, %v2050
    %v2052 = vcombine.high %v2051, %v2051
    %v2054 = vunpack.c.l.s4 1983009808
    %v2055 = vunpack.c.0.s8 %v2054
    %v2056 = vlaneseq
    %v2057 = vshrl.u32 %v2056, 7
    %v2058 = vsub.s32 %v2055, %v2057
    %v2059 = vrot.slane %v852, %v2058
    %v2060 = vcombine.high %v2059, %v2059
    %v2062 = vunpack.c.l.s4 1983009808
    %v2063 = vunpack.c.0.s8 %v2062
    %v2064 = vlaneseq
    %v2065 = vshrl.u32 %v2064, 7
    %v2066 = vsub.s32 %v2063, %v2065
    %v2067 = vrot.slane %v886, %v2066
    %v2068 = vcombine.high %v2067, %v2067
    %v2070 = vunpack.c.l.s4 1983009808
    %v2071 = vunpack.c.0.s8 %v2070
    %v2072 = vlaneseq
    %v2073 = vshrl.u32 %v2072, 7
    %v2074 = vsub.s32 %v2071, %v2073
    %v2075 = vrot.slane %v854, %v2074
    %v2076 = vcombine.high %v2075, %v2075
    %v2078 = vunpack.c.l.s4 1983009808
    %v2079 = vunpack.c.0.s8 %v2078
    %v2080 = vlaneseq
    %v2081 = vshrl.u32 %v2080, 7
    %v2082 = vsub.s32 %v2079, %v2081
    %v2083 = vrot.slane %v888, %v2082
    %v2084 = vcombine.high %v2083, %v2083
    %v2086 = vunpack.c.l.s4 1983009808
    %v2087 = vunpack.c.0.s8 %v2086
    %v2088 = vlaneseq
    %v2089 = vshrl.u32 %v2088, 7
    %v2090 = vsub.s32 %v2087, %v2089
    %v2091 = vrot.slane %v913, %v2090
    %v2092 = vcombine.high %v2091, %v2091
    %v2094 = vunpack.c.l.s4 1983009808
    %v2095 = vunpack.c.0.s8 %v2094
    %v2096 = vlaneseq
    %v2097 = vshrl.u32 %v2096, 7
    %v2098 = vsub.s32 %v2095, %v2097
    %v2099 = vrot.slane %v947, %v2098
    %v2100 = vcombine.high %v2099, %v2099
    %v2102 = vunpack.c.l.s4 1983009808
    %v2103 = vunpack.c.0.s8 %v2102
    %v2104 = vlaneseq
    %v2105 = vshrl.u32 %v2104, 7
    %v2106 = vsub.s32 %v2103, %v2105
    %v2107 = vrot.slane %v921, %v2106
    %v2108 = vcombine.high %v2107, %v2107
    %v2110 = vunpack.c.l.s4 1983009808
    %v2111 = vunpack.c.0.s8 %v2110
    %v2112 = vlaneseq
    %v2113 = vshrl.u32 %v2112, 7
    %v2114 = vsub.s32 %v2111, %v2113
    %v2115 = vrot.slane %v955, %v2114
    %v2116 = vcombine.high %v2115, %v2115
    %v2118 = vunpack.c.l.s4 1983009808
    %v2119 = vunpack.c.0.s8 %v2118
    %v2120 = vlaneseq
    %v2121 = vshrl.u32 %v2120, 7
    %v2122 = vsub.s32 %v2119, %v2121
    %v2123 = vrot.slane %v920, %v2122
    %v2124 = vcombine.high %v2123, %v2123
    %v2126 = vunpack.c.l.s4 1983009808
    %v2127 = vunpack.c.0.s8 %v2126
    %v2128 = vlaneseq
    %v2129 = vshrl.u32 %v2128, 7
    %v2130 = vsub.s32 %v2127, %v2129
    %v2131 = vrot.slane %v954, %v2130
    %v2132 = vcombine.high %v2131, %v2131
    %v2134 = vunpack.c.l.s4 1983009808
    %v2135 = vunpack.c.0.s8 %v2134
    %v2136 = vlaneseq
    %v2137 = vshrl.u32 %v2136, 7
    %v2138 = vsub.s32 %v2135, %v2137
    %v2139 = vrot.slane %v922, %v2138
    %v2140 = vcombine.high %v2139, %v2139
    %v2142 = vunpack.c.l.s4 1983009808
    %v2143 = vunpack.c.0.s8 %v2142
    %v2144 = vlaneseq
    %v2145 = vshrl.u32 %v2144, 7
    %v2146 = vsub.s32 %v2143, %v2145
    %v2147 = vrot.slane %v956, %v2146
    %v2148 = vcombine.high %v2147, %v2147
    %v2150 = vunpack.c.l.s4 1983009808
    %v2151 = vunpack.c.0.s8 %v2150
    %v2152 = vlaneseq
    %v2153 = vshrl.u32 %v2152, 7
    %v2154 = vsub.s32 %v2151, %v2153
    %v2155 = vrot.slane %v981, %v2154
    %v2156 = vcombine.high %v2155, %v2155
    %v2158 = vunpack.c.l.s4 1983009808
    %v2159 = vunpack.c.0.s8 %v2158
    %v2160 = vlaneseq
    %v2161 = vshrl.u32 %v2160, 7
    %v2162 = vsub.s32 %v2159, %v2161
    %v2163 = vrot.slane %v1015, %v2162
    %v2164 = vcombine.high %v2163, %v2163
    %v2166 = vunpack.c.l.s4 1983009808
    %v2167 = vunpack.c.0.s8 %v2166
    %v2168 = vlaneseq
    %v2169 = vshrl.u32 %v2168, 7
    %v2170 = vsub.s32 %v2167, %v2169
    %v2171 = vrot.slane %v989, %v2170
    %v2172 = vcombine.high %v2171, %v2171
    %v2174 = vunpack.c.l.s4 1983009808
    %v2175 = vunpack.c.0.s8 %v2174
    %v2176 = vlaneseq
    %v2177 = vshrl.u32 %v2176, 7
    %v2178 = vsub.s32 %v2175, %v2177
    %v2179 = vrot.slane %v1023, %v2178
    %v2180 = vcombine.high %v2179, %v2179
    %v2182 = vunpack.c.l.s4 1983009808
    %v2183 = vunpack.c.0.s8 %v2182
    %v2184 = vlaneseq
    %v2185 = vshrl.u32 %v2184, 7
    %v2186 = vsub.s32 %v2183, %v2185
    %v2187 = vrot.slane %v988, %v2186
    %v2188 = vcombine.high %v2187, %v2187
    %v2190 = vunpack.c.l.s4 1983009808
    %v2191 = vunpack.c.0.s8 %v2190
    %v2192 = vlaneseq
    %v2193 = vshrl.u32 %v2192, 7
    %v2194 = vsub.s32 %v2191, %v2193
    %v2195 = vrot.slane %v1022, %v2194
    %v2196 = vcombine.high %v2195, %v2195
    %v2198 = vunpack.c.l.s4 1983009808
    %v2199 = vunpack.c.0.s8 %v2198
    %v2200 = vlaneseq
    %v2201 = vshrl.u32 %v2200, 7
    %v2202 = vsub.s32 %v2199, %v2201
    %v2203 = vrot.slane %v990, %v2202
    %v2204 = vcombine.high %v2203, %v2203
    %v2206 = vunpack.c.l.s4 1983009808
    %v2207 = vunpack.c.0.s8 %v2206
    %v2208 = vlaneseq
    %v2209 = vshrl.u32 %v2208, 7
    %v2210 = vsub.s32 %v2207, %v2209
    %v2211 = vrot.slane %v1024, %v2210
    %v2212 = vcombine.high %v2211, %v2211
    %v2214 = vunpack.c.l.s4 1983009808
    %v2215 = vunpack.c.0.s8 %v2214
    %v2216 = vlaneseq
    %v2217 = vshrl.u32 %v2216, 7
    %v2218 = vsub.s32 %v2215, %v2217
    %v2219 = vrot.slane %v1049, %v2218
    %v2220 = vcombine.high %v2219, %v2219
    %v2222 = vunpack.c.l.s4 1983009808
    %v2223 = vunpack.c.0.s8 %v2222
    %v2224 = vlaneseq
    %v2225 = vshrl.u32 %v2224, 7
    %v2226 = vsub.s32 %v2223, %v2225
    %v2227 = vrot.slane %v1083, %v2226
    %v2228 = vcombine.high %v2227, %v2227
    %v2230 = vunpack.c.l.s4 1983009808
    %v2231 = vunpack.c.0.s8 %v2230
    %v2232 = vlaneseq
    %v2233 = vshrl.u32 %v2232, 7
    %v2234 = vsub.s32 %v2231, %v2233
    %v2235 = vrot.slane %v1057, %v2234
    %v2236 = vcombine.high %v2235, %v2235
    %v2238 = vunpack.c.l.s4 1983009808
    %v2239 = vunpack.c.0.s8 %v2238
    %v2240 = vlaneseq
    %v2241 = vshrl.u32 %v2240, 7
    %v2242 = vsub.s32 %v2239, %v2241
    %v2243 = vrot.slane %v1091, %v2242
    %v2244 = vcombine.high %v2243, %v2243
    %v2246 = vunpack.c.l.s4 1983009808
    %v2247 = vunpack.c.0.s8 %v2246
    %v2248 = vlaneseq
    %v2249 = vshrl.u32 %v2248, 7
    %v2250 = vsub.s32 %v2247, %v2249
    %v2251 = vrot.slane %v1056, %v2250
    %v2252 = vcombine.high %v2251, %v2251
    %v2254 = vunpack.c.l.s4 1983009808
    %v2255 = vunpack.c.0.s8 %v2254
    %v2256 = vlaneseq
    %v2257 = vshrl.u32 %v2256, 7
    %v2258 = vsub.s32 %v2255, %v2257
    %v2259 = vrot.slane %v1090, %v2258
    %v2260 = vcombine.high %v2259, %v2259
    %v2262 = vunpack.c.l.s4 1983009808
    %v2263 = vunpack.c.0.s8 %v2262
    %v2264 = vlaneseq
    %v2265 = vshrl.u32 %v2264, 7
    %v2266 = vsub.s32 %v2263, %v2265
    %v2267 = vrot.slane %v1058, %v2266
    %v2268 = vcombine.high %v2267, %v2267
    %v2270 = vunpack.c.l.s4 1983009808
    %v2271 = vunpack.c.0.s8 %v2270
    %v2272 = vlaneseq
    %v2273 = vshrl.u32 %v2272, 7
    %v2274 = vsub.s32 %v2271, %v2273
    %v2275 = vrot.slane %v1092, %v2274
    %v2276 = vcombine.high %v2275, %v2275
    %v2278 = vunpack.c.l.s4 1983009808
    %v2279 = vunpack.c.0.s8 %v2278
    %v2280 = vlaneseq
    %v2281 = vshrl.u32 %v2280, 7
    %v2282 = vsub.s32 %v2279, %v2281
    %v2283 = vrot.slane %v1117, %v2282
    %v2284 = vcombine.high %v2283, %v2283
    %v2286 = vunpack.c.l.s4 1983009808
    %v2287 = vunpack.c.0.s8 %v2286
    %v2288 = vlaneseq
    %v2289 = vshrl.u32 %v2288, 7
    %v2290 = vsub.s32 %v2287, %v2289
    %v2291 = vrot.slane %v1151, %v2290
    %v2292 = vcombine.high %v2291, %v2291
    %v2294 = vunpack.c.l.s4 1983009808
    %v2295 = vunpack.c.0.s8 %v2294
    %v2296 = vlaneseq
    %v2297 = vshrl.u32 %v2296, 7
    %v2298 = vsub.s32 %v2295, %v2297
    %v2299 = vrot.slane %v1125, %v2298
    %v2300 = vcombine.high %v2299, %v2299
    %v2302 = vunpack.c.l.s4 1983009808
    %v2303 = vunpack.c.0.s8 %v2302
    %v2304 = vlaneseq
    %v2305 = vshrl.u32 %v2304, 7
    %v2306 = vsub.s32 %v2303, %v2305
    %v2307 = vrot.slane %v1159, %v2306
    %v2308 = vcombine.high %v2307, %v2307
    %v2310 = vunpack.c.l.s4 1983009808
    %v2311 = vunpack.c.0.s8 %v2310
    %v2312 = vlaneseq
    %v2313 = vshrl.u32 %v2312, 7
    %v2314 = vsub.s32 %v2311, %v2313
    %v2315 = vrot.slane %v1124, %v2314
    %v2316 = vcombine.high %v2315, %v2315
    %v2318 = vunpack.c.l.s4 1983009808
    %v2319 = vunpack.c.0.s8 %v2318
    %v2320 = vlaneseq
    %v2321 = vshrl.u32 %v2320, 7
    %v2322 = vsub.s32 %v2319, %v2321
    %v2323 = vrot.slane %v1158, %v2322
    %v2324 = vcombine.high %v2323, %v2323
    %v2326 = vunpack.c.l.s4 1983009808
    %v2327 = vunpack.c.0.s8 %v2326
    %v2328 = vlaneseq
    %v2329 = vshrl.u32 %v2328, 7
    %v2330 = vsub.s32 %v2327, %v2329
    %v2331 = vrot.slane %v1126, %v2330
    %v2332 = vcombine.high %v2331, %v2331
    %v2334 = vunpack.c.l.s4 1983009808
    %v2335 = vunpack.c.0.s8 %v2334
    %v2336 = vlaneseq
    %v2337 = vshrl.u32 %v2336, 7
    %v2338 = vsub.s32 %v2335, %v2337
    %v2339 = vrot.slane %v1160, %v2338
    %v2340 = vcombine.high %v2339, %v2339
    %v2342 = vunpack.c.l.s4 1983009808
    %v2343 = vunpack.c.0.s8 %v2342
    %v2344 = vlaneseq
    %v2345 = vshrl.u32 %v2344, 7
    %v2346 = vsub.s32 %v2343, %v2345
    %v2347 = vrot.slane %v1185, %v2346
    %v2348 = vcombine.high %v2347, %v2347
    %v2350 = vunpack.c.l.s4 1983009808
    %v2351 = vunpack.c.0.s8 %v2350
    %v2352 = vlaneseq
    %v2353 = vshrl.u32 %v2352, 7
    %v2354 = vsub.s32 %v2351, %v2353
    %v2355 = vrot.slane %v1219, %v2354
    %v2356 = vcombine.high %v2355, %v2355
    %v2358 = vunpack.c.l.s4 1983009808
    %v2359 = vunpack.c.0.s8 %v2358
    %v2360 = vlaneseq
    %v2361 = vshrl.u32 %v2360, 7
    %v2362 = vsub.s32 %v2359, %v2361
    %v2363 = vrot.slane %v1193, %v2362
    %v2364 = vcombine.high %v2363, %v2363
    %v2366 = vunpack.c.l.s4 1983009808
    %v2367 = vunpack.c.0.s8 %v2366
    %v2368 = vlaneseq
    %v2369 = vshrl.u32 %v2368, 7
    %v2370 = vsub.s32 %v2367, %v2369
    %v2371 = vrot.slane %v1227, %v2370
    %v2372 = vcombine.high %v2371, %v2371
    %v2374 = vunpack.c.l.s4 1983009808
    %v2375 = vunpack.c.0.s8 %v2374
    %v2376 = vlaneseq
    %v2377 = vshrl.u32 %v2376, 7
    %v2378 = vsub.s32 %v2375, %v2377
    %v2379 = vrot.slane %v1192, %v2378
    %v2380 = vcombine.high %v2379, %v2379
    %v2382 = vunpack.c.l.s4 1983009808
    %v2383 = vunpack.c.0.s8 %v2382
    %v2384 = vlaneseq
    %v2385 = vshrl.u32 %v2384, 7
    %v2386 = vsub.s32 %v2383, %v2385
    %v2387 = vrot.slane %v1226, %v2386
    %v2388 = vcombine.high %v2387, %v2387
    %v2390 = vunpack.c.l.s4 1983009808
    %v2391 = vunpack.c.0.s8 %v2390
    %v2392 = vlaneseq
    %v2393 = vshrl.u32 %v2392, 7
    %v2394 = vsub.s32 %v2391, %v2393
    %v2395 = vrot.slane %v1194, %v2394
    %v2396 = vcombine.high %v2395, %v2395
    %v2398 = vunpack.c.l.s4 1983009808
    %v2399 = vunpack.c.0.s8 %v2398
    %v2400 = vlaneseq
    %v2401 = vshrl.u32 %v2400, 7
    %v2402 = vsub.s32 %v2399, %v2401
    %v2403 = vrot.slane %v1228, %v2402
    %v2404 = vcombine.high %v2403, %v2403
    %v2406 = vunpack.c.l.s4 1983009808
    %v2407 = vunpack.c.0.s8 %v2406
    %v2408 = vlaneseq
    %v2409 = vshrl.u32 %v2408, 7
    %v2410 = vsub.s32 %v2407, %v2409
    %v2411 = vrot.slane %v1253, %v2410
    %v2412 = vcombine.high %v2411, %v2411
    %v2414 = vunpack.c.l.s4 1983009808
    %v2415 = vunpack.c.0.s8 %v2414
    %v2416 = vlaneseq
    %v2417 = vshrl.u32 %v2416, 7
    %v2418 = vsub.s32 %v2415, %v2417
    %v2419 = vrot.slane %v1287, %v2418
    %v2420 = vcombine.high %v2419, %v2419
    %v2422 = vunpack.c.l.s4 1983009808
    %v2423 = vunpack.c.0.s8 %v2422
    %v2424 = vlaneseq
    %v2425 = vshrl.u32 %v2424, 7
    %v2426 = vsub.s32 %v2423, %v2425
    %v2427 = vrot.slane %v1261, %v2426
    %v2428 = vcombine.high %v2427, %v2427
    %v2430 = vunpack.c.l.s4 1983009808
    %v2431 = vunpack.c.0.s8 %v2430
    %v2432 = vlaneseq
    %v2433 = vshrl.u32 %v2432, 7
    %v2434 = vsub.s32 %v2431, %v2433
    %v2435 = vrot.slane %v1295, %v2434
    %v2436 = vcombine.high %v2435, %v2435
    %v2438 = vunpack.c.l.s4 1983009808
    %v2439 = vunpack.c.0.s8 %v2438
    %v2440 = vlaneseq
    %v2441 = vshrl.u32 %v2440, 7
    %v2442 = vsub.s32 %v2439, %v2441
    %v2443 = vrot.slane %v1260, %v2442
    %v2444 = vcombine.high %v2443, %v2443
    %v2446 = vunpack.c.l.s4 1983009808
    %v2447 = vunpack.c.0.s8 %v2446
    %v2448 = vlaneseq
    %v2449 = vshrl.u32 %v2448, 7
    %v2450 = vsub.s32 %v2447, %v2449
    %v2451 = vrot.slane %v1294, %v2450
    %v2452 = vcombine.high %v2451, %v2451
    %v2454 = vunpack.c.l.s4 1983009808
    %v2455 = vunpack.c.0.s8 %v2454
    %v2456 = vlaneseq
    %v2457 = vshrl.u32 %v2456, 7
    %v2458 = vsub.s32 %v2455, %v2457
    %v2459 = vrot.slane %v1262, %v2458
    %v2460 = vcombine.high %v2459, %v2459
    %v2462 = vunpack.c.l.s4 1983009808
    %v2463 = vunpack.c.0.s8 %v2462
    %v2464 = vlaneseq
    %v2465 = vshrl.u32 %v2464, 7
    %v2466 = vsub.s32 %v2463, %v2465
    %v2467 = vrot.slane %v1296, %v2466
    %v2468 = vcombine.high %v2467, %v2467
    %v2470 = vunpack.c.l.s4 1983009808
    %v2471 = vunpack.c.0.s8 %v2470
    %v2472 = vlaneseq
    %v2473 = vshrl.u32 %v2472, 7
    %v2474 = vsub.s32 %v2471, %v2473
    %v2475 = vrot.slane %v1321, %v2474
    %v2476 = vcombine.high %v2475, %v2475
    %v2478 = vunpack.c.l.s4 1983009808
    %v2479 = vunpack.c.0.s8 %v2478
    %v2480 = vlaneseq
    %v2481 = vshrl.u32 %v2480, 7
    %v2482 = vsub.s32 %v2479, %v2481
    %v2483 = vrot.slane %v1355, %v2482
    %v2484 = vcombine.high %v2483, %v2483
    %v2486 = vunpack.c.l.s4 1983009808
    %v2487 = vunpack.c.0.s8 %v2486
    %v2488 = vlaneseq
    %v2489 = vshrl.u32 %v2488, 7
    %v2490 = vsub.s32 %v2487, %v2489
    %v2491 = vrot.slane %v1329, %v2490
    %v2492 = vcombine.high %v2491, %v2491
    %v2494 = vunpack.c.l.s4 1983009808
    %v2495 = vunpack.c.0.s8 %v2494
    %v2496 = vlaneseq
    %v2497 = vshrl.u32 %v2496, 7
    %v2498 = vsub.s32 %v2495, %v2497
    %v2499 = vrot.slane %v1363, %v2498
    %v2500 = vcombine.high %v2499, %v2499
    %v2502 = vunpack.c.l.s4 1983009808
    %v2503 = vunpack.c.0.s8 %v2502
    %v2504 = vlaneseq
    %v2505 = vshrl.u32 %v2504, 7
    %v2506 = vsub.s32 %v2503, %v2505
    %v2507 = vrot.slane %v1328, %v2506
    %v2508 = vcombine.high %v2507, %v2507
    %v2510 = vunpack.c.l.s4 1983009808
    %v2511 = vunpack.c.0.s8 %v2510
    %v2512 = vlaneseq
    %v2513 = vshrl.u32 %v2512, 7
    %v2514 = vsub.s32 %v2511, %v2513
    %v2515 = vrot.slane %v1362, %v2514
    %v2516 = vcombine.high %v2515, %v2515
    %v2518 = vunpack.c.l.s4 1983009808
    %v2519 = vunpack.c.0.s8 %v2518
    %v2520 = vlaneseq
    %v2521 = vshrl.u32 %v2520, 7
    %v2522 = vsub.s32 %v2519, %v2521
    %v2523 = vrot.slane %v1330, %v2522
    %v2524 = vcombine.high %v2523, %v2523
    %v2526 = vunpack.c.l.s4 1983009808
    %v2527 = vunpack.c.0.s8 %v2526
    %v2528 = vlaneseq
    %v2529 = vshrl.u32 %v2528, 7
    %v2530 = vsub.s32 %v2527, %v2529
    %v2531 = vrot.slane %v1364, %v2530
    %v2532 = vcombine.high %v2531, %v2531
    %v2534 = vunpack.c.l.s4 1983009808
    %v2535 = vunpack.c.0.s8 %v2534
    %v2536 = vlaneseq
    %v2537 = vshrl.u32 %v2536, 7
    %v2538 = vsub.s32 %v2535, %v2537
    %v2539 = vrot.slane %v1389, %v2538
    %v2540 = vcombine.high %v2539, %v2539
    %v2542 = vunpack.c.l.s4 1983009808
    %v2543 = vunpack.c.0.s8 %v2542
    %v2544 = vlaneseq
    %v2545 = vshrl.u32 %v2544, 7
    %v2546 = vsub.s32 %v2543, %v2545
    %v2547 = vrot.slane %v1423, %v2546
    %v2548 = vcombine.high %v2547, %v2547
    %v2550 = vunpack.c.l.s4 1983009808
    %v2551 = vunpack.c.0.s8 %v2550
    %v2552 = vlaneseq
    %v2553 = vshrl.u32 %v2552, 7
    %v2554 = vsub.s32 %v2551, %v2553
    %v2555 = vrot.slane %v1397, %v2554
    %v2556 = vcombine.high %v2555, %v2555
    %v2558 = vunpack.c.l.s4 1983009808
    %v2559 = vunpack.c.0.s8 %v2558
    %v2560 = vlaneseq
    %v2561 = vshrl.u32 %v2560, 7
    %v2562 = vsub.s32 %v2559, %v2561
    %v2563 = vrot.slane %v1431, %v2562
    %v2564 = vcombine.high %v2563, %v2563
    %v2566 = vunpack.c.l.s4 1983009808
    %v2567 = vunpack.c.0.s8 %v2566
    %v2568 = vlaneseq
    %v2569 = vshrl.u32 %v2568, 7
    %v2570 = vsub.s32 %v2567, %v2569
    %v2571 = vrot.slane %v1396, %v2570
    %v2572 = vcombine.high %v2571, %v2571
    %v2574 = vunpack.c.l.s4 1983009808
    %v2575 = vunpack.c.0.s8 %v2574
    %v2576 = vlaneseq
    %v2577 = vshrl.u32 %v2576, 7
    %v2578 = vsub.s32 %v2575, %v2577
    %v2579 = vrot.slane %v1430, %v2578
    %v2580 = vcombine.high %v2579, %v2579
    %v2582 = vunpack.c.l.s4 1983009808
    %v2583 = vunpack.c.0.s8 %v2582
    %v2584 = vlaneseq
    %v2585 = vshrl.u32 %v2584, 7
    %v2586 = vsub.s32 %v2583, %v2585
    %v2587 = vrot.slane %v1398, %v2586
    %v2588 = vcombine.high %v2587, %v2587
    %v2590 = vunpack.c.l.s4 1983009808
    %v2591 = vunpack.c.0.s8 %v2590
    %v2592 = vlaneseq
    %v2593 = vshrl.u32 %v2592, 7
    %v2594 = vsub.s32 %v2591, %v2593
    %v2595 = vrot.slane %v1432, %v2594
    %v2596 = vcombine.high %v2595, %v2595
    %v2598 = vunpack.c.l.s4 1983009808
    %v2599 = vunpack.c.0.s8 %v2598
    %v2600 = vlaneseq
    %v2601 = vshrl.u32 %v2600, 7
    %v2602 = vsub.s32 %v2599, %v2601
    %v2603 = vrot.slane %v1457, %v2602
    %v2604 = vcombine.high %v2603, %v2603
    %v2606 = vunpack.c.l.s4 1983009808
    %v2607 = vunpack.c.0.s8 %v2606
    %v2608 = vlaneseq
    %v2609 = vshrl.u32 %v2608, 7
    %v2610 = vsub.s32 %v2607, %v2609
    %v2611 = vrot.slane %v1491, %v2610
    %v2612 = vcombine.high %v2611, %v2611
    %v2614 = vunpack.c.l.s4 1983009808
    %v2615 = vunpack.c.0.s8 %v2614
    %v2616 = vlaneseq
    %v2617 = vshrl.u32 %v2616, 7
    %v2618 = vsub.s32 %v2615, %v2617
    %v2619 = vrot.slane %v1465, %v2618
    %v2620 = vcombine.high %v2619, %v2619
    %v2622 = vunpack.c.l.s4 1983009808
    %v2623 = vunpack.c.0.s8 %v2622
    %v2624 = vlaneseq
    %v2625 = vshrl.u32 %v2624, 7
    %v2626 = vsub.s32 %v2623, %v2625
    %v2627 = vrot.slane %v1499, %v2626
    %v2628 = vcombine.high %v2627, %v2627
    %v2630 = vunpack.c.l.s4 1983009808
    %v2631 = vunpack.c.0.s8 %v2630
    %v2632 = vlaneseq
    %v2633 = vshrl.u32 %v2632, 7
    %v2634 = vsub.s32 %v2631, %v2633
    %v2635 = vrot.slane %v1464, %v2634
    %v2636 = vcombine.high %v2635, %v2635
    %v2638 = vunpack.c.l.s4 1983009808
    %v2639 = vunpack.c.0.s8 %v2638
    %v2640 = vlaneseq
    %v2641 = vshrl.u32 %v2640, 7
    %v2642 = vsub.s32 %v2639, %v2641
    %v2643 = vrot.slane %v1498, %v2642
    %v2644 = vcombine.high %v2643, %v2643
    %v2646 = vunpack.c.l.s4 1983009808
    %v2647 = vunpack.c.0.s8 %v2646
    %v2648 = vlaneseq
    %v2649 = vshrl.u32 %v2648, 7
    %v2650 = vsub.s32 %v2647, %v2649
    %v2651 = vrot.slane %v1466, %v2650
    %v2652 = vcombine.high %v2651, %v2651
    %v2654 = vunpack.c.l.s4 1983009808
    %v2655 = vunpack.c.0.s8 %v2654
    %v2656 = vlaneseq
    %v2657 = vshrl.u32 %v2656, 7
    %v2658 = vsub.s32 %v2655, %v2657
    %v2659 = vrot.slane %v1500, %v2658
    %v2660 = vcombine.high %v2659, %v2659
    %v2662 = vunpack.c.l.s4 1983009808
    %v2663 = vunpack.c.0.s8 %v2662
    %v2664 = vlaneseq
    %v2665 = vshrl.u32 %v2664, 7
    %v2666 = vsub.s32 %v2663, %v2665
    %v2667 = vrot.slane %v1525, %v2666
    %v2668 = vcombine.high %v2667, %v2667
    %v2670 = vunpack.c.l.s4 1983009808
    %v2671 = vunpack.c.0.s8 %v2670
    %v2672 = vlaneseq
    %v2673 = vshrl.u32 %v2672, 7
    %v2674 = vsub.s32 %v2671, %v2673
    %v2675 = vrot.slane %v1559, %v2674
    %v2676 = vcombine.high %v2675, %v2675
    %v2678 = vunpack.c.l.s4 1983009808
    %v2679 = vunpack.c.0.s8 %v2678
    %v2680 = vlaneseq
    %v2681 = vshrl.u32 %v2680, 7
    %v2682 = vsub.s32 %v2679, %v2681
    %v2683 = vrot.slane %v1533, %v2682
    %v2684 = vcombine.high %v2683, %v2683
    %v2686 = vunpack.c.l.s4 1983009808
    %v2687 = vunpack.c.0.s8 %v2686
    %v2688 = vlaneseq
    %v2689 = vshrl.u32 %v2688, 7
    %v2690 = vsub.s32 %v2687, %v2689
    %v2691 = vrot.slane %v1567, %v2690
    %v2692 = vcombine.high %v2691, %v2691
    %v2694 = vunpack.c.l.s4 1983009808
    %v2695 = vunpack.c.0.s8 %v2694
    %v2696 = vlaneseq
    %v2697 = vshrl.u32 %v2696, 7
    %v2698 = vsub.s32 %v2695, %v2697
    %v2699 = vrot.slane %v1532, %v2698
    %v2700 = vcombine.high %v2699, %v2699
    %v2702 = vunpack.c.l.s4 1983009808
    %v2703 = vunpack.c.0.s8 %v2702
    %v2704 = vlaneseq
    %v2705 = vshrl.u32 %v2704, 7
    %v2706 = vsub.s32 %v2703, %v2705
    %v2707 = vrot.slane %v1566, %v2706
    %v2708 = vcombine.high %v2707, %v2707
    %v2710 = vunpack.c.l.s4 1983009808
    %v2711 = vunpack.c.0.s8 %v2710
    %v2712 = vlaneseq
    %v2713 = vshrl.u32 %v2712, 7
    %v2714 = vsub.s32 %v2711, %v2713
    %v2715 = vrot.slane %v1534, %v2714
    %v2716 = vcombine.high %v2715, %v2715
    %v2718 = vunpack.c.l.s4 1983009808
    %v2719 = vunpack.c.0.s8 %v2718
    %v2720 = vlaneseq
    %v2721 = vshrl.u32 %v2720, 7
    %v2722 = vsub.s32 %v2719, %v2721
    %v2723 = vrot.slane %v1568, %v2722
    %v2724 = vcombine.high %v2723, %v2723
    %v2726 = vunpack.c.l.s4 1983009808
    %v2727 = vunpack.c.0.s8 %v2726
    %v2728 = vlaneseq
    %v2729 = vshrl.u32 %v2728, 7
    %v2730 = vsub.s32 %v2727, %v2729
    %v2731 = vrot.slane %v1593, %v2730
    %v2732 = vcombine.high %v2731, %v2731
    %v2734 = vunpack.c.l.s4 1983009808
    %v2735 = vunpack.c.0.s8 %v2734
    %v2736 = vlaneseq
    %v2737 = vshrl.u32 %v2736, 7
    %v2738 = vsub.s32 %v2735, %v2737
    %v2739 = vrot.slane %v1627, %v2738
    %v2740 = vcombine.high %v2739, %v2739
    %v2742 = vunpack.c.l.s4 1983009808
    %v2743 = vunpack.c.0.s8 %v2742
    %v2744 = vlaneseq
    %v2745 = vshrl.u32 %v2744, 7
    %v2746 = vsub.s32 %v2743, %v2745
    %v2747 = vrot.slane %v1601, %v2746
    %v2748 = vcombine.high %v2747, %v2747
    %v2750 = vunpack.c.l.s4 1983009808
    %v2751 = vunpack.c.0.s8 %v2750
    %v2752 = vlaneseq
    %v2753 = vshrl.u32 %v2752, 7
    %v2754 = vsub.s32 %v2751, %v2753
    %v2755 = vrot.slane %v1635, %v2754
    %v2756 = vcombine.high %v2755, %v2755
    %v2758 = vunpack.c.l.s4 1983009808
    %v2759 = vunpack.c.0.s8 %v2758
    %v2760 = vlaneseq
    %v2761 = vshrl.u32 %v2760, 7
    %v2762 = vsub.s32 %v2759, %v2761
    %v2763 = vrot.slane %v1600, %v2762
    %v2764 = vcombine.high %v2763, %v2763
    %v2766 = vunpack.c.l.s4 1983009808
    %v2767 = vunpack.c.0.s8 %v2766
    %v2768 = vlaneseq
    %v2769 = vshrl.u32 %v2768, 7
    %v2770 = vsub.s32 %v2767, %v2769
    %v2771 = vrot.slane %v1634, %v2770
    %v2772 = vcombine.high %v2771, %v2771
    %v2774 = vunpack.c.l.s4 1983009808
    %v2775 = vunpack.c.0.s8 %v2774
    %v2776 = vlaneseq
    %v2777 = vshrl.u32 %v2776, 7
    %v2778 = vsub.s32 %v2775, %v2777
    %v2779 = vrot.slane %v1602, %v2778
    %v2780 = vcombine.high %v2779, %v2779
    %v2782 = vunpack.c.l.s4 1983009808
    %v2783 = vunpack.c.0.s8 %v2782
    %v2784 = vlaneseq
    %v2785 = vshrl.u32 %v2784, 7
    %v2786 = vsub.s32 %v2783, %v2785
    %v2787 = vrot.slane %v1636, %v2786
    %v2788 = vcombine.high %v2787, %v2787
    %v2789 = vcombine.low %v1771, %v1772
    %v2790 = vcombine.low %v1779, %v1780
    %v2792 = vunpack.c.l.s4 1983009808
    %v2793 = vunpack.c.0.s8 %v2792
    %v2794 = vlaneseq
    %v2795 = vshrl.u32 %v2794, 7
    %v2796 = vsub.s32 %v2793, %v2795
    %v2797 = vrot.slane %v2789, %v2796
    %v2799 = vunpack.c.l.s4 1983009808
    %v2800 = vunpack.c.0.s8 %v2799
    %v2801 = vlaneseq
    %v2802 = vshrl.u32 %v2801, 7
    %v2803 = vsub.s32 %v2800, %v2802
    %v2804 = vrot.slane %v2790, %v2803
    %v2805 = vcombine.low %v2797, %v2804
    %v2806 = vcombine.low %v1787, %v1788
    %v2807 = vcombine.low %v1795, %v1796
    %v2809 = vunpack.c.l.s4 1983009808
    %v2810 = vunpack.c.0.s8 %v2809
    %v2811 = vlaneseq
    %v2812 = vshrl.u32 %v2811, 7
    %v2813 = vsub.s32 %v2810, %v2812
    %v2814 = vrot.slane %v2806, %v2813
    %v2816 = vunpack.c.l.s4 1983009808
    %v2817 = vunpack.c.0.s8 %v2816
    %v2818 = vlaneseq
    %v2819 = vshrl.u32 %v2818, 7
    %v2820 = vsub.s32 %v2817, %v2819
    %v2821 = vrot.slane %v2807, %v2820
    %v2822 = vcombine.low %v2814, %v2821
    %v2823 = vcombine.low %v1803, %v1804
    %v2824 = vcombine.low %v1811, %v1812
    %v2826 = vunpack.c.l.s4 1983009808
    %v2827 = vunpack.c.0.s8 %v2826
    %v2828 = vlaneseq
    %v2829 = vshrl.u32 %v2828, 7
    %v2830 = vsub.s32 %v2827, %v2829
    %v2831 = vrot.slane %v2823, %v2830
    %v2833 = vunpack.c.l.s4 1983009808
    %v2834 = vunpack.c.0.s8 %v2833
    %v2835 = vlaneseq
    %v2836 = vshrl.u32 %v2835, 7
    %v2837 = vsub.s32 %v2834, %v2836
    %v2838 = vrot.slane %v2824, %v2837
    %v2839 = vcombine.low %v2831, %v2838
    %v2840 = vcombine.low %v1819, %v1820
    %v2841 = vcombine.low %v1827, %v1828
    %v2843 = vunpack.c.l.s4 1983009808
    %v2844 = vunpack.c.0.s8 %v2843
    %v2845 = vlaneseq
    %v2846 = vshrl.u32 %v2845, 7
    %v2847 = vsub.s32 %v2844, %v2846
    %v2848 = vrot.slane %v2840, %v2847
    %v2850 = vunpack.c.l.s4 1983009808
    %v2851 = vunpack.c.0.s8 %v2850
    %v2852 = vlaneseq
    %v2853 = vshrl.u32 %v2852, 7
    %v2854 = vsub.s32 %v2851, %v2853
    %v2855 = vrot.slane %v2841, %v2854
    %v2856 = vcombine.low %v2848, %v2855
    %v2857 = vcombine.low %v1835, %v1836
    %v2858 = vcombine.low %v1843, %v1844
    %v2860 = vunpack.c.l.s4 1983009808
    %v2861 = vunpack.c.0.s8 %v2860
    %v2862 = vlaneseq
    %v2863 = vshrl.u32 %v2862, 7
    %v2864 = vsub.s32 %v2861, %v2863
    %v2865 = vrot.slane %v2857, %v2864
    %v2867 = vunpack.c.l.s4 1983009808
    %v2868 = vunpack.c.0.s8 %v2867
    %v2869 = vlaneseq
    %v2870 = vshrl.u32 %v2869, 7
    %v2871 = vsub.s32 %v2868, %v2870
    %v2872 = vrot.slane %v2858, %v2871
    %v2873 = vcombine.low %v2865, %v2872
    %v2874 = vcombine.low %v1851, %v1852
    %v2875 = vcombine.low %v1859, %v1860
    %v2877 = vunpack.c.l.s4 1983009808
    %v2878 = vunpack.c.0.s8 %v2877
    %v2879 = vlaneseq
    %v2880 = vshrl.u32 %v2879, 7
    %v2881 = vsub.s32 %v2878, %v2880
    %v2882 = vrot.slane %v2874, %v2881
    %v2884 = vunpack.c.l.s4 1983009808
    %v2885 = vunpack.c.0.s8 %v2884
    %v2886 = vlaneseq
    %v2887 = vshrl.u32 %v2886, 7
    %v2888 = vsub.s32 %v2885, %v2887
    %v2889 = vrot.slane %v2875, %v2888
    %v2890 = vcombine.low %v2882, %v2889
    %v2891 = vcombine.low %v1867, %v1868
    %v2892 = vcombine.low %v1875, %v1876
    %v2894 = vunpack.c.l.s4 1983009808
    %v2895 = vunpack.c.0.s8 %v2894
    %v2896 = vlaneseq
    %v2897 = vshrl.u32 %v2896, 7
    %v2898 = vsub.s32 %v2895, %v2897
    %v2899 = vrot.slane %v2891, %v2898
    %v2901 = vunpack.c.l.s4 1983009808
    %v2902 = vunpack.c.0.s8 %v2901
    %v2903 = vlaneseq
    %v2904 = vshrl.u32 %v2903, 7
    %v2905 = vsub.s32 %v2902, %v2904
    %v2906 = vrot.slane %v2892, %v2905
    %v2907 = vcombine.low %v2899, %v2906
    %v2908 = vcombine.low %v1883, %v1884
    %v2909 = vcombine.low %v1891, %v1892
    %v2911 = vunpack.c.l.s4 1983009808
    %v2912 = vunpack.c.0.s8 %v2911
    %v2913 = vlaneseq
    %v2914 = vshrl.u32 %v2913, 7
    %v2915 = vsub.s32 %v2912, %v2914
    %v2916 = vrot.slane %v2908, %v2915
    %v2918 = vunpack.c.l.s4 1983009808
    %v2919 = vunpack.c.0.s8 %v2918
    %v2920 = vlaneseq
    %v2921 = vshrl.u32 %v2920, 7
    %v2922 = vsub.s32 %v2919, %v2921
    %v2923 = vrot.slane %v2909, %v2922
    %v2924 = vcombine.low %v2916, %v2923
    %v2925 = vcombine.low %v1899, %v1900
    %v2926 = vcombine.low %v1907, %v1908
    %v2928 = vunpack.c.l.s4 1983009808
    %v2929 = vunpack.c.0.s8 %v2928
    %v2930 = vlaneseq
    %v2931 = vshrl.u32 %v2930, 7
    %v2932 = vsub.s32 %v2929, %v2931
    %v2933 = vrot.slane %v2925, %v2932
    %v2935 = vunpack.c.l.s4 1983009808
    %v2936 = vunpack.c.0.s8 %v2935
    %v2937 = vlaneseq
    %v2938 = vshrl.u32 %v2937, 7
    %v2939 = vsub.s32 %v2936, %v2938
    %v2940 = vrot.slane %v2926, %v2939
    %v2941 = vcombine.low %v2933, %v2940
    %v2942 = vcombine.low %v1915, %v1916
    %v2943 = vcombine.low %v1923, %v1924
    %v2945 = vunpack.c.l.s4 1983009808
    %v2946 = vunpack.c.0.s8 %v2945
    %v2947 = vlaneseq
    %v2948 = vshrl.u32 %v2947, 7
    %v2949 = vsub.s32 %v2946, %v2948
    %v2950 = vrot.slane %v2942, %v2949
    %v2952 = vunpack.c.l.s4 1983009808
    %v2953 = vunpack.c.0.s8 %v2952
    %v2954 = vlaneseq
    %v2955 = vshrl.u32 %v2954, 7
    %v2956 = vsub.s32 %v2953, %v2955
    %v2957 = vrot.slane %v2943, %v2956
    %v2958 = vcombine.low %v2950, %v2957
    %v2959 = vcombine.low %v1931, %v1932
    %v2960 = vcombine.low %v1939, %v1940
    %v2962 = vunpack.c.l.s4 1983009808
    %v2963 = vunpack.c.0.s8 %v2962
    %v2964 = vlaneseq
    %v2965 = vshrl.u32 %v2964, 7
    %v2966 = vsub.s32 %v2963, %v2965
    %v2967 = vrot.slane %v2959, %v2966
    %v2969 = vunpack.c.l.s4 1983009808
    %v2970 = vunpack.c.0.s8 %v2969
    %v2971 = vlaneseq
    %v2972 = vshrl.u32 %v2971, 7
    %v2973 = vsub.s32 %v2970, %v2972
    %v2974 = vrot.slane %v2960, %v2973
    %v2975 = vcombine.low %v2967, %v2974
    %v2976 = vcombine.low %v1947, %v1948
    %v2977 = vcombine.low %v1955, %v1956
    %v2979 = vunpack.c.l.s4 1983009808
    %v2980 = vunpack.c.0.s8 %v2979
    %v2981 = vlaneseq
    %v2982 = vshrl.u32 %v2981, 7
    %v2983 = vsub.s32 %v2980, %v2982
    %v2984 = vrot.slane %v2976, %v2983
    %v2986 = vunpack.c.l.s4 1983009808
    %v2987 = vunpack.c.0.s8 %v2986
    %v2988 = vlaneseq
    %v2989 = vshrl.u32 %v2988, 7
    %v2990 = vsub.s32 %v2987, %v2989
    %v2991 = vrot.slane %v2977, %v2990
    %v2992 = vcombine.low %v2984, %v2991
    %v2993 = vcombine.low %v1963, %v1964
    %v2994 = vcombine.low %v1971, %v1972
    %v2996 = vunpack.c.l.s4 1983009808
    %v2997 = vunpack.c.0.s8 %v2996
    %v2998 = vlaneseq
    %v2999 = vshrl.u32 %v2998, 7
    %v3000 = vsub.s32 %v2997, %v2999
    %v3001 = vrot.slane %v2993, %v3000
    %v3003 = vunpack.c.l.s4 1983009808
    %v3004 = vunpack.c.0.s8 %v3003
    %v3005 = vlaneseq
    %v3006 = vshrl.u32 %v3005, 7
    %v3007 = vsub.s32 %v3004, %v3006
    %v3008 = vrot.slane %v2994, %v3007
    %v3009 = vcombine.low %v3001, %v3008
    %v3010 = vcombine.low %v1979, %v1980
    %v3011 = vcombine.low %v1987, %v1988
    %v3013 = vunpack.c.l.s4 1983009808
    %v3014 = vunpack.c.0.s8 %v3013
    %v3015 = vlaneseq
    %v3016 = vshrl.u32 %v3015, 7
    %v3017 = vsub.s32 %v3014, %v3016
    %v3018 = vrot.slane %v3010, %v3017
    %v3020 = vunpack.c.l.s4 1983009808
    %v3021 = vunpack.c.0.s8 %v3020
    %v3022 = vlaneseq
    %v3023 = vshrl.u32 %v3022, 7
    %v3024 = vsub.s32 %v3021, %v3023
    %v3025 = vrot.slane %v3011, %v3024
    %v3026 = vcombine.low %v3018, %v3025
    %v3027 = vcombine.low %v1995, %v1996
    %v3028 = vcombine.low %v2003, %v2004
    %v3030 = vunpack.c.l.s4 1983009808
    %v3031 = vunpack.c.0.s8 %v3030
    %v3032 = vlaneseq
    %v3033 = vshrl.u32 %v3032, 7
    %v3034 = vsub.s32 %v3031, %v3033
    %v3035 = vrot.slane %v3027, %v3034
    %v3037 = vunpack.c.l.s4 1983009808
    %v3038 = vunpack.c.0.s8 %v3037
    %v3039 = vlaneseq
    %v3040 = vshrl.u32 %v3039, 7
    %v3041 = vsub.s32 %v3038, %v3040
    %v3042 = vrot.slane %v3028, %v3041
    %v3043 = vcombine.low %v3035, %v3042
    %v3044 = vcombine.low %v2011, %v2012
    %v3045 = vcombine.low %v2019, %v2020
    %v3047 = vunpack.c.l.s4 1983009808
    %v3048 = vunpack.c.0.s8 %v3047
    %v3049 = vlaneseq
    %v3050 = vshrl.u32 %v3049, 7
    %v3051 = vsub.s32 %v3048, %v3050
    %v3052 = vrot.slane %v3044, %v3051
    %v3054 = vunpack.c.l.s4 1983009808
    %v3055 = vunpack.c.0.s8 %v3054
    %v3056 = vlaneseq
    %v3057 = vshrl.u32 %v3056, 7
    %v3058 = vsub.s32 %v3055, %v3057
    %v3059 = vrot.slane %v3045, %v3058
    %v3060 = vcombine.low %v3052, %v3059
    %v3061 = vcombine.low %v2027, %v2028
    %v3062 = vcombine.low %v2035, %v2036
    %v3064 = vunpack.c.l.s4 1983009808
    %v3065 = vunpack.c.0.s8 %v3064
    %v3066 = vlaneseq
    %v3067 = vshrl.u32 %v3066, 7
    %v3068 = vsub.s32 %v3065, %v3067
    %v3069 = vrot.slane %v3061, %v3068
    %v3071 = vunpack.c.l.s4 1983009808
    %v3072 = vunpack.c.0.s8 %v3071
    %v3073 = vlaneseq
    %v3074 = vshrl.u32 %v3073, 7
    %v3075 = vsub.s32 %v3072, %v3074
    %v3076 = vrot.slane %v3062, %v3075
    %v3077 = vcombine.low %v3069, %v3076
    %v3078 = vcombine.low %v2043, %v2044
    %v3079 = vcombine.low %v2051, %v2052
    %v3081 = vunpack.c.l.s4 1983009808
    %v3082 = vunpack.c.0.s8 %v3081
    %v3083 = vlaneseq
    %v3084 = vshrl.u32 %v3083, 7
    %v3085 = vsub.s32 %v3082, %v3084
    %v3086 = vrot.slane %v3078, %v3085
    %v3088 = vunpack.c.l.s4 1983009808
    %v3089 = vunpack.c.0.s8 %v3088
    %v3090 = vlaneseq
    %v3091 = vshrl.u32 %v3090, 7
    %v3092 = vsub.s32 %v3089, %v3091
    %v3093 = vrot.slane %v3079, %v3092
    %v3094 = vcombine.low %v3086, %v3093
    %v3095 = vcombine.low %v2059, %v2060
    %v3096 = vcombine.low %v2067, %v2068
    %v3098 = vunpack.c.l.s4 1983009808
    %v3099 = vunpack.c.0.s8 %v3098
    %v3100 = vlaneseq
    %v3101 = vshrl.u32 %v3100, 7
    %v3102 = vsub.s32 %v3099, %v3101
    %v3103 = vrot.slane %v3095, %v3102
    %v3105 = vunpack.c.l.s4 1983009808
    %v3106 = vunpack.c.0.s8 %v3105
    %v3107 = vlaneseq
    %v3108 = vshrl.u32 %v3107, 7
    %v3109 = vsub.s32 %v3106, %v3108
    %v3110 = vrot.slane %v3096, %v3109
    %v3111 = vcombine.low %v3103, %v3110
    %v3112 = vcombine.low %v2075, %v2076
    %v3113 = vcombine.low %v2083, %v2084
    %v3115 = vunpack.c.l.s4 1983009808
    %v3116 = vunpack.c.0.s8 %v3115
    %v3117 = vlaneseq
    %v3118 = vshrl.u32 %v3117, 7
    %v3119 = vsub.s32 %v3116, %v3118
    %v3120 = vrot.slane %v3112, %v3119
    %v3122 = vunpack.c.l.s4 1983009808
    %v3123 = vunpack.c.0.s8 %v3122
    %v3124 = vlaneseq
    %v3125 = vshrl.u32 %v3124, 7
    %v3126 = vsub.s32 %v3123, %v3125
    %v3127 = vrot.slane %v3113, %v3126
    %v3128 = vcombine.low %v3120, %v3127
    %v3129 = vcombine.low %v2091, %v2092
    %v3130 = vcombine.low %v2099, %v2100
    %v3132 = vunpack.c.l.s4 1983009808
    %v3133 = vunpack.c.0.s8 %v3132
    %v3134 = vlaneseq
    %v3135 = vshrl.u32 %v3134, 7
    %v3136 = vsub.s32 %v3133, %v3135
    %v3137 = vrot.slane %v3129, %v3136
    %v3139 = vunpack.c.l.s4 1983009808
    %v3140 = vunpack.c.0.s8 %v3139
    %v3141 = vlaneseq
    %v3142 = vshrl.u32 %v3141, 7
    %v3143 = vsub.s32 %v3140, %v3142
    %v3144 = vrot.slane %v3130, %v3143
    %v3145 = vcombine.low %v3137, %v3144
    %v3146 = vcombine.low %v2107, %v2108
    %v3147 = vcombine.low %v2115, %v2116
    %v3149 = vunpack.c.l.s4 1983009808
    %v3150 = vunpack.c.0.s8 %v3149
    %v3151 = vlaneseq
    %v3152 = vshrl.u32 %v3151, 7
    %v3153 = vsub.s32 %v3150, %v3152
    %v3154 = vrot.slane %v3146, %v3153
    %v3156 = vunpack.c.l.s4 1983009808
    %v3157 = vunpack.c.0.s8 %v3156
    %v3158 = vlaneseq
    %v3159 = vshrl.u32 %v3158, 7
    %v3160 = vsub.s32 %v3157, %v3159
    %v3161 = vrot.slane %v3147, %v3160
    %v3162 = vcombine.low %v3154, %v3161
    %v3163 = vcombine.low %v2123, %v2124
    %v3164 = vcombine.low %v2131, %v2132
    %v3166 = vunpack.c.l.s4 1983009808
    %v3167 = vunpack.c.0.s8 %v3166
    %v3168 = vlaneseq
    %v3169 = vshrl.u32 %v3168, 7
    %v3170 = vsub.s32 %v3167, %v3169
    %v3171 = vrot.slane %v3163, %v3170
    %v3173 = vunpack.c.l.s4 1983009808
    %v3174 = vunpack.c.0.s8 %v3173
    %v3175 = vlaneseq
    %v3176 = vshrl.u32 %v3175, 7
    %v3177 = vsub.s32 %v3174, %v3176
    %v3178 = vrot.slane %v3164, %v3177
    %v3179 = vcombine.low %v3171, %v3178
    %v3180 = vcombine.low %v2139, %v2140
    %v3181 = vcombine.low %v2147, %v2148
    %v3183 = vunpack.c.l.s4 1983009808
    %v3184 = vunpack.c.0.s8 %v3183
    %v3185 = vlaneseq
    %v3186 = vshrl.u32 %v3185, 7
    %v3187 = vsub.s32 %v3184, %v3186
    %v3188 = vrot.slane %v3180, %v3187
    %v3190 = vunpack.c.l.s4 1983009808
    %v3191 = vunpack.c.0.s8 %v3190
    %v3192 = vlaneseq
    %v3193 = vshrl.u32 %v3192, 7
    %v3194 = vsub.s32 %v3191, %v3193
    %v3195 = vrot.slane %v3181, %v3194
    %v3196 = vcombine.low %v3188, %v3195
    %v3197 = vcombine.low %v2155, %v2156
    %v3198 = vcombine.low %v2163, %v2164
    %v3200 = vunpack.c.l.s4 1983009808
    %v3201 = vunpack.c.0.s8 %v3200
    %v3202 = vlaneseq
    %v3203 = vshrl.u32 %v3202, 7
    %v3204 = vsub.s32 %v3201, %v3203
    %v3205 = vrot.slane %v3197, %v3204
    %v3207 = vunpack.c.l.s4 1983009808
    %v3208 = vunpack.c.0.s8 %v3207
    %v3209 = vlaneseq
    %v3210 = vshrl.u32 %v3209, 7
    %v3211 = vsub.s32 %v3208, %v3210
    %v3212 = vrot.slane %v3198, %v3211
    %v3213 = vcombine.low %v3205, %v3212
    %v3214 = vcombine.low %v2171, %v2172
    %v3215 = vcombine.low %v2179, %v2180
    %v3217 = vunpack.c.l.s4 1983009808
    %v3218 = vunpack.c.0.s8 %v3217
    %v3219 = vlaneseq
    %v3220 = vshrl.u32 %v3219, 7
    %v3221 = vsub.s32 %v3218, %v3220
    %v3222 = vrot.slane %v3214, %v3221
    %v3224 = vunpack.c.l.s4 1983009808
    %v3225 = vunpack.c.0.s8 %v3224
    %v3226 = vlaneseq
    %v3227 = vshrl.u32 %v3226, 7
    %v3228 = vsub.s32 %v3225, %v3227
    %v3229 = vrot.slane %v3215, %v3228
    %v3230 = vcombine.low %v3222, %v3229
    %v3231 = vcombine.low %v2187, %v2188
    %v3232 = vcombine.low %v2195, %v2196
    %v3234 = vunpack.c.l.s4 1983009808
    %v3235 = vunpack.c.0.s8 %v3234
    %v3236 = vlaneseq
    %v3237 = vshrl.u32 %v3236, 7
    %v3238 = vsub.s32 %v3235, %v3237
    %v3239 = vrot.slane %v3231, %v3238
    %v3241 = vunpack.c.l.s4 1983009808
    %v3242 = vunpack.c.0.s8 %v3241
    %v3243 = vlaneseq
    %v3244 = vshrl.u32 %v3243, 7
    %v3245 = vsub.s32 %v3242, %v3244
    %v3246 = vrot.slane %v3232, %v3245
    %v3247 = vcombine.low %v3239, %v3246
    %v3248 = vcombine.low %v2203, %v2204
    %v3249 = vcombine.low %v2211, %v2212
    %v3251 = vunpack.c.l.s4 1983009808
    %v3252 = vunpack.c.0.s8 %v3251
    %v3253 = vlaneseq
    %v3254 = vshrl.u32 %v3253, 7
    %v3255 = vsub.s32 %v3252, %v3254
    %v3256 = vrot.slane %v3248, %v3255
    %v3258 = vunpack.c.l.s4 1983009808
    %v3259 = vunpack.c.0.s8 %v3258
    %v3260 = vlaneseq
    %v3261 = vshrl.u32 %v3260, 7
    %v3262 = vsub.s32 %v3259, %v3261
    %v3263 = vrot.slane %v3249, %v3262
    %v3264 = vcombine.low %v3256, %v3263
    %v3265 = vcombine.low %v2219, %v2220
    %v3266 = vcombine.low %v2227, %v2228
    %v3268 = vunpack.c.l.s4 1983009808
    %v3269 = vunpack.c.0.s8 %v3268
    %v3270 = vlaneseq
    %v3271 = vshrl.u32 %v3270, 7
    %v3272 = vsub.s32 %v3269, %v3271
    %v3273 = vrot.slane %v3265, %v3272
    %v3275 = vunpack.c.l.s4 1983009808
    %v3276 = vunpack.c.0.s8 %v3275
    %v3277 = vlaneseq
    %v3278 = vshrl.u32 %v3277, 7
    %v3279 = vsub.s32 %v3276, %v3278
    %v3280 = vrot.slane %v3266, %v3279
    %v3281 = vcombine.low %v3273, %v3280
    %v3282 = vcombine.low %v2235, %v2236
    %v3283 = vcombine.low %v2243, %v2244
    %v3285 = vunpack.c.l.s4 1983009808
    %v3286 = vunpack.c.0.s8 %v3285
    %v3287 = vlaneseq
    %v3288 = vshrl.u32 %v3287, 7
    %v3289 = vsub.s32 %v3286, %v3288
    %v3290 = vrot.slane %v3282, %v3289
    %v3292 = vunpack.c.l.s4 1983009808
    %v3293 = vunpack.c.0.s8 %v3292
    %v3294 = vlaneseq
    %v3295 = vshrl.u32 %v3294, 7
    %v3296 = vsub.s32 %v3293, %v3295
    %v3297 = vrot.slane %v3283, %v3296
    %v3298 = vcombine.low %v3290, %v3297
    %v3299 = vcombine.low %v2251, %v2252
    %v3300 = vcombine.low %v2259, %v2260
    %v3302 = vunpack.c.l.s4 1983009808
    %v3303 = vunpack.c.0.s8 %v3302
    %v3304 = vlaneseq
    %v3305 = vshrl.u32 %v3304, 7
    %v3306 = vsub.s32 %v3303, %v3305
    %v3307 = vrot.slane %v3299, %v3306
    %v3309 = vunpack.c.l.s4 1983009808
    %v3310 = vunpack.c.0.s8 %v3309
    %v3311 = vlaneseq
    %v3312 = vshrl.u32 %v3311, 7
    %v3313 = vsub.s32 %v3310, %v3312
    %v3314 = vrot.slane %v3300, %v3313
    %v3315 = vcombine.low %v3307, %v3314
    %v3316 = vcombine.low %v2267, %v2268
    %v3317 = vcombine.low %v2275, %v2276
    %v3319 = vunpack.c.l.s4 1983009808
    %v3320 = vunpack.c.0.s8 %v3319
    %v3321 = vlaneseq
    %v3322 = vshrl.u32 %v3321, 7
    %v3323 = vsub.s32 %v3320, %v3322
    %v3324 = vrot.slane %v3316, %v3323
    %v3326 = vunpack.c.l.s4 1983009808
    %v3327 = vunpack.c.0.s8 %v3326
    %v3328 = vlaneseq
    %v3329 = vshrl.u32 %v3328, 7
    %v3330 = vsub.s32 %v3327, %v3329
    %v3331 = vrot.slane %v3317, %v3330
    %v3332 = vcombine.low %v3324, %v3331
    %v3333 = vcombine.low %v2283, %v2284
    %v3334 = vcombine.low %v2291, %v2292
    %v3336 = vunpack.c.l.s4 1983009808
    %v3337 = vunpack.c.0.s8 %v3336
    %v3338 = vlaneseq
    %v3339 = vshrl.u32 %v3338, 7
    %v3340 = vsub.s32 %v3337, %v3339
    %v3341 = vrot.slane %v3333, %v3340
    %v3343 = vunpack.c.l.s4 1983009808
    %v3344 = vunpack.c.0.s8 %v3343
    %v3345 = vlaneseq
    %v3346 = vshrl.u32 %v3345, 7
    %v3347 = vsub.s32 %v3344, %v3346
    %v3348 = vrot.slane %v3334, %v3347
    %v3349 = vcombine.low %v3341, %v3348
    %v3350 = vcombine.low %v2299, %v2300
    %v3351 = vcombine.low %v2307, %v2308
    %v3353 = vunpack.c.l.s4 1983009808
    %v3354 = vunpack.c.0.s8 %v3353
    %v3355 = vlaneseq
    %v3356 = vshrl.u32 %v3355, 7
    %v3357 = vsub.s32 %v3354, %v3356
    %v3358 = vrot.slane %v3350, %v3357
    %v3360 = vunpack.c.l.s4 1983009808
    %v3361 = vunpack.c.0.s8 %v3360
    %v3362 = vlaneseq
    %v3363 = vshrl.u32 %v3362, 7
    %v3364 = vsub.s32 %v3361, %v3363
    %v3365 = vrot.slane %v3351, %v3364
    %v3366 = vcombine.low %v3358, %v3365
    %v3367 = vcombine.low %v2315, %v2316
    %v3368 = vcombine.low %v2323, %v2324
    %v3370 = vunpack.c.l.s4 1983009808
    %v3371 = vunpack.c.0.s8 %v3370
    %v3372 = vlaneseq
    %v3373 = vshrl.u32 %v3372, 7
    %v3374 = vsub.s32 %v3371, %v3373
    %v3375 = vrot.slane %v3367, %v3374
    %v3377 = vunpack.c.l.s4 1983009808
    %v3378 = vunpack.c.0.s8 %v3377
    %v3379 = vlaneseq
    %v3380 = vshrl.u32 %v3379, 7
    %v3381 = vsub.s32 %v3378, %v3380
    %v3382 = vrot.slane %v3368, %v3381
    %v3383 = vcombine.low %v3375, %v3382
    %v3384 = vcombine.low %v2331, %v2332
    %v3385 = vcombine.low %v2339, %v2340
    %v3387 = vunpack.c.l.s4 1983009808
    %v3388 = vunpack.c.0.s8 %v3387
    %v3389 = vlaneseq
    %v3390 = vshrl.u32 %v3389, 7
    %v3391 = vsub.s32 %v3388, %v3390
    %v3392 = vrot.slane %v3384, %v3391
    %v3394 = vunpack.c.l.s4 1983009808
    %v3395 = vunpack.c.0.s8 %v3394
    %v3396 = vlaneseq
    %v3397 = vshrl.u32 %v3396, 7
    %v3398 = vsub.s32 %v3395, %v3397
    %v3399 = vrot.slane %v3385, %v3398
    %v3400 = vcombine.low %v3392, %v3399
    %v3401 = vcombine.low %v2347, %v2348
    %v3402 = vcombine.low %v2355, %v2356
    %v3404 = vunpack.c.l.s4 1983009808
    %v3405 = vunpack.c.0.s8 %v3404
    %v3406 = vlaneseq
    %v3407 = vshrl.u32 %v3406, 7
    %v3408 = vsub.s32 %v3405, %v3407
    %v3409 = vrot.slane %v3401, %v3408
    %v3411 = vunpack.c.l.s4 1983009808
    %v3412 = vunpack.c.0.s8 %v3411
    %v3413 = vlaneseq
    %v3414 = vshrl.u32 %v3413, 7
    %v3415 = vsub.s32 %v3412, %v3414
    %v3416 = vrot.slane %v3402, %v3415
    %v3417 = vcombine.low %v3409, %v3416
    %v3418 = vcombine.low %v2363, %v2364
    %v3419 = vcombine.low %v2371, %v2372
    %v3421 = vunpack.c.l.s4 1983009808
    %v3422 = vunpack.c.0.s8 %v3421
    %v3423 = vlaneseq
    %v3424 = vshrl.u32 %v3423, 7
    %v3425 = vsub.s32 %v3422, %v3424
    %v3426 = vrot.slane %v3418, %v3425
    %v3428 = vunpack.c.l.s4 1983009808
    %v3429 = vunpack.c.0.s8 %v3428
    %v3430 = vlaneseq
    %v3431 = vshrl.u32 %v3430, 7
    %v3432 = vsub.s32 %v3429, %v3431
    %v3433 = vrot.slane %v3419, %v3432
    %v3434 = vcombine.low %v3426, %v3433
    %v3435 = vcombine.low %v2379, %v2380
    %v3436 = vcombine.low %v2387, %v2388
    %v3438 = vunpack.c.l.s4 1983009808
    %v3439 = vunpack.c.0.s8 %v3438
    %v3440 = vlaneseq
    %v3441 = vshrl.u32 %v3440, 7
    %v3442 = vsub.s32 %v3439, %v3441
    %v3443 = vrot.slane %v3435, %v3442
    %v3445 = vunpack.c.l.s4 1983009808
    %v3446 = vunpack.c.0.s8 %v3445
    %v3447 = vlaneseq
    %v3448 = vshrl.u32 %v3447, 7
    %v3449 = vsub.s32 %v3446, %v3448
    %v3450 = vrot.slane %v3436, %v3449
    %v3451 = vcombine.low %v3443, %v3450
    %v3452 = vcombine.low %v2395, %v2396
    %v3453 = vcombine.low %v2403, %v2404
    %v3455 = vunpack.c.l.s4 1983009808
    %v3456 = vunpack.c.0.s8 %v3455
    %v3457 = vlaneseq
    %v3458 = vshrl.u32 %v3457, 7
    %v3459 = vsub.s32 %v3456, %v3458
    %v3460 = vrot.slane %v3452, %v3459
    %v3462 = vunpack.c.l.s4 1983009808
    %v3463 = vunpack.c.0.s8 %v3462
    %v3464 = vlaneseq
    %v3465 = vshrl.u32 %v3464, 7
    %v3466 = vsub.s32 %v3463, %v3465
    %v3467 = vrot.slane %v3453, %v3466
    %v3468 = vcombine.low %v3460, %v3467
    %v3469 = vcombine.low %v2411, %v2412
    %v3470 = vcombine.low %v2419, %v2420
    %v3472 = vunpack.c.l.s4 1983009808
    %v3473 = vunpack.c.0.s8 %v3472
    %v3474 = vlaneseq
    %v3475 = vshrl.u32 %v3474, 7
    %v3476 = vsub.s32 %v3473, %v3475
    %v3477 = vrot.slane %v3469, %v3476
    %v3479 = vunpack.c.l.s4 1983009808
    %v3480 = vunpack.c.0.s8 %v3479
    %v3481 = vlaneseq
    %v3482 = vshrl.u32 %v3481, 7
    %v3483 = vsub.s32 %v3480, %v3482
    %v3484 = vrot.slane %v3470, %v3483
    %v3485 = vcombine.low %v3477, %v3484
    %v3486 = vcombine.low %v2427, %v2428
    %v3487 = vcombine.low %v2435, %v2436
    %v3489 = vunpack.c.l.s4 1983009808
    %v3490 = vunpack.c.0.s8 %v3489
    %v3491 = vlaneseq
    %v3492 = vshrl.u32 %v3491, 7
    %v3493 = vsub.s32 %v3490, %v3492
    %v3494 = vrot.slane %v3486, %v3493
    %v3496 = vunpack.c.l.s4 1983009808
    %v3497 = vunpack.c.0.s8 %v3496
    %v3498 = vlaneseq
    %v3499 = vshrl.u32 %v3498, 7
    %v3500 = vsub.s32 %v3497, %v3499
    %v3501 = vrot.slane %v3487, %v3500
    %v3502 = vcombine.low %v3494, %v3501
    %v3503 = vcombine.low %v2443, %v2444
    %v3504 = vcombine.low %v2451, %v2452
    %v3506 = vunpack.c.l.s4 1983009808
    %v3507 = vunpack.c.0.s8 %v3506
    %v3508 = vlaneseq
    %v3509 = vshrl.u32 %v3508, 7
    %v3510 = vsub.s32 %v3507, %v3509
    %v3511 = vrot.slane %v3503, %v3510
    %v3513 = vunpack.c.l.s4 1983009808
    %v3514 = vunpack.c.0.s8 %v3513
    %v3515 = vlaneseq
    %v3516 = vshrl.u32 %v3515, 7
    %v3517 = vsub.s32 %v3514, %v3516
    %v3518 = vrot.slane %v3504, %v3517
    %v3519 = vcombine.low %v3511, %v3518
    %v3520 = vcombine.low %v2459, %v2460
    %v3521 = vcombine.low %v2467, %v2468
    %v3523 = vunpack.c.l.s4 1983009808
    %v3524 = vunpack.c.0.s8 %v3523
    %v3525 = vlaneseq
    %v3526 = vshrl.u32 %v3525, 7
    %v3527 = vsub.s32 %v3524, %v3526
    %v3528 = vrot.slane %v3520, %v3527
    %v3530 = vunpack.c.l.s4 1983009808
    %v3531 = vunpack.c.0.s8 %v3530
    %v3532 = vlaneseq
    %v3533 = vshrl.u32 %v3532, 7
    %v3534 = vsub.s32 %v3531, %v3533
    %v3535 = vrot.slane %v3521, %v3534
    %v3536 = vcombine.low %v3528, %v3535
    %v3537 = vcombine.low %v2475, %v2476
    %v3538 = vcombine.low %v2483, %v2484
    %v3540 = vunpack.c.l.s4 1983009808
    %v3541 = vunpack.c.0.s8 %v3540
    %v3542 = vlaneseq
    %v3543 = vshrl.u32 %v3542, 7
    %v3544 = vsub.s32 %v3541, %v3543
    %v3545 = vrot.slane %v3537, %v3544
    %v3547 = vunpack.c.l.s4 1983009808
    %v3548 = vunpack.c.0.s8 %v3547
    %v3549 = vlaneseq
    %v3550 = vshrl.u32 %v3549, 7
    %v3551 = vsub.s32 %v3548, %v3550
    %v3552 = vrot.slane %v3538, %v3551
    %v3553 = vcombine.low %v3545, %v3552
    %v3554 = vcombine.low %v2491, %v2492
    %v3555 = vcombine.low %v2499, %v2500
    %v3557 = vunpack.c.l.s4 1983009808
    %v3558 = vunpack.c.0.s8 %v3557
    %v3559 = vlaneseq
    %v3560 = vshrl.u32 %v3559, 7
    %v3561 = vsub.s32 %v3558, %v3560
    %v3562 = vrot.slane %v3554, %v3561
    %v3564 = vunpack.c.l.s4 1983009808
    %v3565 = vunpack.c.0.s8 %v3564
    %v3566 = vlaneseq
    %v3567 = vshrl.u32 %v3566, 7
    %v3568 = vsub.s32 %v3565, %v3567
    %v3569 = vrot.slane %v3555, %v3568
    %v3570 = vcombine.low %v3562, %v3569
    %v3571 = vcombine.low %v2507, %v2508
    %v3572 = vcombine.low %v2515, %v2516
    %v3574 = vunpack.c.l.s4 1983009808
    %v3575 = vunpack.c.0.s8 %v3574
    %v3576 = vlaneseq
    %v3577 = vshrl.u32 %v3576, 7
    %v3578 = vsub.s32 %v3575, %v3577
    %v3579 = vrot.slane %v3571, %v3578
    %v3581 = vunpack.c.l.s4 1983009808
    %v3582 = vunpack.c.0.s8 %v3581
    %v3583 = vlaneseq
    %v3584 = vshrl.u32 %v3583, 7
    %v3585 = vsub.s32 %v3582, %v3584
    %v3586 = vrot.slane %v3572, %v3585
    %v3587 = vcombine.low %v3579, %v3586
    %v3588 = vcombine.low %v2523, %v2524
    %v3589 = vcombine.low %v2531, %v2532
    %v3591 = vunpack.c.l.s4 1983009808
    %v3592 = vunpack.c.0.s8 %v3591
    %v3593 = vlaneseq
    %v3594 = vshrl.u32 %v3593, 7
    %v3595 = vsub.s32 %v3592, %v3594
    %v3596 = vrot.slane %v3588, %v3595
    %v3598 = vunpack.c.l.s4 1983009808
    %v3599 = vunpack.c.0.s8 %v3598
    %v3600 = vlaneseq
    %v3601 = vshrl.u32 %v3600, 7
    %v3602 = vsub.s32 %v3599, %v3601
    %v3603 = vrot.slane %v3589, %v3602
    %v3604 = vcombine.low %v3596, %v3603
    %v3605 = vcombine.low %v2539, %v2540
    %v3606 = vcombine.low %v2547, %v2548
    %v3608 = vunpack.c.l.s4 1983009808
    %v3609 = vunpack.c.0.s8 %v3608
    %v3610 = vlaneseq
    %v3611 = vshrl.u32 %v3610, 7
    %v3612 = vsub.s32 %v3609, %v3611
    %v3613 = vrot.slane %v3605, %v3612
    %v3615 = vunpack.c.l.s4 1983009808
    %v3616 = vunpack.c.0.s8 %v3615
    %v3617 = vlaneseq
    %v3618 = vshrl.u32 %v3617, 7
    %v3619 = vsub.s32 %v3616, %v3618
    %v3620 = vrot.slane %v3606, %v3619
    %v3621 = vcombine.low %v3613, %v3620
    %v3622 = vcombine.low %v2555, %v2556
    %v3623 = vcombine.low %v2563, %v2564
    %v3625 = vunpack.c.l.s4 1983009808
    %v3626 = vunpack.c.0.s8 %v3625
    %v3627 = vlaneseq
    %v3628 = vshrl.u32 %v3627, 7
    %v3629 = vsub.s32 %v3626, %v3628
    %v3630 = vrot.slane %v3622, %v3629
    %v3632 = vunpack.c.l.s4 1983009808
    %v3633 = vunpack.c.0.s8 %v3632
    %v3634 = vlaneseq
    %v3635 = vshrl.u32 %v3634, 7
    %v3636 = vsub.s32 %v3633, %v3635
    %v3637 = vrot.slane %v3623, %v3636
    %v3638 = vcombine.low %v3630, %v3637
    %v3639 = vcombine.low %v2571, %v2572
    %v3640 = vcombine.low %v2579, %v2580
    %v3642 = vunpack.c.l.s4 1983009808
    %v3643 = vunpack.c.0.s8 %v3642
    %v3644 = vlaneseq
    %v3645 = vshrl.u32 %v3644, 7
    %v3646 = vsub.s32 %v3643, %v3645
    %v3647 = vrot.slane %v3639, %v3646
    %v3649 = vunpack.c.l.s4 1983009808
    %v3650 = vunpack.c.0.s8 %v3649
    %v3651 = vlaneseq
    %v3652 = vshrl.u32 %v3651, 7
    %v3653 = vsub.s32 %v3650, %v3652
    %v3654 = vrot.slane %v3640, %v3653
    %v3655 = vcombine.low %v3647, %v3654
    %v3656 = vcombine.low %v2587, %v2588
    %v3657 = vcombine.low %v2595, %v2596
    %v3659 = vunpack.c.l.s4 1983009808
    %v3660 = vunpack.c.0.s8 %v3659
    %v3661 = vlaneseq
    %v3662 = vshrl.u32 %v3661, 7
    %v3663 = vsub.s32 %v3660, %v3662
    %v3664 = vrot.slane %v3656, %v3663
    %v3666 = vunpack.c.l.s4 1983009808
    %v3667 = vunpack.c.0.s8 %v3666
    %v3668 = vlaneseq
    %v3669 = vshrl.u32 %v3668, 7
    %v3670 = vsub.s32 %v3667, %v3669
    %v3671 = vrot.slane %v3657, %v3670
    %v3672 = vcombine.low %v3664, %v3671
    %v3673 = vcombine.low %v2603, %v2604
    %v3674 = vcombine.low %v2611, %v2612
    %v3676 = vunpack.c.l.s4 1983009808
    %v3677 = vunpack.c.0.s8 %v3676
    %v3678 = vlaneseq
    %v3679 = vshrl.u32 %v3678, 7
    %v3680 = vsub.s32 %v3677, %v3679
    %v3681 = vrot.slane %v3673, %v3680
    %v3683 = vunpack.c.l.s4 1983009808
    %v3684 = vunpack.c.0.s8 %v3683
    %v3685 = vlaneseq
    %v3686 = vshrl.u32 %v3685, 7
    %v3687 = vsub.s32 %v3684, %v3686
    %v3688 = vrot.slane %v3674, %v3687
    %v3689 = vcombine.low %v3681, %v3688
    %v3690 = vcombine.low %v2619, %v2620
    %v3691 = vcombine.low %v2627, %v2628
    %v3693 = vunpack.c.l.s4 1983009808
    %v3694 = vunpack.c.0.s8 %v3693
    %v3695 = vlaneseq
    %v3696 = vshrl.u32 %v3695, 7
    %v3697 = vsub.s32 %v3694, %v3696
    %v3698 = vrot.slane %v3690, %v3697
    %v3700 = vunpack.c.l.s4 1983009808
    %v3701 = vunpack.c.0.s8 %v3700
    %v3702 = vlaneseq
    %v3703 = vshrl.u32 %v3702, 7
    %v3704 = vsub.s32 %v3701, %v3703
    %v3705 = vrot.slane %v3691, %v3704
    %v3706 = vcombine.low %v3698, %v3705
    %v3707 = vcombine.low %v2635, %v2636
    %v3708 = vcombine.low %v2643, %v2644
    %v3710 = vunpack.c.l.s4 1983009808
    %v3711 = vunpack.c.0.s8 %v3710
    %v3712 = vlaneseq
    %v3713 = vshrl.u32 %v3712, 7
    %v3714 = vsub.s32 %v3711, %v3713
    %v3715 = vrot.slane %v3707, %v3714
    %v3717 = vunpack.c.l.s4 1983009808
    %v3718 = vunpack.c.0.s8 %v3717
    %v3719 = vlaneseq
    %v3720 = vshrl.u32 %v3719, 7
    %v3721 = vsub.s32 %v3718, %v3720
    %v3722 = vrot.slane %v3708, %v3721
    %v3723 = vcombine.low %v3715, %v3722
    %v3724 = vcombine.low %v2651, %v2652
    %v3725 = vcombine.low %v2659, %v2660
    %v3727 = vunpack.c.l.s4 1983009808
    %v3728 = vunpack.c.0.s8 %v3727
    %v3729 = vlaneseq
    %v3730 = vshrl.u32 %v3729, 7
    %v3731 = vsub.s32 %v3728, %v3730
    %v3732 = vrot.slane %v3724, %v3731
    %v3734 = vunpack.c.l.s4 1983009808
    %v3735 = vunpack.c.0.s8 %v3734
    %v3736 = vlaneseq
    %v3737 = vshrl.u32 %v3736, 7
    %v3738 = vsub.s32 %v3735, %v3737
    %v3739 = vrot.slane %v3725, %v3738
    %v3740 = vcombine.low %v3732, %v3739
    %v3741 = vcombine.low %v2667, %v2668
    %v3742 = vcombine.low %v2675, %v2676
    %v3744 = vunpack.c.l.s4 1983009808
    %v3745 = vunpack.c.0.s8 %v3744
    %v3746 = vlaneseq
    %v3747 = vshrl.u32 %v3746, 7
    %v3748 = vsub.s32 %v3745, %v3747
    %v3749 = vrot.slane %v3741, %v3748
    %v3751 = vunpack.c.l.s4 1983009808
    %v3752 = vunpack.c.0.s8 %v3751
    %v3753 = vlaneseq
    %v3754 = vshrl.u32 %v3753, 7
    %v3755 = vsub.s32 %v3752, %v3754
    %v3756 = vrot.slane %v3742, %v3755
    %v3757 = vcombine.low %v3749, %v3756
    %v3758 = vcombine.low %v2683, %v2684
    %v3759 = vcombine.low %v2691, %v2692
    %v3761 = vunpack.c.l.s4 1983009808
    %v3762 = vunpack.c.0.s8 %v3761
    %v3763 = vlaneseq
    %v3764 = vshrl.u32 %v3763, 7
    %v3765 = vsub.s32 %v3762, %v3764
    %v3766 = vrot.slane %v3758, %v3765
    %v3768 = vunpack.c.l.s4 1983009808
    %v3769 = vunpack.c.0.s8 %v3768
    %v3770 = vlaneseq
    %v3771 = vshrl.u32 %v3770, 7
    %v3772 = vsub.s32 %v3769, %v3771
    %v3773 = vrot.slane %v3759, %v3772
    %v3774 = vcombine.low %v3766, %v3773
    %v3775 = vcombine.low %v2699, %v2700
    %v3776 = vcombine.low %v2707, %v2708
    %v3778 = vunpack.c.l.s4 1983009808
    %v3779 = vunpack.c.0.s8 %v3778
    %v3780 = vlaneseq
    %v3781 = vshrl.u32 %v3780, 7
    %v3782 = vsub.s32 %v3779, %v3781
    %v3783 = vrot.slane %v3775, %v3782
    %v3785 = vunpack.c.l.s4 1983009808
    %v3786 = vunpack.c.0.s8 %v3785
    %v3787 = vlaneseq
    %v3788 = vshrl.u32 %v3787, 7
    %v3789 = vsub.s32 %v3786, %v3788
    %v3790 = vrot.slane %v3776, %v3789
    %v3791 = vcombine.low %v3783, %v3790
    %v3792 = vcombine.low %v2715, %v2716
    %v3793 = vcombine.low %v2723, %v2724
    %v3795 = vunpack.c.l.s4 1983009808
    %v3796 = vunpack.c.0.s8 %v3795
    %v3797 = vlaneseq
    %v3798 = vshrl.u32 %v3797, 7
    %v3799 = vsub.s32 %v3796, %v3798
    %v3800 = vrot.slane %v3792, %v3799
    %v3802 = vunpack.c.l.s4 1983009808
    %v3803 = vunpack.c.0.s8 %v3802
    %v3804 = vlaneseq
    %v3805 = vshrl.u32 %v3804, 7
    %v3806 = vsub.s32 %v3803, %v3805
    %v3807 = vrot.slane %v3793, %v3806
    %v3808 = vcombine.low %v3800, %v3807
    %v3809 = vcombine.low %v2731, %v2732
    %v3810 = vcombine.low %v2739, %v2740
    %v3812 = vunpack.c.l.s4 1983009808
    %v3813 = vunpack.c.0.s8 %v3812
    %v3814 = vlaneseq
    %v3815 = vshrl.u32 %v3814, 7
    %v3816 = vsub.s32 %v3813, %v3815
    %v3817 = vrot.slane %v3809, %v3816
    %v3819 = vunpack.c.l.s4 1983009808
    %v3820 = vunpack.c.0.s8 %v3819
    %v3821 = vlaneseq
    %v3822 = vshrl.u32 %v3821, 7
    %v3823 = vsub.s32 %v3820, %v3822
    %v3824 = vrot.slane %v3810, %v3823
    %v3825 = vcombine.low %v3817, %v3824
    %v3826 = vcombine.low %v2747, %v2748
    %v3827 = vcombine.low %v2755, %v2756
    %v3829 = vunpack.c.l.s4 1983009808
    %v3830 = vunpack.c.0.s8 %v3829
    %v3831 = vlaneseq
    %v3832 = vshrl.u32 %v3831, 7
    %v3833 = vsub.s32 %v3830, %v3832
    %v3834 = vrot.slane %v3826, %v3833
    %v3836 = vunpack.c.l.s4 1983009808
    %v3837 = vunpack.c.0.s8 %v3836
    %v3838 = vlaneseq
    %v3839 = vshrl.u32 %v3838, 7
    %v3840 = vsub.s32 %v3837, %v3839
    %v3841 = vrot.slane %v3827, %v3840
    %v3842 = vcombine.low %v3834, %v3841
    %v3843 = vcombine.low %v2763, %v2764
    %v3844 = vcombine.low %v2771, %v2772
    %v3846 = vunpack.c.l.s4 1983009808
    %v3847 = vunpack.c.0.s8 %v3846
    %v3848 = vlaneseq
    %v3849 = vshrl.u32 %v3848, 7
    %v3850 = vsub.s32 %v3847, %v3849
    %v3851 = vrot.slane %v3843, %v3850
    %v3853 = vunpack.c.l.s4 1983009808
    %v3854 = vunpack.c.0.s8 %v3853
    %v3855 = vlaneseq
    %v3856 = vshrl.u32 %v3855, 7
    %v3857 = vsub.s32 %v3854, %v3856
    %v3858 = vrot.slane %v3844, %v3857
    %v3859 = vcombine.low %v3851, %v3858
    %v3860 = vcombine.low %v2779, %v2780
    %v3861 = vcombine.low %v2787, %v2788
    %v3863 = vunpack.c.l.s4 1983009808
    %v3864 = vunpack.c.0.s8 %v3863
    %v3865 = vlaneseq
    %v3866 = vshrl.u32 %v3865, 7
    %v3867 = vsub.s32 %v3864, %v3866
    %v3868 = vrot.slane %v3860, %v3867
    %v3870 = vunpack.c.l.s4 1983009808
    %v3871 = vunpack.c.0.s8 %v3870
    %v3872 = vlaneseq
    %v3873 = vshrl.u32 %v3872, 7
    %v3874 = vsub.s32 %v3871, %v3873
    %v3875 = vrot.slane %v3861, %v3874
    %v3876 = vcombine.low %v3868, %v3875
    %3877 = vset.pattern.permute.xlu0 0
    %3878 = vperm.xlu0 %3877, %v2805
    %v3879 = vpop.permute.xlu0 %3878
    %3880 = vset.pattern.permute.xlu0 0
    %3881 = vperm.xlu0 %3880, %v2822
    %v3882 = vpop.permute.xlu0 %3881
    %3883 = vset.pattern.permute.xlu0 0
    %3884 = vperm.xlu0 %3883, %v2839
    %v3885 = vpop.permute.xlu0 %3884
    %3886 = vset.pattern.permute.xlu0 0
    %3887 = vperm.xlu0 %3886, %v2856
    %v3888 = vpop.permute.xlu0 %3887
    %3889 = vset.pattern.permute.xlu0 0
    %3890 = vperm.xlu0 %3889, %v2873
    %v3891 = vpop.permute.xlu0 %3890
    %3892 = vset.pattern.permute.xlu0 0
    %3893 = vperm.xlu0 %3892, %v2890
    %v3894 = vpop.permute.xlu0 %3893
    %3895 = vset.pattern.permute.xlu0 0
    %3896 = vperm.xlu0 %3895, %v2907
    %v3897 = vpop.permute.xlu0 %3896
    %3898 = vset.pattern.permute.xlu0 0
    %3899 = vperm.xlu0 %3898, %v2924
    %v3900 = vpop.permute.xlu0 %3899
    %3901 = vset.pattern.permute.xlu0 0
    %3902 = vperm.xlu0 %3901, %v2941
    %v3903 = vpop.permute.xlu0 %3902
    %3904 = vset.pattern.permute.xlu0 0
    %3905 = vperm.xlu0 %3904, %v2958
    %v3906 = vpop.permute.xlu0 %3905
    %3907 = vset.pattern.permute.xlu0 0
    %3908 = vperm.xlu0 %3907, %v2975
    %v3909 = vpop.permute.xlu0 %3908
    %3910 = vset.pattern.permute.xlu0 0
    %3911 = vperm.xlu0 %3910, %v2992
    %v3912 = vpop.permute.xlu0 %3911
    %3913 = vset.pattern.permute.xlu0 0
    %3914 = vperm.xlu0 %3913, %v3009
    %v3915 = vpop.permute.xlu0 %3914
    %3916 = vset.pattern.permute.xlu0 0
    %3917 = vperm.xlu0 %3916, %v3026
    %v3918 = vpop.permute.xlu0 %3917
    %3919 = vset.pattern.permute.xlu0 0
    %3920 = vperm.xlu0 %3919, %v3043
    %v3921 = vpop.permute.xlu0 %3920
    %3922 = vset.pattern.permute.xlu0 0
    %3923 = vperm.xlu0 %3922, %v3060
    %v3924 = vpop.permute.xlu0 %3923
    %3925 = vset.pattern.permute.xlu0 0
    %3926 = vperm.xlu0 %3925, %v3077
    %v3927 = vpop.permute.xlu0 %3926
    %3928 = vset.pattern.permute.xlu0 0
    %3929 = vperm.xlu0 %3928, %v3094
    %v3930 = vpop.permute.xlu0 %3929
    %3931 = vset.pattern.permute.xlu0 0
    %3932 = vperm.xlu0 %3931, %v3111
    %v3933 = vpop.permute.xlu0 %3932
    %3934 = vset.pattern.permute.xlu0 0
    %3935 = vperm.xlu0 %3934, %v3128
    %v3936 = vpop.permute.xlu0 %3935
    %3937 = vset.pattern.permute.xlu0 0
    %3938 = vperm.xlu0 %3937, %v3145
    %v3939 = vpop.permute.xlu0 %3938
    %3940 = vset.pattern.permute.xlu0 0
    %3941 = vperm.xlu0 %3940, %v3162
    %v3942 = vpop.permute.xlu0 %3941
    %3943 = vset.pattern.permute.xlu0 0
    %3944 = vperm.xlu0 %3943, %v3179
    %v3945 = vpop.permute.xlu0 %3944
    %3946 = vset.pattern.permute.xlu0 0
    %3947 = vperm.xlu0 %3946, %v3196
    %v3948 = vpop.permute.xlu0 %3947
    %3949 = vset.pattern.permute.xlu0 0
    %3950 = vperm.xlu0 %3949, %v3213
    %v3951 = vpop.permute.xlu0 %3950
    %3952 = vset.pattern.permute.xlu0 0
    %3953 = vperm.xlu0 %3952, %v3230
    %v3954 = vpop.permute.xlu0 %3953
    %3955 = vset.pattern.permute.xlu0 0
    %3956 = vperm.xlu0 %3955, %v3247
    %v3957 = vpop.permute.xlu0 %3956
    %3958 = vset.pattern.permute.xlu0 0
    %3959 = vperm.xlu0 %3958, %v3264
    %v3960 = vpop.permute.xlu0 %3959
    %3961 = vset.pattern.permute.xlu0 0
    %3962 = vperm.xlu0 %3961, %v3281
    %v3963 = vpop.permute.xlu0 %3962
    %3964 = vset.pattern.permute.xlu0 0
    %3965 = vperm.xlu0 %3964, %v3298
    %v3966 = vpop.permute.xlu0 %3965
    %3967 = vset.pattern.permute.xlu0 0
    %3968 = vperm.xlu0 %3967, %v3315
    %v3969 = vpop.permute.xlu0 %3968
    %3970 = vset.pattern.permute.xlu0 0
    %3971 = vperm.xlu0 %3970, %v3332
    %v3972 = vpop.permute.xlu0 %3971
    %3973 = vset.pattern.permute.xlu0 0
    %3974 = vperm.xlu0 %3973, %v3349
    %v3975 = vpop.permute.xlu0 %3974
    %3976 = vset.pattern.permute.xlu0 0
    %3977 = vperm.xlu0 %3976, %v3366
    %v3978 = vpop.permute.xlu0 %3977
    %3979 = vset.pattern.permute.xlu0 0
    %3980 = vperm.xlu0 %3979, %v3383
    %v3981 = vpop.permute.xlu0 %3980
    %3982 = vset.pattern.permute.xlu0 0
    %3983 = vperm.xlu0 %3982, %v3400
    %v3984 = vpop.permute.xlu0 %3983
    %3985 = vset.pattern.permute.xlu0 0
    %3986 = vperm.xlu0 %3985, %v3417
    %v3987 = vpop.permute.xlu0 %3986
    %3988 = vset.pattern.permute.xlu0 0
    %3989 = vperm.xlu0 %3988, %v3434
    %v3990 = vpop.permute.xlu0 %3989
    %3991 = vset.pattern.permute.xlu0 0
    %3992 = vperm.xlu0 %3991, %v3451
    %v3993 = vpop.permute.xlu0 %3992
    %3994 = vset.pattern.permute.xlu0 0
    %3995 = vperm.xlu0 %3994, %v3468
    %v3996 = vpop.permute.xlu0 %3995
    %3997 = vset.pattern.permute.xlu0 0
    %3998 = vperm.xlu0 %3997, %v3485
    %v3999 = vpop.permute.xlu0 %3998
    %4000 = vset.pattern.permute.xlu0 0
    %4001 = vperm.xlu0 %4000, %v3502
    %v4002 = vpop.permute.xlu0 %4001
    %4003 = vset.pattern.permute.xlu0 0
    %4004 = vperm.xlu0 %4003, %v3519
    %v4005 = vpop.permute.xlu0 %4004
    %4006 = vset.pattern.permute.xlu0 0
    %4007 = vperm.xlu0 %4006, %v3536
    %v4008 = vpop.permute.xlu0 %4007
    %4009 = vset.pattern.permute.xlu0 0
    %4010 = vperm.xlu0 %4009, %v3553
    %v4011 = vpop.permute.xlu0 %4010
    %4012 = vset.pattern.permute.xlu0 0
    %4013 = vperm.xlu0 %4012, %v3570
    %v4014 = vpop.permute.xlu0 %4013
    %4015 = vset.pattern.permute.xlu0 0
    %4016 = vperm.xlu0 %4015, %v3587
    %v4017 = vpop.permute.xlu0 %4016
    %4018 = vset.pattern.permute.xlu0 0
    %4019 = vperm.xlu0 %4018, %v3604
    %v4020 = vpop.permute.xlu0 %4019
    %4021 = vset.pattern.permute.xlu0 0
    %4022 = vperm.xlu0 %4021, %v3621
    %v4023 = vpop.permute.xlu0 %4022
    %4024 = vset.pattern.permute.xlu0 0
    %4025 = vperm.xlu0 %4024, %v3638
    %v4026 = vpop.permute.xlu0 %4025
    %4027 = vset.pattern.permute.xlu0 0
    %4028 = vperm.xlu0 %4027, %v3655
    %v4029 = vpop.permute.xlu0 %4028
    %4030 = vset.pattern.permute.xlu0 0
    %4031 = vperm.xlu0 %4030, %v3672
    %v4032 = vpop.permute.xlu0 %4031
    %4033 = vset.pattern.permute.xlu0 0
    %4034 = vperm.xlu0 %4033, %v3689
    %v4035 = vpop.permute.xlu0 %4034
    %4036 = vset.pattern.permute.xlu0 0
    %4037 = vperm.xlu0 %4036, %v3706
    %v4038 = vpop.permute.xlu0 %4037
    %4039 = vset.pattern.permute.xlu0 0
    %4040 = vperm.xlu0 %4039, %v3723
    %v4041 = vpop.permute.xlu0 %4040
    %4042 = vset.pattern.permute.xlu0 0
    %4043 = vperm.xlu0 %4042, %v3740
    %v4044 = vpop.permute.xlu0 %4043
    %4045 = vset.pattern.permute.xlu0 0
    %4046 = vperm.xlu0 %4045, %v3757
    %v4047 = vpop.permute.xlu0 %4046
    %4048 = vset.pattern.permute.xlu0 0
    %4049 = vperm.xlu0 %4048, %v3774
    %v4050 = vpop.permute.xlu0 %4049
    %4051 = vset.pattern.permute.xlu0 0
    %4052 = vperm.xlu0 %4051, %v3791
    %v4053 = vpop.permute.xlu0 %4052
    %4054 = vset.pattern.permute.xlu0 0
    %4055 = vperm.xlu0 %4054, %v3808
    %v4056 = vpop.permute.xlu0 %4055
    %4057 = vset.pattern.permute.xlu0 0
    %4058 = vperm.xlu0 %4057, %v3825
    %v4059 = vpop.permute.xlu0 %4058
    %4060 = vset.pattern.permute.xlu0 0
    %4061 = vperm.xlu0 %4060, %v3842
    %v4062 = vpop.permute.xlu0 %4061
    %4063 = vset.pattern.permute.xlu0 0
    %4064 = vperm.xlu0 %4063, %v3859
    %v4065 = vpop.permute.xlu0 %4064
    %4066 = vset.pattern.permute.xlu0 0
    %4067 = vperm.xlu0 %4066, %v3876
    %v4068 = vpop.permute.xlu0 %4067
    %v4069 = vlaneseq
    %v4070 = vand.u32 %v4069, 127
    %v4071 = vlaneseq
    %v4072 = vshrl.u32 %v4071, 7
    %v4073 = vsub.s32 %v4070, %v4072
    %v4074 = vrot.slane %v3879, %v4073
    %v4075 = vadd.s32 %v4070, 4294967288
    %v4076 = vlaneseq
    %v4077 = vshrl.u32 %v4076, 7
    %v4078 = vsub.s32 %v4075, %v4077
    %v4079 = vrot.slane %v3882, %v4078
    %vm4080 = vcmask 130112
    %v4081 = vsel %vm4080, %v4079, %v4074
    %v4082 = vadd.s32 %v4070, 4294967280
    %v4083 = vlaneseq
    %v4084 = vshrl.u32 %v4083, 7
    %v4085 = vsub.s32 %v4082, %v4084
    %v4086 = vrot.slane %v3885, %v4085
    %vm4087 = vcmask 195712
    %v4088 = vsel %vm4087, %v4086, %v4081
    %v4089 = vadd.s32 %v4070, 4294967272
    %v4090 = vlaneseq
    %v4091 = vshrl.u32 %v4090, 7
    %v4092 = vsub.s32 %v4089, %v4091
    %v4093 = vrot.slane %v3888, %v4092
    %vm4094 = vcmask 261312
    %v4095 = vsel %vm4094, %v4093, %v4088
    %v4096 = vadd.s32 %v4070, 4294967264
    %v4097 = vlaneseq
    %v4098 = vshrl.u32 %v4097, 7
    %v4099 = vsub.s32 %v4096, %v4098
    %v4100 = vrot.slane %v3891, %v4099
    %vm4101 = vcmask 326912
    %v4102 = vsel %vm4101, %v4100, %v4095
    %v4103 = vadd.s32 %v4070, 4294967256
    %v4104 = vlaneseq
    %v4105 = vshrl.u32 %v4104, 7
    %v4106 = vsub.s32 %v4103, %v4105
    %v4107 = vrot.slane %v3894, %v4106
    %vm4108 = vcmask 392512
    %v4109 = vsel %vm4108, %v4107, %v4102
    %v4110 = vadd.s32 %v4070, 4294967248
    %v4111 = vlaneseq
    %v4112 = vshrl.u32 %v4111, 7
    %v4113 = vsub.s32 %v4110, %v4112
    %v4114 = vrot.slane %v3897, %v4113
    %vm4115 = vcmask 458112
    %v4116 = vsel %vm4115, %v4114, %v4109
    %v4117 = vadd.s32 %v4070, 4294967240
    %v4118 = vlaneseq
    %v4119 = vshrl.u32 %v4118, 7
    %v4120 = vsub.s32 %v4117, %v4119
    %v4121 = vrot.slane %v3900, %v4120
    %vm4122 = vcmask 523712
    %v4123 = vsel %vm4122, %v4121, %v4116
    %v4124 = vadd.s32 %v4070, 4294967232
    %v4125 = vlaneseq
    %v4126 = vshrl.u32 %v4125, 7
    %v4127 = vsub.s32 %v4124, %v4126
    %v4128 = vrot.slane %v3903, %v4127
    %vm4129 = vcmask 589312
    %v4130 = vsel %vm4129, %v4128, %v4123
    %v4131 = vadd.s32 %v4070, 4294967224
    %v4132 = vlaneseq
    %v4133 = vshrl.u32 %v4132, 7
    %v4134 = vsub.s32 %v4131, %v4133
    %v4135 = vrot.slane %v3906, %v4134
    %vm4136 = vcmask 654912
    %v4137 = vsel %vm4136, %v4135, %v4130
    %v4138 = vadd.s32 %v4070, 4294967216
    %v4139 = vlaneseq
    %v4140 = vshrl.u32 %v4139, 7
    %v4141 = vsub.s32 %v4138, %v4140
    %v4142 = vrot.slane %v3909, %v4141
    %vm4143 = vcmask 720512
    %v4144 = vsel %vm4143, %v4142, %v4137
    %v4145 = vadd.s32 %v4070, 4294967208
    %v4146 = vlaneseq
    %v4147 = vshrl.u32 %v4146, 7
    %v4148 = vsub.s32 %v4145, %v4147
    %v4149 = vrot.slane %v3912, %v4148
    %vm4150 = vcmask 786112
    %v4151 = vsel %vm4150, %v4149, %v4144
    %v4152 = vadd.s32 %v4070, 4294967200
    %v4153 = vlaneseq
    %v4154 = vshrl.u32 %v4153, 7
    %v4155 = vsub.s32 %v4152, %v4154
    %v4156 = vrot.slane %v3915, %v4155
    %vm4157 = vcmask 851712
    %v4158 = vsel %vm4157, %v4156, %v4151
    %v4159 = vadd.s32 %v4070, 4294967192
    %v4160 = vlaneseq
    %v4161 = vshrl.u32 %v4160, 7
    %v4162 = vsub.s32 %v4159, %v4161
    %v4163 = vrot.slane %v3918, %v4162
    %vm4164 = vcmask 917312
    %v4165 = vsel %vm4164, %v4163, %v4158
    %v4166 = vadd.s32 %v4070, 4294967184
    %v4167 = vlaneseq
    %v4168 = vshrl.u32 %v4167, 7
    %v4169 = vsub.s32 %v4166, %v4168
    %v4170 = vrot.slane %v3921, %v4169
    %vm4171 = vcmask 982912
    %v4172 = vsel %vm4171, %v4170, %v4165
    %v4173 = vadd.s32 %v4070, 4294967176
    %v4174 = vlaneseq
    %v4175 = vshrl.u32 %v4174, 7
    %v4176 = vsub.s32 %v4173, %v4175
    %v4177 = vrot.slane %v3924, %v4176
    %vm4178 = vcmask 1048512
    %v4179 = vsel %vm4178, %v4177, %v4172
    %v4180 = vlaneseq
    %v4181 = vshrl.u32 %v4180, 7
    %v4182 = vsub.s32 %v4070, %v4181
    %v4183 = vrot.slane %v3927, %v4182
    %v4184 = vlaneseq
    %v4185 = vshrl.u32 %v4184, 7
    %v4186 = vsub.s32 %v4075, %v4185
    %v4187 = vrot.slane %v3930, %v4186
    %v4188 = vsel %vm4080, %v4187, %v4183
    %v4189 = vlaneseq
    %v4190 = vshrl.u32 %v4189, 7
    %v4191 = vsub.s32 %v4082, %v4190
    %v4192 = vrot.slane %v3933, %v4191
    %v4193 = vsel %vm4087, %v4192, %v4188
    %v4194 = vlaneseq
    %v4195 = vshrl.u32 %v4194, 7
    %v4196 = vsub.s32 %v4089, %v4195
    %v4197 = vrot.slane %v3936, %v4196
    %v4198 = vsel %vm4094, %v4197, %v4193
    %v4199 = vlaneseq
    %v4200 = vshrl.u32 %v4199, 7
    %v4201 = vsub.s32 %v4096, %v4200
    %v4202 = vrot.slane %v3939, %v4201
    %v4203 = vsel %vm4101, %v4202, %v4198
    %v4204 = vlaneseq
    %v4205 = vshrl.u32 %v4204, 7
    %v4206 = vsub.s32 %v4103, %v4205
    %v4207 = vrot.slane %v3942, %v4206
    %v4208 = vsel %vm4108, %v4207, %v4203
    %v4209 = vlaneseq
    %v4210 = vshrl.u32 %v4209, 7
    %v4211 = vsub.s32 %v4110, %v4210
    %v4212 = vrot.slane %v3945, %v4211
    %v4213 = vsel %vm4115, %v4212, %v4208
    %v4214 = vlaneseq
    %v4215 = vshrl.u32 %v4214, 7
    %v4216 = vsub.s32 %v4117, %v4215
    %v4217 = vrot.slane %v3948, %v4216
    %v4218 = vsel %vm4122, %v4217, %v4213
    %v4219 = vlaneseq
    %v4220 = vshrl.u32 %v4219, 7
    %v4221 = vsub.s32 %v4124, %v4220
    %v4222 = vrot.slane %v3951, %v4221
    %v4223 = vsel %vm4129, %v4222, %v4218
    %v4224 = vlaneseq
    %v4225 = vshrl.u32 %v4224, 7
    %v4226 = vsub.s32 %v4131, %v4225
    %v4227 = vrot.slane %v3954, %v4226
    %v4228 = vsel %vm4136, %v4227, %v4223
    %v4229 = vlaneseq
    %v4230 = vshrl.u32 %v4229, 7
    %v4231 = vsub.s32 %v4138, %v4230
    %v4232 = vrot.slane %v3957, %v4231
    %v4233 = vsel %vm4143, %v4232, %v4228
    %v4234 = vlaneseq
    %v4235 = vshrl.u32 %v4234, 7
    %v4236 = vsub.s32 %v4145, %v4235
    %v4237 = vrot.slane %v3960, %v4236
    %v4238 = vsel %vm4150, %v4237, %v4233
    %v4239 = vlaneseq
    %v4240 = vshrl.u32 %v4239, 7
    %v4241 = vsub.s32 %v4152, %v4240
    %v4242 = vrot.slane %v3963, %v4241
    %v4243 = vsel %vm4157, %v4242, %v4238
    %v4244 = vlaneseq
    %v4245 = vshrl.u32 %v4244, 7
    %v4246 = vsub.s32 %v4159, %v4245
    %v4247 = vrot.slane %v3966, %v4246
    %v4248 = vsel %vm4164, %v4247, %v4243
    %v4249 = vlaneseq
    %v4250 = vshrl.u32 %v4249, 7
    %v4251 = vsub.s32 %v4166, %v4250
    %v4252 = vrot.slane %v3969, %v4251
    %v4253 = vsel %vm4171, %v4252, %v4248
    %v4254 = vlaneseq
    %v4255 = vshrl.u32 %v4254, 7
    %v4256 = vsub.s32 %v4173, %v4255
    %v4257 = vrot.slane %v3972, %v4256
    %v4258 = vsel %vm4178, %v4257, %v4253
    %v4259 = vlaneseq
    %v4260 = vshrl.u32 %v4259, 7
    %v4261 = vsub.s32 %v4070, %v4260
    %v4262 = vrot.slane %v3975, %v4261
    %v4263 = vlaneseq
    %v4264 = vshrl.u32 %v4263, 7
    %v4265 = vsub.s32 %v4075, %v4264
    %v4266 = vrot.slane %v3978, %v4265
    %v4267 = vsel %vm4080, %v4266, %v4262
    %v4268 = vlaneseq
    %v4269 = vshrl.u32 %v4268, 7
    %v4270 = vsub.s32 %v4082, %v4269
    %v4271 = vrot.slane %v3981, %v4270
    %v4272 = vsel %vm4087, %v4271, %v4267
    %v4273 = vlaneseq
    %v4274 = vshrl.u32 %v4273, 7
    %v4275 = vsub.s32 %v4089, %v4274
    %v4276 = vrot.slane %v3984, %v4275
    %v4277 = vsel %vm4094, %v4276, %v4272
    %v4278 = vlaneseq
    %v4279 = vshrl.u32 %v4278, 7
    %v4280 = vsub.s32 %v4096, %v4279
    %v4281 = vrot.slane %v3987, %v4280
    %v4282 = vsel %vm4101, %v4281, %v4277
    %v4283 = vlaneseq
    %v4284 = vshrl.u32 %v4283, 7
    %v4285 = vsub.s32 %v4103, %v4284
    %v4286 = vrot.slane %v3990, %v4285
    %v4287 = vsel %vm4108, %v4286, %v4282
    %v4288 = vlaneseq
    %v4289 = vshrl.u32 %v4288, 7
    %v4290 = vsub.s32 %v4110, %v4289
    %v4291 = vrot.slane %v3993, %v4290
    %v4292 = vsel %vm4115, %v4291, %v4287
    %v4293 = vlaneseq
    %v4294 = vshrl.u32 %v4293, 7
    %v4295 = vsub.s32 %v4117, %v4294
    %v4296 = vrot.slane %v3996, %v4295
    %v4297 = vsel %vm4122, %v4296, %v4292
    %v4298 = vlaneseq
    %v4299 = vshrl.u32 %v4298, 7
    %v4300 = vsub.s32 %v4124, %v4299
    %v4301 = vrot.slane %v3999, %v4300
    %v4302 = vsel %vm4129, %v4301, %v4297
    %v4303 = vlaneseq
    %v4304 = vshrl.u32 %v4303, 7
    %v4305 = vsub.s32 %v4131, %v4304
    %v4306 = vrot.slane %v4002, %v4305
    %v4307 = vsel %vm4136, %v4306, %v4302
    %v4308 = vlaneseq
    %v4309 = vshrl.u32 %v4308, 7
    %v4310 = vsub.s32 %v4138, %v4309
    %v4311 = vrot.slane %v4005, %v4310
    %v4312 = vsel %vm4143, %v4311, %v4307
    %v4313 = vlaneseq
    %v4314 = vshrl.u32 %v4313, 7
    %v4315 = vsub.s32 %v4145, %v4314
    %v4316 = vrot.slane %v4008, %v4315
    %v4317 = vsel %vm4150, %v4316, %v4312
    %v4318 = vlaneseq
    %v4319 = vshrl.u32 %v4318, 7
    %v4320 = vsub.s32 %v4152, %v4319
    %v4321 = vrot.slane %v4011, %v4320
    %v4322 = vsel %vm4157, %v4321, %v4317
    %v4323 = vlaneseq
    %v4324 = vshrl.u32 %v4323, 7
    %v4325 = vsub.s32 %v4159, %v4324
    %v4326 = vrot.slane %v4014, %v4325
    %v4327 = vsel %vm4164, %v4326, %v4322
    %v4328 = vlaneseq
    %v4329 = vshrl.u32 %v4328, 7
    %v4330 = vsub.s32 %v4166, %v4329
    %v4331 = vrot.slane %v4017, %v4330
    %v4332 = vsel %vm4171, %v4331, %v4327
    %v4333 = vlaneseq
    %v4334 = vshrl.u32 %v4333, 7
    %v4335 = vsub.s32 %v4173, %v4334
    %v4336 = vrot.slane %v4020, %v4335
    %v4337 = vsel %vm4178, %v4336, %v4332
    %v4338 = vlaneseq
    %v4339 = vshrl.u32 %v4338, 7
    %v4340 = vsub.s32 %v4070, %v4339
    %v4341 = vrot.slane %v4023, %v4340
    %v4342 = vlaneseq
    %v4343 = vshrl.u32 %v4342, 7
    %v4344 = vsub.s32 %v4075, %v4343
    %v4345 = vrot.slane %v4026, %v4344
    %v4346 = vsel %vm4080, %v4345, %v4341
    %v4347 = vlaneseq
    %v4348 = vshrl.u32 %v4347, 7
    %v4349 = vsub.s32 %v4082, %v4348
    %v4350 = vrot.slane %v4029, %v4349
    %v4351 = vsel %vm4087, %v4350, %v4346
    %v4352 = vlaneseq
    %v4353 = vshrl.u32 %v4352, 7
    %v4354 = vsub.s32 %v4089, %v4353
    %v4355 = vrot.slane %v4032, %v4354
    %v4356 = vsel %vm4094, %v4355, %v4351
    %v4357 = vlaneseq
    %v4358 = vshrl.u32 %v4357, 7
    %v4359 = vsub.s32 %v4096, %v4358
    %v4360 = vrot.slane %v4035, %v4359
    %v4361 = vsel %vm4101, %v4360, %v4356
    %v4362 = vlaneseq
    %v4363 = vshrl.u32 %v4362, 7
    %v4364 = vsub.s32 %v4103, %v4363
    %v4365 = vrot.slane %v4038, %v4364
    %v4366 = vsel %vm4108, %v4365, %v4361
    %v4367 = vlaneseq
    %v4368 = vshrl.u32 %v4367, 7
    %v4369 = vsub.s32 %v4110, %v4368
    %v4370 = vrot.slane %v4041, %v4369
    %v4371 = vsel %vm4115, %v4370, %v4366
    %v4372 = vlaneseq
    %v4373 = vshrl.u32 %v4372, 7
    %v4374 = vsub.s32 %v4117, %v4373
    %v4375 = vrot.slane %v4044, %v4374
    %v4376 = vsel %vm4122, %v4375, %v4371
    %v4377 = vlaneseq
    %v4378 = vshrl.u32 %v4377, 7
    %v4379 = vsub.s32 %v4124, %v4378
    %v4380 = vrot.slane %v4047, %v4379
    %v4381 = vsel %vm4129, %v4380, %v4376
    %v4382 = vlaneseq
    %v4383 = vshrl.u32 %v4382, 7
    %v4384 = vsub.s32 %v4131, %v4383
    %v4385 = vrot.slane %v4050, %v4384
    %v4386 = vsel %vm4136, %v4385, %v4381
    %v4387 = vlaneseq
    %v4388 = vshrl.u32 %v4387, 7
    %v4389 = vsub.s32 %v4138, %v4388
    %v4390 = vrot.slane %v4053, %v4389
    %v4391 = vsel %vm4143, %v4390, %v4386
    %v4392 = vlaneseq
    %v4393 = vshrl.u32 %v4392, 7
    %v4394 = vsub.s32 %v4145, %v4393
    %v4395 = vrot.slane %v4056, %v4394
    %v4396 = vsel %vm4150, %v4395, %v4391
    %v4397 = vlaneseq
    %v4398 = vshrl.u32 %v4397, 7
    %v4399 = vsub.s32 %v4152, %v4398
    %v4400 = vrot.slane %v4059, %v4399
    %v4401 = vsel %vm4157, %v4400, %v4396
    %v4402 = vlaneseq
    %v4403 = vshrl.u32 %v4402, 7
    %v4404 = vsub.s32 %v4159, %v4403
    %v4405 = vrot.slane %v4062, %v4404
    %v4406 = vsel %vm4164, %v4405, %v4401
    %v4407 = vlaneseq
    %v4408 = vshrl.u32 %v4407, 7
    %v4409 = vsub.s32 %v4166, %v4408
    %v4410 = vrot.slane %v4065, %v4409
    %v4411 = vsel %vm4171, %v4410, %v4406
    %v4412 = vlaneseq
    %v4413 = vshrl.u32 %v4412, 7
    %v4414 = vsub.s32 %v4173, %v4413
    %v4415 = vrot.slane %v4068, %v4414
    %v4416 = vsel %vm4178, %v4415, %v4411
    %vm4417 = vcmask 1041409
    %v4418 = vsel %vm4417, %v4337, %v4179
    %v4419 = vsel %vm4417, %v4416, %v4258
    %v4420 = vcombine.low %v4418, %v4419
    %v4422 = vunpack.c.l.s4 1983009808
    %v4423 = vunpack.c.0.s8 %v4422
    %v4424 = vlaneseq
    %v4425 = vshrl.u32 %v4424, 7
    %v4426 = vsub.s32 %v4423, %v4425
    %v4427 = vrot.slane %v4420, %v4426
    %4429 = vst [vmem:[#allocation5 + $0x2] sm:$0xf] %v4427
    %4430 = vst [vmem:[#allocation5] sm:$0x3] 0.0
    %4431 = vst [vmem:[#allocation5 + $0x6] sm:$0x3] 0.0
    // Predicated region
    $region10: #{tpu_custom_call.1} parent=1 // pred_check
      _
    $region11: #{tpu_custom_call.1} parent=1 // pred_check_branch
      %4433 = sbr.rel (0) target = $region13
    $region12: #{tpu_custom_call.1} parent=1 // pred_region
      %s4435 = ssub.s32 128, 128
      %4436 = vsyncadd [#allocation4], %s4435
      %s4438 = sshll.u32 [#allocation5], 4
      %s4439 = int_to_ptr.vmem [resolvable:$true] %s4438
      %4441 = dma.vmem_to_hbm [thread:$0]  %s4439, 128, %s1, [#allocation4]
    $region13: #{tpu_custom_call.1} parent=1 // pred_fallthru
      _
    // Predicated region
    $region14: #{tpu_custom_call.1} parent=1 // pred_check
      _
    $region15: #{tpu_custom_call.1} parent=1 // pred_check_branch
      %4443 = sbr.rel (0) target = $region17
    $region16: #{tpu_custom_call.1} parent=1 // pred_region
      %4444 = dma.done [#allocation4], 128
    $region17: #{tpu_custom_call.1} parent=1 // pred_fallthru
      _
    %4445 = vsyncpa [#allocation3], 1
    %4446 = vsyncpa [#allocation4], 1

</llo_original>
